<compile_context>
chip_gen: v7x
topology: tpu7x:2x2x1
jax: 0.10.0
libtpu: 0.0.40
codegen_flags: <defaults>
</compile_context>

<pallas_src>
import numpy as np
import jax
import jax.numpy as jnp
from jax.experimental import pallas as pl
from jax.experimental.pallas import tpu as pltpu

NEG_SLOPE = 0.2   # LeakyReLU slope used throughout the Encoder
BN_EPS = 1e-5


def _fold_bn(gamma, beta, mean, var):
    scale = gamma / jnp.sqrt(var + BN_EPS)
    bias = beta - mean * scale
    return scale, bias


# ----------------------------------------------------------------------------
# Host-side weight preparation for the fused-lane (H, W*C) activation layout.
# ----------------------------------------------------------------------------
def _build_bands(w_hwio, W, scale=None):
    """Per-kernel-row 'band' weights for a stride-1 same-padded conv.

    Activation layout is (H, W*Cin) with fused index w*Cin + ci.
    bands[kh][wi*Cin + ci, wo*Cout + co] = w[kh, wi - wo + pw, ci, co]
    (zero outside the kernel support), so one matmul per kh implements all
    horizontal taps at once and zero-padding along W is implicit.
    Optional per-output-channel `scale` (folded BatchNorm) is multiplied in.
    """
    w = np.asarray(w_hwio, np.float32)
    KH, KW, Cin, Cout = w.shape
    if scale is not None:
        w = w * np.asarray(scale, np.float32).reshape(1, 1, 1, Cout)
    pw = KW // 2
    bands = np.zeros((KH, W * Cin, W * Cout), np.float32)
    for kh in range(KH):
        for kw in range(KW):
            dw = kw - pw
            for wo in range(W):
                wi = wo + dw
                if 0 <= wi < W:
                    bands[kh, wi * Cin:(wi + 1) * Cin,
                          wo * Cout:(wo + 1) * Cout] = w[kh, kw]
    return jnp.asarray(bands, jnp.bfloat16)


def _pool_mats(H, W, C):
    """2x2 average pooling as two matmuls in the fused (H, W*C) layout:
    out = Pv @ x @ Ph, with the 0.25 scale folded into Ph."""
    pv = np.zeros((H // 2, H), np.float32)
    idx = np.arange(H // 2)
    pv[idx, 2 * idx] = 1.0
    pv[idx, 2 * idx + 1] = 1.0
    ph = np.zeros((W * C, (W // 2) * C), np.float32)
    for w in range(W):
        for c in range(C):
            ph[w * C + c, (w // 2) * C + c] = 0.25
    return jnp.asarray(pv, jnp.bfloat16), jnp.asarray(ph, jnp.bfloat16)


def _bias_row(bias, W):
    """Folded-BN bias tiled over W -> (1, W*C) row broadcast over H."""
    b = np.asarray(bias, np.float32)
    return jnp.asarray(np.tile(b, W)[None, :], jnp.float32)


# ----------------------------------------------------------------------------
# Single fused kernel: conv stack + residual blocks + pools + FC epilogue.
# ----------------------------------------------------------------------------
def _make_encoder_kernel(blocks_meta):
    """blocks_meta: list of {"expand": bool, "pool": bool} in execution order."""

    def lrelu(v):
        return jnp.where(v >= 0.0, v, NEG_SLOPE * v)

    def conv(a, bands_ref, bias_ref=None):
        """Stride-1 same-padded conv in the fused (H, W*Cin) layout.
        bands_ref: (KH, W*Cin, W*Cout) bf16 -> one MXU matmul per kernel row."""
        KH = bands_ref.shape[0]
        pad = KH // 2
        H, L = a.shape
        if pad > 0:
            zr = jnp.zeros((pad, L), a.dtype)
            a_pad = jnp.concatenate([zr, a, zr], axis=0)   # only H is padded
        else:
            a_pad = a
        acc = None
        for kh in range(KH):
            a_sh = a_pad[kh:kh + H, :] if pad > 0 else a_pad
            p = jnp.dot(a_sh.astype(jnp.bfloat16), bands_ref[kh],
                        preferred_element_type=jnp.float32)
            acc = p if acc is None else acc + p
        if bias_ref is not None:
            acc = acc + bias_ref[...]
        return acc

    def pool(a, pv_ref, ph_ref):
        """2x2 average pool as two small lane-dense MXU matmuls."""
        t = jnp.dot(pv_ref[...], a.astype(jnp.bfloat16),
                    preferred_element_type=jnp.float32)
        return jnp.dot(t.astype(jnp.bfloat16), ph_ref[...],
                       preferred_element_type=jnp.float32)

    def kernel(*refs):
        o_ref = refs[-1]
        it = iter(refs[:-1])
        x_ref = next(it)                                    # (1, H0, W0*Cin)
        c0b, b0 = next(it), next(it)
        pv0, ph0 = next(it), next(it)
        blk_refs = []
        for meta in blocks_meta:
            r = {}
            if meta["expand"]:
                r["e"] = next(it)
            r["w1"], r["b1"] = next(it), next(it)
            r["w2"], r["b2"] = next(it), next(it)
            if meta["pool"]:
                r["pv"], r["ph"] = next(it), next(it)
            blk_refs.append(r)
        fcw, fcb = next(it), next(it)

        # main[0:4]: Conv5x5(pad 2) + folded BN + LeakyReLU(0.2) + AvgPool(2)
        x = x_ref[0].astype(jnp.float32)                    # (H0, W0*Cin)
        h = pool(lrelu(conv(x, c0b, b0)), pv0, ph0)

        # Residual blocks; AvgPool(2) after all but the last one.
        for meta, r in zip(blocks_meta, blk_refs):
            ident = conv(h, r["e"]) if meta["expand"] else h
            t = lrelu(conv(h, r["w1"], r["b1"]))
            t = conv(t, r["w2"], r["b2"])
            h = lrelu(t + ident)
            if meta["pool"]:
                h = pool(h, r["pv"], r["ph"])

        # Fused FC (mean head) epilogue: per-feature-row matmuls against
        # (S, S*C, Z) weights -> no flatten/relayout of the feature map.
        Hf = h.shape[0]
        mu = fcb[...]                                       # (1, Z) f32
        for hh in range(Hf):
            mu = mu + jnp.dot(h[hh:hh + 1, :].astype(jnp.bfloat16), fcw[hh],
                              preferred_element_type=jnp.float32)
        o_ref[0] = mu.astype(o_ref.dtype)

    return kernel


def encoder_forward(params, x_nchw):
    """Whole Encoder forward as ONE pallas_call; grid over the batch only."""
    N, Cin, H0, W0 = x_nchw.shape
    # NCHW -> fused-lane NHWC layout (N, H, W*C); one-time tiny transform.
    x = jnp.transpose(x_nchw, (0, 2, 3, 1)).reshape(N, H0, W0 * Cin)
    x = x.astype(jnp.float32)

    inputs = [x]
    in_specs = [pl.BlockSpec((1, H0, W0 * Cin), lambda n: (n, 0, 0))]

    def add_full(arr):
        nd = arr.ndim
        inputs.append(arr)
        in_specs.append(pl.BlockSpec(arr.shape, lambda n, _nd=nd: (0,) * _nd))

    # conv0 + folded BN0 + pool0
    c0 = params["conv0_w"].shape[-1]
    s0, b0 = _fold_bn(*params["bn0"])
    add_full(_build_bands(params["conv0_w"], W0, s0))
    add_full(_bias_row(b0, W0))
    H, W = H0, W0
    pv, ph = _pool_mats(H, W, c0)
    add_full(pv)
    add_full(ph)
    H, W = H // 2, W // 2

    blocks_meta = []
    n_blocks = len(params["blocks"])
    for bi, blk in enumerate(params["blocks"]):
        cout = blk["w2"].shape[-1]
        meta = {"expand": blk["expand_w"] is not None,
                "pool": bi < n_blocks - 1}
        if meta["expand"]:
            add_full(_build_bands(blk["expand_w"], W))
        s1, b1 = _fold_bn(*blk["bn1"])
        s2, b2 = _fold_bn(*blk["bn2"])
        add_full(_build_bands(blk["w1"], W, s1))
        add_full(_bias_row(b1, W))
        add_full(_build_bands(blk["w2"], W, s2))
        add_full(_bias_row(b2, W))
        if meta["pool"]:
            pv, ph = _pool_mats(H, W, cout)
            add_full(pv)
            add_full(ph)
            H, W = H // 2, W // 2
        blocks_meta.append(meta)

    c_last = params["blocks"][-1]["w2"].shape[-1]
    z = params["fc_w"].shape[-1]
    # fc_w rows are stored in NHWC-flatten order (equivalent to permuting the
    # torch Linear weight once at load time); reshape to (S, S*C, Z) so the
    # kernel consumes the fused-layout feature rows directly.
    add_full(jnp.asarray(params["fc_w"], jnp.bfloat16).reshape(H, W * c_last, z))
    add_full(jnp.asarray(params["fc_b"], jnp.float32))

    out = pl.pallas_call(
        _make_encoder_kernel(blocks_meta),
        out_shape=jax.ShapeDtypeStruct((N, 1, z), jnp.float32),
        grid=(N,),
        in_specs=in_specs,
        out_specs=pl.BlockSpec((1, 1, z), lambda n: (n, 0, 0)),
        compiler_params=pltpu.CompilerParams(dimension_semantics=("parallel",)),
    )(*inputs)
    return out[:, 0, :]


# ----------------------------------------------------------------------------
# Parameter construction (deterministic, in-script).
# ----------------------------------------------------------------------------
def _conv_w(key, kh, kw, cin, cout):
    return jax.random.normal(key, (kh, kw, cin, cout), jnp.float32) / np.sqrt(kh * kw * cin)


def _bn_params(key, c):
    k1, k2 = jax.random.split(key)
    gamma = 1.0 + 0.1 * jax.random.normal(k1, (c,), jnp.float32)
    beta = 0.1 * jax.random.normal(k2, (c,), jnp.float32)
    running_mean = jnp.zeros((c,), jnp.float32)
    running_var = jnp.ones((c,), jnp.float32)
    return gamma, beta, running_mean, running_var


def make_encoder_params(key, cdim, z_size, channels, image_size):
    keys = iter(jax.random.split(key, 64))
    params = {}
    cc = channels[0]
    params["conv0_w"] = _conv_w(next(keys), 5, 5, cdim, cc)     # HWIO
    params["bn0"] = _bn_params(next(keys), cc)

    blocks = []
    sz = image_size // 2
    for ch in channels[1:]:
        blocks.append({
            "expand_w": _conv_w(next(keys), 1, 1, cc, ch) if cc != ch else None,
            "w1": _conv_w(next(keys), 3, 3, cc, ch),
            "bn1": _bn_params(next(keys), ch),
            "w2": _conv_w(next(keys), 3, 3, ch, ch),
            "bn2": _bn_params(next(keys), ch),
        })
        cc, sz = ch, sz // 2
    # final ResidualBlock(cc, cc) with no pooling afterwards
    blocks.append({
        "expand_w": None,
        "w1": _conv_w(next(keys), 3, 3, cc, cc),
        "bn1": _bn_params(next(keys), cc),
        "w2": _conv_w(next(keys), 3, 3, cc, cc),
        "bn2": _bn_params(next(keys), cc),
    })
    params["blocks"] = blocks

    num_fc = cc * sz * sz
    # fc_w rows in NHWC-flatten order (both Pallas path and reference use it).
    params["fc_w"] = jax.random.normal(next(keys), (num_fc, z_size), jnp.float32) / np.sqrt(num_fc)
    params["fc_b"] = 0.01 * jax.random.normal(next(keys), (1, z_size), jnp.float32)
    return params


# ----------------------------------------------------------------------------
# Pure-JAX reference (for correctness checking only).
# ----------------------------------------------------------------------------
def encoder_forward_ref(params, x_nchw):
    hi = jax.lax.Precision.HIGHEST

    def conv(x, w, pad):
        return jax.lax.conv_general_dilated(
            x, w, (1, 1), [(pad, pad), (pad, pad)],
            dimension_numbers=("NHWC", "HWIO", "NHWC"), precision=hi)

    def bn(x, bnp):
        s, b = _fold_bn(*bnp)
        return x * s + b

    def lrelu(x):
        return jnp.where(x >= 0, x, NEG_SLOPE * x)

    def pool(x):
        N, H, W, C = x.shape
        return x.reshape(N, H // 2, 2, W // 2, 2, C).mean(axis=(2, 4))

    x = jnp.transpose(x_nchw, (0, 2, 3, 1))
    h = pool(lrelu(bn(conv(x, params["conv0_w"], 2), params["bn0"])))
    n_blocks = len(params["blocks"])
    for bi, blk in enumerate(params["blocks"]):
        identity = conv(h, blk["expand_w"], 0) if blk["expand_w"] is not None else h
        t = lrelu(bn(conv(h, blk["w1"], 1), blk["bn1"]))
        t = bn(conv(t, blk["w2"], 1), blk["bn2"])
        h = lrelu(t + identity)
        if bi < n_blocks - 1:
            h = pool(h)
    y = h.reshape(h.shape[0], -1)                 # NHWC flatten (same fc_w row order)
    return jnp.dot(y, params["fc_w"], precision=hi) + params["fc_b"]


if __name__ == "__main__":
    # Small config consistent with Encoder(cdim=1, z_size=32, channels=(8, 16), image_size=32)
    cdim, z_size, channels, image_size = 1, 32, (8, 16), 32
    batch = 2

    key = jax.random.PRNGKey(0)
    kp, kx = jax.random.split(key)
    params = make_encoder_params(kp, cdim, z_size, channels, image_size)
    x = jax.random.normal(kx, (batch, cdim, image_size, image_size), jnp.float32)

    mu = encoder_forward(params, x)
    mu = jax.block_until_ready(mu)
    assert mu.shape == (batch, z_size), mu.shape

    ref = encoder_forward_ref(params, x)
    err = float(jnp.max(jnp.abs(mu - ref)))
    assert err < 3e-2, f"max abs diff too large: {err}"

    print("KERNEL_OK")
</pallas_src>

<mosaic_0001>
module attributes {stable_mosaic.version = 11 : i64} {
  func.func @kernel(%arg0: i32, %arg1: memref<1x32x32xf32, #tpu.memory_space<vmem>>, %arg2: memref<5x32x256xbf16, #tpu.memory_space<vmem>>, %arg3: memref<1x256xf32, #tpu.memory_space<vmem>>, %arg4: memref<16x32xbf16, #tpu.memory_space<vmem>>, %arg5: memref<256x128xbf16, #tpu.memory_space<vmem>>, %arg6: memref<1x128x256xbf16, #tpu.memory_space<vmem>>, %arg7: memref<3x128x256xbf16, #tpu.memory_space<vmem>>, %arg8: memref<1x256xf32, #tpu.memory_space<vmem>>, %arg9: memref<3x256x256xbf16, #tpu.memory_space<vmem>>, %arg10: memref<1x256xf32, #tpu.memory_space<vmem>>, %arg11: memref<8x16xbf16, #tpu.memory_space<vmem>>, %arg12: memref<256x128xbf16, #tpu.memory_space<vmem>>, %arg13: memref<3x128x128xbf16, #tpu.memory_space<vmem>>, %arg14: memref<1x128xf32, #tpu.memory_space<vmem>>, %arg15: memref<3x128x128xbf16, #tpu.memory_space<vmem>>, %arg16: memref<1x128xf32, #tpu.memory_space<vmem>>, %arg17: memref<8x128x32xbf16, #tpu.memory_space<vmem>>, %arg18: memref<1x32xf32, #tpu.memory_space<vmem>>, %arg19: memref<1x1x32xf32, #tpu.memory_space<vmem>>) attributes {dimension_semantics = [#tpu.dimension_semantics<parallel>], iteration_bounds = array<i64: 2>, scalar_prefetch = 0 : i64, scratch_operands = 0 : i64, tpu.core_type = #tpu.core_type<tc>, window_params = [{transform_indices = @transform_0, window_bounds = array<i64: 1, 32, 32>}, {pipeline_mode = #tpu.pipeline_mode<synchronous>, transform_indices = @transform_1, window_bounds = array<i64: 5, 32, 256>}, {pipeline_mode = #tpu.pipeline_mode<synchronous>, transform_indices = @transform_2, window_bounds = array<i64: 1, 256>}, {pipeline_mode = #tpu.pipeline_mode<synchronous>, transform_indices = @transform_3, window_bounds = array<i64: 16, 32>}, {pipeline_mode = #tpu.pipeline_mode<synchronous>, transform_indices = @transform_4, window_bounds = array<i64: 256, 128>}, {pipeline_mode = #tpu.pipeline_mode<synchronous>, transform_indices = @transform_5, window_bounds = array<i64: 1, 128, 256>}, {pipeline_mode = #tpu.pipeline_mode<synchronous>, transform_indices = @transform_6, window_bounds = array<i64: 3, 128, 256>}, {pipeline_mode = #tpu.pipeline_mode<synchronous>, transform_indices = @transform_7, window_bounds = array<i64: 1, 256>}, {pipeline_mode = #tpu.pipeline_mode<synchronous>, transform_indices = @transform_8, window_bounds = array<i64: 3, 256, 256>}, {pipeline_mode = #tpu.pipeline_mode<synchronous>, transform_indices = @transform_9, window_bounds = array<i64: 1, 256>}, {pipeline_mode = #tpu.pipeline_mode<synchronous>, transform_indices = @transform_10, window_bounds = array<i64: 8, 16>}, {pipeline_mode = #tpu.pipeline_mode<synchronous>, transform_indices = @transform_11, window_bounds = array<i64: 256, 128>}, {pipeline_mode = #tpu.pipeline_mode<synchronous>, transform_indices = @transform_12, window_bounds = array<i64: 3, 128, 128>}, {pipeline_mode = #tpu.pipeline_mode<synchronous>, transform_indices = @transform_13, window_bounds = array<i64: 1, 128>}, {pipeline_mode = #tpu.pipeline_mode<synchronous>, transform_indices = @transform_14, window_bounds = array<i64: 3, 128, 128>}, {pipeline_mode = #tpu.pipeline_mode<synchronous>, transform_indices = @transform_15, window_bounds = array<i64: 1, 128>}, {pipeline_mode = #tpu.pipeline_mode<synchronous>, transform_indices = @transform_16, window_bounds = array<i64: 8, 128, 32>}, {pipeline_mode = #tpu.pipeline_mode<synchronous>, transform_indices = @transform_17, window_bounds = array<i64: 1, 32>}, {transform_indices = @transform_18, window_bounds = array<i64: 1, 1, 32>}]} {
    %c0 = arith.constant 0 : index
    %c0_0 = arith.constant 0 : index
    %c0_1 = arith.constant 0 : index
    %0 = vector.load %arg1[%c0, %c0_0, %c0_1] : memref<1x32x32xf32, #tpu.memory_space<vmem>>, vector<1x32x32xf32>
    %1 = vector.shape_cast %0 : vector<1x32x32xf32> to vector<32x32xf32>
    %cst = arith.constant 0.000000e+00 : f32
    %2 = vector.broadcast %cst : f32 to vector<2x32xf32>
    %3 = tpu.concatenate %2, %1, %2 in 0 : vector<2x32xf32>, vector<32x32xf32>, vector<2x32xf32> -> vector<36x32xf32>
    %4 = vector.extract_strided_slice %3 {offsets = [0, 0], sizes = [32, 32], strides = [1, 1]} : vector<36x32xf32> to vector<32x32xf32>
    %5 = arith.truncf %4 : vector<32x32xf32> to vector<32x32xbf16>
    %c0_2 = arith.constant 0 : index
    %c0_3 = arith.constant 0 : index
    %c0_4 = arith.constant 0 : index
    %6 = vector.load %arg2[%c0_2, %c0_3, %c0_4] : memref<5x32x256xbf16, #tpu.memory_space<vmem>>, vector<1x32x256xbf16>
    %7 = vector.shape_cast %6 : vector<1x32x256xbf16> to vector<32x256xbf16>
    %cst_5 = arith.constant dense<0.000000e+00> : vector<32x256xf32>
    %8 = tpu.matmul %5, %7, %cst_5 {dimension_numbers = #tpu.dot_dimension_numbers<[1], [0], [0], [1], [0, 0, 1, 1], [], []>} : vector<32x32xbf16>, vector<32x256xbf16>, vector<32x256xf32> -> vector<32x256xf32>
    %9 = vector.extract_strided_slice %3 {offsets = [1, 0], sizes = [32, 32], strides = [1, 1]} : vector<36x32xf32> to vector<32x32xf32>
    %10 = arith.truncf %9 : vector<32x32xf32> to vector<32x32xbf16>
    %c1 = arith.constant 1 : index
    %c0_6 = arith.constant 0 : index
    %c0_7 = arith.constant 0 : index
    %11 = vector.load %arg2[%c1, %c0_6, %c0_7] : memref<5x32x256xbf16, #tpu.memory_space<vmem>>, vector<1x32x256xbf16>
    %12 = vector.shape_cast %11 : vector<1x32x256xbf16> to vector<32x256xbf16>
    %cst_8 = arith.constant dense<0.000000e+00> : vector<32x256xf32>
    %13 = tpu.matmul %10, %12, %cst_8 {dimension_numbers = #tpu.dot_dimension_numbers<[1], [0], [0], [1], [0, 0, 1, 1], [], []>} : vector<32x32xbf16>, vector<32x256xbf16>, vector<32x256xf32> -> vector<32x256xf32>
    %14 = arith.addf %8, %13 : vector<32x256xf32>
    %15 = vector.extract_strided_slice %3 {offsets = [2, 0], sizes = [32, 32], strides = [1, 1]} : vector<36x32xf32> to vector<32x32xf32>
    %16 = arith.truncf %15 : vector<32x32xf32> to vector<32x32xbf16>
    %c2 = arith.constant 2 : index
    %c0_9 = arith.constant 0 : index
    %c0_10 = arith.constant 0 : index
    %17 = vector.load %arg2[%c2, %c0_9, %c0_10] : memref<5x32x256xbf16, #tpu.memory_space<vmem>>, vector<1x32x256xbf16>
    %18 = vector.shape_cast %17 : vector<1x32x256xbf16> to vector<32x256xbf16>
    %cst_11 = arith.constant dense<0.000000e+00> : vector<32x256xf32>
    %19 = tpu.matmul %16, %18, %cst_11 {dimension_numbers = #tpu.dot_dimension_numbers<[1], [0], [0], [1], [0, 0, 1, 1], [], []>} : vector<32x32xbf16>, vector<32x256xbf16>, vector<32x256xf32> -> vector<32x256xf32>
    %20 = arith.addf %14, %19 : vector<32x256xf32>
    %21 = vector.extract_strided_slice %3 {offsets = [3, 0], sizes = [32, 32], strides = [1, 1]} : vector<36x32xf32> to vector<32x32xf32>
    %22 = arith.truncf %21 : vector<32x32xf32> to vector<32x32xbf16>
    %c3 = arith.constant 3 : index
    %c0_12 = arith.constant 0 : index
    %c0_13 = arith.constant 0 : index
    %23 = vector.load %arg2[%c3, %c0_12, %c0_13] : memref<5x32x256xbf16, #tpu.memory_space<vmem>>, vector<1x32x256xbf16>
    %24 = vector.shape_cast %23 : vector<1x32x256xbf16> to vector<32x256xbf16>
    %cst_14 = arith.constant dense<0.000000e+00> : vector<32x256xf32>
    %25 = tpu.matmul %22, %24, %cst_14 {dimension_numbers = #tpu.dot_dimension_numbers<[1], [0], [0], [1], [0, 0, 1, 1], [], []>} : vector<32x32xbf16>, vector<32x256xbf16>, vector<32x256xf32> -> vector<32x256xf32>
    %26 = arith.addf %20, %25 : vector<32x256xf32>
    %27 = vector.extract_strided_slice %3 {offsets = [4, 0], sizes = [32, 32], strides = [1, 1]} : vector<36x32xf32> to vector<32x32xf32>
    %28 = arith.truncf %27 : vector<32x32xf32> to vector<32x32xbf16>
    %c4 = arith.constant 4 : index
    %c0_15 = arith.constant 0 : index
    %c0_16 = arith.constant 0 : index
    %29 = vector.load %arg2[%c4, %c0_15, %c0_16] : memref<5x32x256xbf16, #tpu.memory_space<vmem>>, vector<1x32x256xbf16>
    %30 = vector.shape_cast %29 : vector<1x32x256xbf16> to vector<32x256xbf16>
    %cst_17 = arith.constant dense<0.000000e+00> : vector<32x256xf32>
    %31 = tpu.matmul %28, %30, %cst_17 {dimension_numbers = #tpu.dot_dimension_numbers<[1], [0], [0], [1], [0, 0, 1, 1], [], []>} : vector<32x32xbf16>, vector<32x256xbf16>, vector<32x256xf32> -> vector<32x256xf32>
    %32 = arith.addf %26, %31 : vector<32x256xf32>
    %c0_18 = arith.constant 0 : index
    %c0_19 = arith.constant 0 : index
    %33 = vector.load %arg3[%c0_18, %c0_19] : memref<1x256xf32, #tpu.memory_space<vmem>>, vector<1x256xf32>
    %34 = vector.broadcast %33 : vector<1x256xf32> to vector<32x256xf32>
    %35 = arith.addf %32, %34 : vector<32x256xf32>
    %cst_20 = arith.constant 0.000000e+00 : f32
    %36 = vector.broadcast %cst_20 : f32 to vector<32x256xf32>
    %37 = arith.cmpf oge, %35, %36 : vector<32x256xf32>
    %cst_21 = arith.constant 2.000000e-01 : f32
    %38 = vector.broadcast %cst_21 : f32 to vector<32x256xf32>
    %39 = arith.mulf %38, %35 : vector<32x256xf32>
    %40 = arith.select %37, %35, %39 : vector<32x256xi1>, vector<32x256xf32>
    %c0_22 = arith.constant 0 : index
    %c0_23 = arith.constant 0 : index
    %41 = vector.load %arg4[%c0_22, %c0_23] : memref<16x32xbf16, #tpu.memory_space<vmem>>, vector<16x32xbf16>
    %42 = arith.truncf %40 : vector<32x256xf32> to vector<32x256xbf16>
    %cst_24 = arith.constant dense<0.000000e+00> : vector<16x256xf32>
    %43 = tpu.matmul %41, %42, %cst_24 {dimension_numbers = #tpu.dot_dimension_numbers<[1], [0], [0], [1], [0, 0, 1, 1], [], []>} : vector<16x32xbf16>, vector<32x256xbf16>, vector<16x256xf32> -> vector<16x256xf32>
    %44 = arith.truncf %43 : vector<16x256xf32> to vector<16x256xbf16>
    %c0_25 = arith.constant 0 : index
    %c0_26 = arith.constant 0 : index
    %45 = vector.load %arg5[%c0_25, %c0_26] : memref<256x128xbf16, #tpu.memory_space<vmem>>, vector<256x128xbf16>
    %cst_27 = arith.constant dense<0.000000e+00> : vector<16x128xf32>
    %46 = tpu.matmul %44, %45, %cst_27 {dimension_numbers = #tpu.dot_dimension_numbers<[1], [0], [0], [1], [0, 0, 1, 1], [], []>} : vector<16x256xbf16>, vector<256x128xbf16>, vector<16x128xf32> -> vector<16x128xf32>
    %47 = arith.truncf %46 : vector<16x128xf32> to vector<16x128xbf16>
    %c0_28 = arith.constant 0 : index
    %c0_29 = arith.constant 0 : index
    %c0_30 = arith.constant 0 : index
    %48 = vector.load %arg6[%c0_28, %c0_29, %c0_30] : memref<1x128x256xbf16, #tpu.memory_space<vmem>>, vector<1x128x256xbf16>
    %49 = vector.shape_cast %48 : vector<1x128x256xbf16> to vector<128x256xbf16>
    %cst_31 = arith.constant dense<0.000000e+00> : vector<16x256xf32>
    %50 = tpu.matmul %47, %49, %cst_31 {dimension_numbers = #tpu.dot_dimension_numbers<[1], [0], [0], [1], [0, 0, 1, 1], [], []>} : vector<16x128xbf16>, vector<128x256xbf16>, vector<16x256xf32> -> vector<16x256xf32>
    %cst_32 = arith.constant 0.000000e+00 : f32
    %51 = vector.broadcast %cst_32 : f32 to vector<1x128xf32>
    %52 = tpu.concatenate %51, %46, %51 in 0 : vector<1x128xf32>, vector<16x128xf32>, vector<1x128xf32> -> vector<18x128xf32>
    %53 = vector.extract_strided_slice %52 {offsets = [0, 0], sizes = [16, 128], strides = [1, 1]} : vector<18x128xf32> to vector<16x128xf32>
    %54 = arith.truncf %53 : vector<16x128xf32> to vector<16x128xbf16>
    %c0_33 = arith.constant 0 : index
    %c0_34 = arith.constant 0 : index
    %c0_35 = arith.constant 0 : index
    %55 = vector.load %arg7[%c0_33, %c0_34, %c0_35] : memref<3x128x256xbf16, #tpu.memory_space<vmem>>, vector<1x128x256xbf16>
    %56 = vector.shape_cast %55 : vector<1x128x256xbf16> to vector<128x256xbf16>
    %cst_36 = arith.constant dense<0.000000e+00> : vector<16x256xf32>
    %57 = tpu.matmul %54, %56, %cst_36 {dimension_numbers = #tpu.dot_dimension_numbers<[1], [0], [0], [1], [0, 0, 1, 1], [], []>} : vector<16x128xbf16>, vector<128x256xbf16>, vector<16x256xf32> -> vector<16x256xf32>
    %58 = vector.extract_strided_slice %52 {offsets = [1, 0], sizes = [16, 128], strides = [1, 1]} : vector<18x128xf32> to vector<16x128xf32>
    %59 = arith.truncf %58 : vector<16x128xf32> to vector<16x128xbf16>
    %c1_37 = arith.constant 1 : index
    %c0_38 = arith.constant 0 : index
    %c0_39 = arith.constant 0 : index
    %60 = vector.load %arg7[%c1_37, %c0_38, %c0_39] : memref<3x128x256xbf16, #tpu.memory_space<vmem>>, vector<1x128x256xbf16>
    %61 = vector.shape_cast %60 : vector<1x128x256xbf16> to vector<128x256xbf16>
    %cst_40 = arith.constant dense<0.000000e+00> : vector<16x256xf32>
    %62 = tpu.matmul %59, %61, %cst_40 {dimension_numbers = #tpu.dot_dimension_numbers<[1], [0], [0], [1], [0, 0, 1, 1], [], []>} : vector<16x128xbf16>, vector<128x256xbf16>, vector<16x256xf32> -> vector<16x256xf32>
    %63 = arith.addf %57, %62 : vector<16x256xf32>
    %64 = vector.extract_strided_slice %52 {offsets = [2, 0], sizes = [16, 128], strides = [1, 1]} : vector<18x128xf32> to vector<16x128xf32>
    %65 = arith.truncf %64 : vector<16x128xf32> to vector<16x128xbf16>
    %c2_41 = arith.constant 2 : index
    %c0_42 = arith.constant 0 : index
    %c0_43 = arith.constant 0 : index
    %66 = vector.load %arg7[%c2_41, %c0_42, %c0_43] : memref<3x128x256xbf16, #tpu.memory_space<vmem>>, vector<1x128x256xbf16>
    %67 = vector.shape_cast %66 : vector<1x128x256xbf16> to vector<128x256xbf16>
    %cst_44 = arith.constant dense<0.000000e+00> : vector<16x256xf32>
    %68 = tpu.matmul %65, %67, %cst_44 {dimension_numbers = #tpu.dot_dimension_numbers<[1], [0], [0], [1], [0, 0, 1, 1], [], []>} : vector<16x128xbf16>, vector<128x256xbf16>, vector<16x256xf32> -> vector<16x256xf32>
    %69 = arith.addf %63, %68 : vector<16x256xf32>
    %c0_45 = arith.constant 0 : index
    %c0_46 = arith.constant 0 : index
    %70 = vector.load %arg8[%c0_45, %c0_46] : memref<1x256xf32, #tpu.memory_space<vmem>>, vector<1x256xf32>
    %71 = vector.broadcast %70 : vector<1x256xf32> to vector<16x256xf32>
    %72 = arith.addf %69, %71 : vector<16x256xf32>
    %cst_47 = arith.constant 0.000000e+00 : f32
    %73 = vector.broadcast %cst_47 : f32 to vector<16x256xf32>
    %74 = arith.cmpf oge, %72, %73 : vector<16x256xf32>
    %cst_48 = arith.constant 2.000000e-01 : f32
    %75 = vector.broadcast %cst_48 : f32 to vector<16x256xf32>
    %76 = arith.mulf %75, %72 : vector<16x256xf32>
    %77 = arith.select %74, %72, %76 : vector<16x256xi1>, vector<16x256xf32>
    %cst_49 = arith.constant 0.000000e+00 : f32
    %78 = vector.broadcast %cst_49 : f32 to vector<1x256xf32>
    %79 = tpu.concatenate %78, %77, %78 in 0 : vector<1x256xf32>, vector<16x256xf32>, vector<1x256xf32> -> vector<18x256xf32>
    %80 = vector.extract_strided_slice %79 {offsets = [0, 0], sizes = [16, 256], strides = [1, 1]} : vector<18x256xf32> to vector<16x256xf32>
    %81 = arith.truncf %80 : vector<16x256xf32> to vector<16x256xbf16>
    %c0_50 = arith.constant 0 : index
    %c0_51 = arith.constant 0 : index
    %c0_52 = arith.constant 0 : index
    %82 = vector.load %arg9[%c0_50, %c0_51, %c0_52] : memref<3x256x256xbf16, #tpu.memory_space<vmem>>, vector<1x256x256xbf16>
    %83 = vector.shape_cast %82 : vector<1x256x256xbf16> to vector<256x256xbf16>
    %cst_53 = arith.constant dense<0.000000e+00> : vector<16x256xf32>
    %84 = tpu.matmul %81, %83, %cst_53 {dimension_numbers = #tpu.dot_dimension_numbers<[1], [0], [0], [1], [0, 0, 1, 1], [], []>} : vector<16x256xbf16>, vector<256x256xbf16>, vector<16x256xf32> -> vector<16x256xf32>
    %85 = vector.extract_strided_slice %79 {offsets = [1, 0], sizes = [16, 256], strides = [1, 1]} : vector<18x256xf32> to vector<16x256xf32>
    %86 = arith.truncf %85 : vector<16x256xf32> to vector<16x256xbf16>
    %c1_54 = arith.constant 1 : index
    %c0_55 = arith.constant 0 : index
    %c0_56 = arith.constant 0 : index
    %87 = vector.load %arg9[%c1_54, %c0_55, %c0_56] : memref<3x256x256xbf16, #tpu.memory_space<vmem>>, vector<1x256x256xbf16>
    %88 = vector.shape_cast %87 : vector<1x256x256xbf16> to vector<256x256xbf16>
    %cst_57 = arith.constant dense<0.000000e+00> : vector<16x256xf32>
    %89 = tpu.matmul %86, %88, %cst_57 {dimension_numbers = #tpu.dot_dimension_numbers<[1], [0], [0], [1], [0, 0, 1, 1], [], []>} : vector<16x256xbf16>, vector<256x256xbf16>, vector<16x256xf32> -> vector<16x256xf32>
    %90 = arith.addf %84, %89 : vector<16x256xf32>
    %91 = vector.extract_strided_slice %79 {offsets = [2, 0], sizes = [16, 256], strides = [1, 1]} : vector<18x256xf32> to vector<16x256xf32>
    %92 = arith.truncf %91 : vector<16x256xf32> to vector<16x256xbf16>
    %c2_58 = arith.constant 2 : index
    %c0_59 = arith.constant 0 : index
    %c0_60 = arith.constant 0 : index
    %93 = vector.load %arg9[%c2_58, %c0_59, %c0_60] : memref<3x256x256xbf16, #tpu.memory_space<vmem>>, vector<1x256x256xbf16>
    %94 = vector.shape_cast %93 : vector<1x256x256xbf16> to vector<256x256xbf16>
    %cst_61 = arith.constant dense<0.000000e+00> : vector<16x256xf32>
    %95 = tpu.matmul %92, %94, %cst_61 {dimension_numbers = #tpu.dot_dimension_numbers<[1], [0], [0], [1], [0, 0, 1, 1], [], []>} : vector<16x256xbf16>, vector<256x256xbf16>, vector<16x256xf32> -> vector<16x256xf32>
    %96 = arith.addf %90, %95 : vector<16x256xf32>
    %c0_62 = arith.constant 0 : index
    %c0_63 = arith.constant 0 : index
    %97 = vector.load %arg10[%c0_62, %c0_63] : memref<1x256xf32, #tpu.memory_space<vmem>>, vector<1x256xf32>
    %98 = vector.broadcast %97 : vector<1x256xf32> to vector<16x256xf32>
    %99 = arith.addf %96, %98 : vector<16x256xf32>
    %100 = arith.addf %99, %50 : vector<16x256xf32>
    %cst_64 = arith.constant 0.000000e+00 : f32
    %101 = vector.broadcast %cst_64 : f32 to vector<16x256xf32>
    %102 = arith.cmpf oge, %100, %101 : vector<16x256xf32>
    %cst_65 = arith.constant 2.000000e-01 : f32
    %103 = vector.broadcast %cst_65 : f32 to vector<16x256xf32>
    %104 = arith.mulf %103, %100 : vector<16x256xf32>
    %105 = arith.select %102, %100, %104 : vector<16x256xi1>, vector<16x256xf32>
    %c0_66 = arith.constant 0 : index
    %c0_67 = arith.constant 0 : index
    %106 = vector.load %arg11[%c0_66, %c0_67] : memref<8x16xbf16, #tpu.memory_space<vmem>>, vector<8x16xbf16>
    %107 = arith.truncf %105 : vector<16x256xf32> to vector<16x256xbf16>
    %cst_68 = arith.constant dense<0.000000e+00> : vector<8x256xf32>
    %108 = tpu.matmul %106, %107, %cst_68 {dimension_numbers = #tpu.dot_dimension_numbers<[1], [0], [0], [1], [0, 0, 1, 1], [], []>} : vector<8x16xbf16>, vector<16x256xbf16>, vector<8x256xf32> -> vector<8x256xf32>
    %109 = arith.truncf %108 : vector<8x256xf32> to vector<8x256xbf16>
    %c0_69 = arith.constant 0 : index
    %c0_70 = arith.constant 0 : index
    %110 = vector.load %arg12[%c0_69, %c0_70] : memref<256x128xbf16, #tpu.memory_space<vmem>>, vector<256x128xbf16>
    %cst_71 = arith.constant dense<0.000000e+00> : vector<8x128xf32>
    %111 = tpu.matmul %109, %110, %cst_71 {dimension_numbers = #tpu.dot_dimension_numbers<[1], [0], [0], [1], [0, 0, 1, 1], [], []>} : vector<8x256xbf16>, vector<256x128xbf16>, vector<8x128xf32> -> vector<8x128xf32>
    %cst_72 = arith.constant 0.000000e+00 : f32
    %112 = vector.broadcast %cst_72 : f32 to vector<1x128xf32>
    %113 = tpu.concatenate %112, %111, %112 in 0 : vector<1x128xf32>, vector<8x128xf32>, vector<1x128xf32> -> vector<10x128xf32>
    %114 = vector.extract_strided_slice %113 {offsets = [0, 0], sizes = [8, 128], strides = [1, 1]} : vector<10x128xf32> to vector<8x128xf32>
    %115 = arith.truncf %114 : vector<8x128xf32> to vector<8x128xbf16>
    %c0_73 = arith.constant 0 : index
    %c0_74 = arith.constant 0 : index
    %c0_75 = arith.constant 0 : index
    %116 = vector.load %arg13[%c0_73, %c0_74, %c0_75] : memref<3x128x128xbf16, #tpu.memory_space<vmem>>, vector<1x128x128xbf16>
    %117 = vector.shape_cast %116 : vector<1x128x128xbf16> to vector<128x128xbf16>
    %cst_76 = arith.constant dense<0.000000e+00> : vector<8x128xf32>
    %118 = tpu.matmul %115, %117, %cst_76 {dimension_numbers = #tpu.dot_dimension_numbers<[1], [0], [0], [1], [0, 0, 1, 1], [], []>} : vector<8x128xbf16>, vector<128x128xbf16>, vector<8x128xf32> -> vector<8x128xf32>
    %119 = vector.extract_strided_slice %113 {offsets = [1, 0], sizes = [8, 128], strides = [1, 1]} : vector<10x128xf32> to vector<8x128xf32>
    %120 = arith.truncf %119 : vector<8x128xf32> to vector<8x128xbf16>
    %c1_77 = arith.constant 1 : index
    %c0_78 = arith.constant 0 : index
    %c0_79 = arith.constant 0 : index
    %121 = vector.load %arg13[%c1_77, %c0_78, %c0_79] : memref<3x128x128xbf16, #tpu.memory_space<vmem>>, vector<1x128x128xbf16>
    %122 = vector.shape_cast %121 : vector<1x128x128xbf16> to vector<128x128xbf16>
    %cst_80 = arith.constant dense<0.000000e+00> : vector<8x128xf32>
    %123 = tpu.matmul %120, %122, %cst_80 {dimension_numbers = #tpu.dot_dimension_numbers<[1], [0], [0], [1], [0, 0, 1, 1], [], []>} : vector<8x128xbf16>, vector<128x128xbf16>, vector<8x128xf32> -> vector<8x128xf32>
    %124 = arith.addf %118, %123 : vector<8x128xf32>
    %125 = vector.extract_strided_slice %113 {offsets = [2, 0], sizes = [8, 128], strides = [1, 1]} : vector<10x128xf32> to vector<8x128xf32>
    %126 = arith.truncf %125 : vector<8x128xf32> to vector<8x128xbf16>
    %c2_81 = arith.constant 2 : index
    %c0_82 = arith.constant 0 : index
    %c0_83 = arith.constant 0 : index
    %127 = vector.load %arg13[%c2_81, %c0_82, %c0_83] : memref<3x128x128xbf16, #tpu.memory_space<vmem>>, vector<1x128x128xbf16>
    %128 = vector.shape_cast %127 : vector<1x128x128xbf16> to vector<128x128xbf16>
    %cst_84 = arith.constant dense<0.000000e+00> : vector<8x128xf32>
    %129 = tpu.matmul %126, %128, %cst_84 {dimension_numbers = #tpu.dot_dimension_numbers<[1], [0], [0], [1], [0, 0, 1, 1], [], []>} : vector<8x128xbf16>, vector<128x128xbf16>, vector<8x128xf32> -> vector<8x128xf32>
    %130 = arith.addf %124, %129 : vector<8x128xf32>
    %c0_85 = arith.constant 0 : index
    %c0_86 = arith.constant 0 : index
    %131 = vector.load %arg14[%c0_85, %c0_86] : memref<1x128xf32, #tpu.memory_space<vmem>>, vector<1x128xf32>
    %132 = vector.broadcast %131 : vector<1x128xf32> to vector<8x128xf32>
    %133 = arith.addf %130, %132 : vector<8x128xf32>
    %cst_87 = arith.constant 0.000000e+00 : f32
    %134 = vector.broadcast %cst_87 : f32 to vector<8x128xf32>
    %135 = arith.cmpf oge, %133, %134 : vector<8x128xf32>
    %cst_88 = arith.constant 2.000000e-01 : f32
    %136 = vector.broadcast %cst_88 : f32 to vector<8x128xf32>
    %137 = arith.mulf %136, %133 : vector<8x128xf32>
    %138 = arith.select %135, %133, %137 : vector<8x128xi1>, vector<8x128xf32>
    %cst_89 = arith.constant 0.000000e+00 : f32
    %139 = vector.broadcast %cst_89 : f32 to vector<1x128xf32>
    %140 = tpu.concatenate %139, %138, %139 in 0 : vector<1x128xf32>, vector<8x128xf32>, vector<1x128xf32> -> vector<10x128xf32>
    %141 = vector.extract_strided_slice %140 {offsets = [0, 0], sizes = [8, 128], strides = [1, 1]} : vector<10x128xf32> to vector<8x128xf32>
    %142 = arith.truncf %141 : vector<8x128xf32> to vector<8x128xbf16>
    %c0_90 = arith.constant 0 : index
    %c0_91 = arith.constant 0 : index
    %c0_92 = arith.constant 0 : index
    %143 = vector.load %arg15[%c0_90, %c0_91, %c0_92] : memref<3x128x128xbf16, #tpu.memory_space<vmem>>, vector<1x128x128xbf16>
    %144 = vector.shape_cast %143 : vector<1x128x128xbf16> to vector<128x128xbf16>
    %cst_93 = arith.constant dense<0.000000e+00> : vector<8x128xf32>
    %145 = tpu.matmul %142, %144, %cst_93 {dimension_numbers = #tpu.dot_dimension_numbers<[1], [0], [0], [1], [0, 0, 1, 1], [], []>} : vector<8x128xbf16>, vector<128x128xbf16>, vector<8x128xf32> -> vector<8x128xf32>
    %146 = vector.extract_strided_slice %140 {offsets = [1, 0], sizes = [8, 128], strides = [1, 1]} : vector<10x128xf32> to vector<8x128xf32>
    %147 = arith.truncf %146 : vector<8x128xf32> to vector<8x128xbf16>
    %c1_94 = arith.constant 1 : index
    %c0_95 = arith.constant 0 : index
    %c0_96 = arith.constant 0 : index
    %148 = vector.load %arg15[%c1_94, %c0_95, %c0_96] : memref<3x128x128xbf16, #tpu.memory_space<vmem>>, vector<1x128x128xbf16>
    %149 = vector.shape_cast %148 : vector<1x128x128xbf16> to vector<128x128xbf16>
    %cst_97 = arith.constant dense<0.000000e+00> : vector<8x128xf32>
    %150 = tpu.matmul %147, %149, %cst_97 {dimension_numbers = #tpu.dot_dimension_numbers<[1], [0], [0], [1], [0, 0, 1, 1], [], []>} : vector<8x128xbf16>, vector<128x128xbf16>, vector<8x128xf32> -> vector<8x128xf32>
    %151 = arith.addf %145, %150 : vector<8x128xf32>
    %152 = vector.extract_strided_slice %140 {offsets = [2, 0], sizes = [8, 128], strides = [1, 1]} : vector<10x128xf32> to vector<8x128xf32>
    %153 = arith.truncf %152 : vector<8x128xf32> to vector<8x128xbf16>
    %c2_98 = arith.constant 2 : index
    %c0_99 = arith.constant 0 : index
    %c0_100 = arith.constant 0 : index
    %154 = vector.load %arg15[%c2_98, %c0_99, %c0_100] : memref<3x128x128xbf16, #tpu.memory_space<vmem>>, vector<1x128x128xbf16>
    %155 = vector.shape_cast %154 : vector<1x128x128xbf16> to vector<128x128xbf16>
    %cst_101 = arith.constant dense<0.000000e+00> : vector<8x128xf32>
    %156 = tpu.matmul %153, %155, %cst_101 {dimension_numbers = #tpu.dot_dimension_numbers<[1], [0], [0], [1], [0, 0, 1, 1], [], []>} : vector<8x128xbf16>, vector<128x128xbf16>, vector<8x128xf32> -> vector<8x128xf32>
    %157 = arith.addf %151, %156 : vector<8x128xf32>
    %c0_102 = arith.constant 0 : index
    %c0_103 = arith.constant 0 : index
    %158 = vector.load %arg16[%c0_102, %c0_103] : memref<1x128xf32, #tpu.memory_space<vmem>>, vector<1x128xf32>
    %159 = vector.broadcast %158 : vector<1x128xf32> to vector<8x128xf32>
    %160 = arith.addf %157, %159 : vector<8x128xf32>
    %161 = arith.addf %160, %111 : vector<8x128xf32>
    %cst_104 = arith.constant 0.000000e+00 : f32
    %162 = vector.broadcast %cst_104 : f32 to vector<8x128xf32>
    %163 = arith.cmpf oge, %161, %162 : vector<8x128xf32>
    %cst_105 = arith.constant 2.000000e-01 : f32
    %164 = vector.broadcast %cst_105 : f32 to vector<8x128xf32>
    %165 = arith.mulf %164, %161 : vector<8x128xf32>
    %166 = arith.select %163, %161, %165 : vector<8x128xi1>, vector<8x128xf32>
    %c0_106 = arith.constant 0 : index
    %c0_107 = arith.constant 0 : index
    %167 = vector.load %arg18[%c0_106, %c0_107] : memref<1x32xf32, #tpu.memory_space<vmem>>, vector<1x32xf32>
    %168 = vector.extract_strided_slice %166 {offsets = [0, 0], sizes = [1, 128], strides = [1, 1]} : vector<8x128xf32> to vector<1x128xf32>
    %169 = arith.truncf %168 : vector<1x128xf32> to vector<1x128xbf16>
    %c0_108 = arith.constant 0 : index
    %c0_109 = arith.constant 0 : index
    %c0_110 = arith.constant 0 : index
    %170 = vector.load %arg17[%c0_108, %c0_109, %c0_110] : memref<8x128x32xbf16, #tpu.memory_space<vmem>>, vector<1x128x32xbf16>
    %171 = vector.shape_cast %170 : vector<1x128x32xbf16> to vector<128x32xbf16>
    %cst_111 = arith.constant dense<0.000000e+00> : vector<1x32xf32>
    %172 = tpu.matmul %169, %171, %cst_111 {dimension_numbers = #tpu.dot_dimension_numbers<[1], [0], [0], [1], [0, 0, 1, 1], [], []>} : vector<1x128xbf16>, vector<128x32xbf16>, vector<1x32xf32> -> vector<1x32xf32>
    %173 = arith.addf %167, %172 : vector<1x32xf32>
    %174 = vector.extract_strided_slice %166 {offsets = [1, 0], sizes = [1, 128], strides = [1, 1]} : vector<8x128xf32> to vector<1x128xf32>
    %175 = arith.truncf %174 : vector<1x128xf32> to vector<1x128xbf16>
    %c1_112 = arith.constant 1 : index
    %c0_113 = arith.constant 0 : index
    %c0_114 = arith.constant 0 : index
    %176 = vector.load %arg17[%c1_112, %c0_113, %c0_114] : memref<8x128x32xbf16, #tpu.memory_space<vmem>>, vector<1x128x32xbf16>
    %177 = vector.shape_cast %176 : vector<1x128x32xbf16> to vector<128x32xbf16>
    %cst_115 = arith.constant dense<0.000000e+00> : vector<1x32xf32>
    %178 = tpu.matmul %175, %177, %cst_115 {dimension_numbers = #tpu.dot_dimension_numbers<[1], [0], [0], [1], [0, 0, 1, 1], [], []>} : vector<1x128xbf16>, vector<128x32xbf16>, vector<1x32xf32> -> vector<1x32xf32>
    %179 = arith.addf %173, %178 : vector<1x32xf32>
    %180 = vector.extract_strided_slice %166 {offsets = [2, 0], sizes = [1, 128], strides = [1, 1]} : vector<8x128xf32> to vector<1x128xf32>
    %181 = arith.truncf %180 : vector<1x128xf32> to vector<1x128xbf16>
    %c2_116 = arith.constant 2 : index
    %c0_117 = arith.constant 0 : index
    %c0_118 = arith.constant 0 : index
    %182 = vector.load %arg17[%c2_116, %c0_117, %c0_118] : memref<8x128x32xbf16, #tpu.memory_space<vmem>>, vector<1x128x32xbf16>
    %183 = vector.shape_cast %182 : vector<1x128x32xbf16> to vector<128x32xbf16>
    %cst_119 = arith.constant dense<0.000000e+00> : vector<1x32xf32>
    %184 = tpu.matmul %181, %183, %cst_119 {dimension_numbers = #tpu.dot_dimension_numbers<[1], [0], [0], [1], [0, 0, 1, 1], [], []>} : vector<1x128xbf16>, vector<128x32xbf16>, vector<1x32xf32> -> vector<1x32xf32>
    %185 = arith.addf %179, %184 : vector<1x32xf32>
    %186 = vector.extract_strided_slice %166 {offsets = [3, 0], sizes = [1, 128], strides = [1, 1]} : vector<8x128xf32> to vector<1x128xf32>
    %187 = arith.truncf %186 : vector<1x128xf32> to vector<1x128xbf16>
    %c3_120 = arith.constant 3 : index
    %c0_121 = arith.constant 0 : index
    %c0_122 = arith.constant 0 : index
    %188 = vector.load %arg17[%c3_120, %c0_121, %c0_122] : memref<8x128x32xbf16, #tpu.memory_space<vmem>>, vector<1x128x32xbf16>
    %189 = vector.shape_cast %188 : vector<1x128x32xbf16> to vector<128x32xbf16>
    %cst_123 = arith.constant dense<0.000000e+00> : vector<1x32xf32>
    %190 = tpu.matmul %187, %189, %cst_123 {dimension_numbers = #tpu.dot_dimension_numbers<[1], [0], [0], [1], [0, 0, 1, 1], [], []>} : vector<1x128xbf16>, vector<128x32xbf16>, vector<1x32xf32> -> vector<1x32xf32>
    %191 = arith.addf %185, %190 : vector<1x32xf32>
    %192 = vector.extract_strided_slice %166 {offsets = [4, 0], sizes = [1, 128], strides = [1, 1]} : vector<8x128xf32> to vector<1x128xf32>
    %193 = arith.truncf %192 : vector<1x128xf32> to vector<1x128xbf16>
    %c4_124 = arith.constant 4 : index
    %c0_125 = arith.constant 0 : index
    %c0_126 = arith.constant 0 : index
    %194 = vector.load %arg17[%c4_124, %c0_125, %c0_126] : memref<8x128x32xbf16, #tpu.memory_space<vmem>>, vector<1x128x32xbf16>
    %195 = vector.shape_cast %194 : vector<1x128x32xbf16> to vector<128x32xbf16>
    %cst_127 = arith.constant dense<0.000000e+00> : vector<1x32xf32>
    %196 = tpu.matmul %193, %195, %cst_127 {dimension_numbers = #tpu.dot_dimension_numbers<[1], [0], [0], [1], [0, 0, 1, 1], [], []>} : vector<1x128xbf16>, vector<128x32xbf16>, vector<1x32xf32> -> vector<1x32xf32>
    %197 = arith.addf %191, %196 : vector<1x32xf32>
    %198 = vector.extract_strided_slice %166 {offsets = [5, 0], sizes = [1, 128], strides = [1, 1]} : vector<8x128xf32> to vector<1x128xf32>
    %199 = arith.truncf %198 : vector<1x128xf32> to vector<1x128xbf16>
    %c5 = arith.constant 5 : index
    %c0_128 = arith.constant 0 : index
    %c0_129 = arith.constant 0 : index
    %200 = vector.load %arg17[%c5, %c0_128, %c0_129] : memref<8x128x32xbf16, #tpu.memory_space<vmem>>, vector<1x128x32xbf16>
    %201 = vector.shape_cast %200 : vector<1x128x32xbf16> to vector<128x32xbf16>
    %cst_130 = arith.constant dense<0.000000e+00> : vector<1x32xf32>
    %202 = tpu.matmul %199, %201, %cst_130 {dimension_numbers = #tpu.dot_dimension_numbers<[1], [0], [0], [1], [0, 0, 1, 1], [], []>} : vector<1x128xbf16>, vector<128x32xbf16>, vector<1x32xf32> -> vector<1x32xf32>
    %203 = arith.addf %197, %202 : vector<1x32xf32>
    %204 = vector.extract_strided_slice %166 {offsets = [6, 0], sizes = [1, 128], strides = [1, 1]} : vector<8x128xf32> to vector<1x128xf32>
    %205 = arith.truncf %204 : vector<1x128xf32> to vector<1x128xbf16>
    %c6 = arith.constant 6 : index
    %c0_131 = arith.constant 0 : index
    %c0_132 = arith.constant 0 : index
    %206 = vector.load %arg17[%c6, %c0_131, %c0_132] : memref<8x128x32xbf16, #tpu.memory_space<vmem>>, vector<1x128x32xbf16>
    %207 = vector.shape_cast %206 : vector<1x128x32xbf16> to vector<128x32xbf16>
    %cst_133 = arith.constant dense<0.000000e+00> : vector<1x32xf32>
    %208 = tpu.matmul %205, %207, %cst_133 {dimension_numbers = #tpu.dot_dimension_numbers<[1], [0], [0], [1], [0, 0, 1, 1], [], []>} : vector<1x128xbf16>, vector<128x32xbf16>, vector<1x32xf32> -> vector<1x32xf32>
    %209 = arith.addf %203, %208 : vector<1x32xf32>
    %210 = vector.extract_strided_slice %166 {offsets = [7, 0], sizes = [1, 128], strides = [1, 1]} : vector<8x128xf32> to vector<1x128xf32>
    %211 = arith.truncf %210 : vector<1x128xf32> to vector<1x128xbf16>
    %c7 = arith.constant 7 : index
    %c0_134 = arith.constant 0 : index
    %c0_135 = arith.constant 0 : index
    %212 = vector.load %arg17[%c7, %c0_134, %c0_135] : memref<8x128x32xbf16, #tpu.memory_space<vmem>>, vector<1x128x32xbf16>
    %213 = vector.shape_cast %212 : vector<1x128x32xbf16> to vector<128x32xbf16>
    %cst_136 = arith.constant dense<0.000000e+00> : vector<1x32xf32>
    %214 = tpu.matmul %211, %213, %cst_136 {dimension_numbers = #tpu.dot_dimension_numbers<[1], [0], [0], [1], [0, 0, 1, 1], [], []>} : vector<1x128xbf16>, vector<128x32xbf16>, vector<1x32xf32> -> vector<1x32xf32>
    %215 = arith.addf %209, %214 : vector<1x32xf32>
    %c0_137 = arith.constant 0 : index
    %c0_138 = arith.constant 0 : index
    %c0_139 = arith.constant 0 : index
    %216 = vector.load %arg19[%c0_137, %c0_138, %c0_139] : memref<1x1x32xf32, #tpu.memory_space<vmem>>, vector<1x1x32xf32>
    %217 = vector.shape_cast %216 : vector<1x1x32xf32> to vector<1x32xf32>
    %218 = vector.shape_cast %215 : vector<1x32xf32> to vector<1x1x32xf32>
    tpu.vector_store %arg19[%c0_137, %c0_138, %c0_139], %218 {strides = array<i32>} : memref<1x1x32xf32, #tpu.memory_space<vmem>>, vector<1x1x32xf32>,
    return
  }
  func.func @transform_0(%arg0: i32) -> (i32, i32, i32) {
    %c0_i32 = arith.constant 0 : i32
    %c0_i32_0 = arith.constant 0 : i32
    %c0_i32_1 = arith.constant 0 : i32
    return %arg0, %c0_i32, %c0_i32_0 : i32, i32, i32
  }
  func.func @transform_1(%arg0: i32) -> (i32, i32, i32) {
    %c0_i32 = arith.constant 0 : i32
    %c0_i32_0 = arith.constant 0 : i32
    %c0_i32_1 = arith.constant 0 : i32
    %c0_i32_2 = arith.constant 0 : i32
    return %c0_i32, %c0_i32_0, %c0_i32_1 : i32, i32, i32
  }
  func.func @transform_2(%arg0: i32) -> (i32, i32) {
    %c0_i32 = arith.constant 0 : i32
    %c0_i32_0 = arith.constant 0 : i32
    %c0_i32_1 = arith.constant 0 : i32
    return %c0_i32, %c0_i32_0 : i32, i32
  }
  func.func @transform_3(%arg0: i32) -> (i32, i32) {
    %c0_i32 = arith.constant 0 : i32
    %c0_i32_0 = arith.constant 0 : i32
    %c0_i32_1 = arith.constant 0 : i32
    return %c0_i32, %c0_i32_0 : i32, i32
  }
  func.func @transform_4(%arg0: i32) -> (i32, i32) {
    %c0_i32 = arith.constant 0 : i32
    %c0_i32_0 = arith.constant 0 : i32
    %c0_i32_1 = arith.constant 0 : i32
    return %c0_i32, %c0_i32_0 : i32, i32
  }
  func.func @transform_5(%arg0: i32) -> (i32, i32, i32) {
    %c0_i32 = arith.constant 0 : i32
    %c0_i32_0 = arith.constant 0 : i32
    %c0_i32_1 = arith.constant 0 : i32
    %c0_i32_2 = arith.constant 0 : i32
    return %c0_i32, %c0_i32_0, %c0_i32_1 : i32, i32, i32
  }
  func.func @transform_6(%arg0: i32) -> (i32, i32, i32) {
    %c0_i32 = arith.constant 0 : i32
    %c0_i32_0 = arith.constant 0 : i32
    %c0_i32_1 = arith.constant 0 : i32
    %c0_i32_2 = arith.constant 0 : i32
    return %c0_i32, %c0_i32_0, %c0_i32_1 : i32, i32, i32
  }
  func.func @transform_7(%arg0: i32) -> (i32, i32) {
    %c0_i32 = arith.constant 0 : i32
    %c0_i32_0 = arith.constant 0 : i32
    %c0_i32_1 = arith.constant 0 : i32
    return %c0_i32, %c0_i32_0 : i32, i32
  }
  func.func @transform_8(%arg0: i32) -> (i32, i32, i32) {
    %c0_i32 = arith.constant 0 : i32
    %c0_i32_0 = arith.constant 0 : i32
    %c0_i32_1 = arith.constant 0 : i32
    %c0_i32_2 = arith.constant 0 : i32
    return %c0_i32, %c0_i32_0, %c0_i32_1 : i32, i32, i32
  }
  func.func @transform_9(%arg0: i32) -> (i32, i32) {
    %c0_i32 = arith.constant 0 : i32
    %c0_i32_0 = arith.constant 0 : i32
    %c0_i32_1 = arith.constant 0 : i32
    return %c0_i32, %c0_i32_0 : i32, i32
  }
  func.func @transform_10(%arg0: i32) -> (i32, i32) {
    %c0_i32 = arith.constant 0 : i32
    %c0_i32_0 = arith.constant 0 : i32
    %c0_i32_1 = arith.constant 0 : i32
    return %c0_i32, %c0_i32_0 : i32, i32
  }
  func.func @transform_11(%arg0: i32) -> (i32, i32) {
    %c0_i32 = arith.constant 0 : i32
    %c0_i32_0 = arith.constant 0 : i32
    %c0_i32_1 = arith.constant 0 : i32
    return %c0_i32, %c0_i32_0 : i32, i32
  }
  func.func @transform_12(%arg0: i32) -> (i32, i32, i32) {
    %c0_i32 = arith.constant 0 : i32
    %c0_i32_0 = arith.constant 0 : i32
    %c0_i32_1 = arith.constant 0 : i32
    %c0_i32_2 = arith.constant 0 : i32
    return %c0_i32, %c0_i32_0, %c0_i32_1 : i32, i32, i32
  }
  func.func @transform_13(%arg0: i32) -> (i32, i32) {
    %c0_i32 = arith.constant 0 : i32
    %c0_i32_0 = arith.constant 0 : i32
    %c0_i32_1 = arith.constant 0 : i32
    return %c0_i32, %c0_i32_0 : i32, i32
  }
  func.func @transform_14(%arg0: i32) -> (i32, i32, i32) {
    %c0_i32 = arith.constant 0 : i32
    %c0_i32_0 = arith.constant 0 : i32
    %c0_i32_1 = arith.constant 0 : i32
    %c0_i32_2 = arith.constant 0 : i32
    return %c0_i32, %c0_i32_0, %c0_i32_1 : i32, i32, i32
  }
  func.func @transform_15(%arg0: i32) -> (i32, i32) {
    %c0_i32 = arith.constant 0 : i32
    %c0_i32_0 = arith.constant 0 : i32
    %c0_i32_1 = arith.constant 0 : i32
    return %c0_i32, %c0_i32_0 : i32, i32
  }
  func.func @transform_16(%arg0: i32) -> (i32, i32, i32) {
    %c0_i32 = arith.constant 0 : i32
    %c0_i32_0 = arith.constant 0 : i32
    %c0_i32_1 = arith.constant 0 : i32
    %c0_i32_2 = arith.constant 0 : i32
    return %c0_i32, %c0_i32_0, %c0_i32_1 : i32, i32, i32
  }
  func.func @transform_17(%arg0: i32) -> (i32, i32) {
    %c0_i32 = arith.constant 0 : i32
    %c0_i32_0 = arith.constant 0 : i32
    %c0_i32_1 = arith.constant 0 : i32
    return %c0_i32, %c0_i32_0 : i32, i32
  }
  func.func @transform_18(%arg0: i32) -> (i32, i32, i32) {
    %c0_i32 = arith.constant 0 : i32
    %c0_i32_0 = arith.constant 0 : i32
    %c0_i32_1 = arith.constant 0 : i32
    return %arg0, %c0_i32, %c0_i32_0 : i32, i32, i32
  }
}

</mosaic_0001>

<llo_original>
// kernel: tpu_custom_call.1
$region0: #{tpu_custom_call.1}
  #allocation0 [shape = 'u32[]', space=smem, size = 0x4, offset = 0x4, fixed_abs, tag = 'smem constant byte address 0x4 - core index']
  #allocation1 [shape = 'u32[144,128]{1,0:T(1,128)}', space=vmem, size = 0x12000, scoped, tag = 'internal scratch']
  %s0 = inlined_call_operand.vmem [shape: f32[2,32,32], index: 0, kind: input, shape index: {}]
  %s1 = inlined_call_operand.hbm [shape: bf16[5,32,256], index: 1, kind: input, shape index: {}]
  %s2 = inlined_call_operand.vmem [shape: f32[1,256], index: 2, kind: input, shape index: {}]
  %s3 = inlined_call_operand.vmem [shape: bf16[16,32], index: 3, kind: input, shape index: {}]
  %s4 = inlined_call_operand.hbm [shape: bf16[256,128], index: 4, kind: input, shape index: {}]
  %s5 = inlined_call_operand.hbm [shape: bf16[1,128,256], index: 5, kind: input, shape index: {}]
  %s6 = inlined_call_operand.vmem [shape: bf16[3,128,256], index: 6, kind: input, shape index: {}]
  %s7 = inlined_call_operand.vmem [shape: f32[1,256], index: 7, kind: input, shape index: {}]
  %s8 = inlined_call_operand.hbm [shape: bf16[3,256,256], index: 8, kind: input, shape index: {}]
  %s9 = inlined_call_operand.vmem [shape: f32[1,256], index: 9, kind: input, shape index: {}]
  %s10 = inlined_call_operand.vmem [shape: bf16[8,16], index: 10, kind: input, shape index: {}]
  %s11 = inlined_call_operand.hbm [shape: bf16[256,128], index: 11, kind: input, shape index: {}]
  %s12 = inlined_call_operand.vmem [shape: bf16[3,128,128], index: 12, kind: input, shape index: {}]
  %s13 = inlined_call_operand.vmem [shape: f32[1,128], index: 13, kind: input, shape index: {}]
  %s14 = inlined_call_operand.hbm [shape: bf16[3,128,128], index: 14, kind: input, shape index: {}]
  %s15 = inlined_call_operand.vmem [shape: f32[1,128], index: 15, kind: input, shape index: {}]
  %s16 = inlined_call_operand.vmem [shape: bf16[8,128,32], index: 16, kind: input, shape index: {}]
  %s17 = inlined_call_operand.vmem [shape: f32[1,32], index: 17, kind: input, shape index: {}]
  %s18 = inlined_call_operand.hbm [shape: f32[2,1,32], index: 18, kind: output, shape index: {}]
  %s19 = sld [smem:[#allocation0]]
  $region129: #{tpu_custom_call.1} parent=0
    _
  %s21 = ssub.s32 1, %s19
  %s22 = scalar_select 0, %s21, %s19
  $region1: #{tpu_custom_call.1} parent=0
    #allocation2 [shape = 'u8[81920]{0}', space=vmem, size = 0x14000, scoped, tag = 'input window, operand 1, single buffered']
    #allocation3 [shape = 's32[2]{0}', space=sflag, size = 0x8, scoped, tag = 'scoped memory for tpu_custom_call.1']
    #allocation4 [shape = 's32[2]{0}', space=sflag, size = 0x8, scoped, tag = 'scoped memory for tpu_custom_call.1']
    #allocation5 [shape = 'u8[65536]{0}', space=vmem, size = 0x10000, scoped, tag = 'input window, operand 4, single buffered']
    #allocation6 [shape = 's32[1]{0}', space=sflag, size = 0x4, scoped, tag = 'scoped memory for tpu_custom_call.1']
    #allocation7 [shape = 'u8[65536]{0}', space=vmem, size = 0x10000, scoped, tag = 'input window, operand 5, single buffered']
    #allocation8 [shape = 'u8[393216]{0}', space=vmem, size = 0x60000, scoped, tag = 'input window, operand 8, single buffered']
    #allocation9 [shape = 's32[1]{0}', space=sflag, size = 0x4, scoped, tag = 'scoped memory for tpu_custom_call.1']
    #allocation10 [shape = 'u8[65536]{0}', space=vmem, size = 0x10000, scoped, tag = 'input window, operand 11, single buffered']
    #allocation11 [shape = 'u8[98304]{0}', space=vmem, size = 0x18000, scoped, tag = 'input window, operand 14, single buffered']
    #allocation12 [shape = 's32[1]{0}', space=sflag, size = 0x4, scoped, tag = 'scoped memory for tpu_custom_call.1']
    #allocation13 [shape = 'u8[1024]{0}', space=vmem, size = 0x400, scoped, tag = 'output window, operand 0']
    %23 = vsyncpa [#allocation3], 0
    %24 = vsyncpa [#allocation6], 0
    %25 = vsyncpa [#allocation9], 0
    %26 = vsyncpa [#allocation12], 0
    %27 = vsyncpa [#allocation4], 0
    %s28 = scalar_lea.sflag [#allocation4], 1
    %29 = vsyncpa %s28, 0
    loop: start=0, step=1, limit=4
    $region2: #{tpu_custom_call.1} parent=1 // loop_pre_header
      _
    $region3: #{tpu_custom_call.1} parent=1 // loop_header
      %s31 = sphi 0, %s35
      %p32 = scmp.ge.s32.totalorder %s31, 4
      %s41 = sphi 0, %s43
      %s44 = sphi 0, %s41
      %s45 = sphi 0, %s44
      %s61 = sphi 0, %s45
      %s65 = sphi 0, %s65
      %s67 = sphi 0, %s65
      %s68 = sphi 0, %s67
      %s82 = sphi 0, %s68
      %s86 = sphi 0, %s86
      %s88 = sphi 0, %s86
      %s89 = sphi 0, %s88
      %s103 = sphi 0, %s89
      %s107 = sphi 0, %s107
      %s109 = sphi 0, %s107
      %s110 = sphi 0, %s109
      %s124 = sphi 0, %s110
      %s128 = sphi 0, %s128
      %s130 = sphi 0, %s128
      %s131 = sphi 0, %s130
      %s145 = sphi 0, %s131
      %s149 = sphi 0, %s149
      %s151 = sphi 0, %s149
      %s152 = sphi 0, %s151
      %s166 = sphi 0, %s152
      %s170 = sphi 0, %s170
      %s172 = sphi 0, %s170
      %s173 = sphi 0, %s172
      %s187 = sphi 0, %s173
      %s191 = sphi 0, %s191
      %s193 = sphi 0, %s191
      %s194 = sphi 0, %s193
      %s208 = sphi 0, %s194
      %s212 = sphi 0, %s212
      %s214 = sphi 0, %s212
      %s215 = sphi 0, %s214
      %s229 = sphi 0, %s215
      %s233 = sphi 0, %s233
      %s235 = sphi 0, %s233
      %s236 = sphi 0, %s235
      %s250 = sphi 0, %s236
      %s254 = sphi 0, %s254
      %s256 = sphi 0, %s254
      %s257 = sphi 0, %s256
      %s271 = sphi 0, %s257
      %s275 = sphi 0, %s275
      %s277 = sphi 0, %s275
      %s278 = sphi 0, %s277
      %s292 = sphi 0, %s278
      %s296 = sphi 0, %s296
      %s298 = sphi 0, %s296
      %s299 = sphi 0, %s298
      %s313 = sphi 0, %s299
      %s317 = sphi 0, %s317
      %s319 = sphi 0, %s317
      %s320 = sphi 0, %s319
      %s334 = sphi 0, %s320
      %s338 = sphi 0, %s338
      %s340 = sphi 0, %s338
      %s341 = sphi 0, %s340
      %s355 = sphi 0, %s341
      %s359 = sphi 0, %s359
      %s361 = sphi 0, %s359
      %s362 = sphi 0, %s361
      %s376 = sphi 0, %s362
      %s380 = sphi 0, %s380
      %s382 = sphi 0, %s380
      %s383 = sphi 0, %s382
      %s397 = sphi 0, %s383
      %s401 = sphi 0, %s401
      %s403 = sphi 0, %s401
      %s404 = sphi 0, %s403
      %s418 = sphi 0, %s404
      %s424 = sphi 0, %s426
      %s427 = sphi 0, %s424
      %s428 = sphi 0, %s427
      %s444 = sphi 0, %s428
    $region4: #{tpu_custom_call.1} parent=1 // loop_header_branch
      %34 = sbr.rel (%p32) target = $region8
    $region5: #{tpu_custom_call.1} parent=1 // loop_body
      %s36 = ssub.s32 %s31, 1
      %s37 = ssub.s32 %s31, 2
      %s38 = sadd.s32 %s31, 1
      %s39 = ssub.s32 %s31, %s38
      %p40 = scmp.eq.s32.totalorder %s39, 0
      %s42 = sadd.s32 %s41, 1
      %s43 = scalar_select %p40, %s41, %s42
      %p46 = pneg %p40
      %p47 = scmp.eq.s32.totalorder %s31, 1
      %p48 = por %p46, %p47
      %p49 = scmp.ne.s32.totalorder %s41, %s44
      %p50 = scmp.eq.s32.totalorder %s31, 0
      %p51 = por %p49, %p50
      %p52 = scmp.ne.s32.totalorder %s41, %s44
      %p53 = scmp.eq.s32.totalorder %s36, 1
      %p54 = por %p52, %p53
      %p55 = scmp.ne.s32.totalorder %s44, %s45
      %p56 = scmp.eq.s32.totalorder %s36, 0
      %p57 = por %p55, %p56
      %p58 = scmp.ne.s32.totalorder %s44, %s45
      %p59 = scmp.eq.s32.totalorder %s37, 1
      %p60 = por %p58, %p59
      %p62 = scmp.ne.s32.totalorder %s45, %s61
      %p63 = scmp.eq.s32.totalorder %s37, 0
      %p64 = por %p62, %p63
      %s66 = sadd.s32 %s65, 1
      %p69 = scmp.eq.s32.totalorder %s31, 1
      %p70 = scmp.ne.s32.totalorder %s65, %s67
      %p71 = scmp.eq.s32.totalorder %s31, 0
      %p72 = por %p70, %p71
      %p73 = scmp.ne.s32.totalorder %s65, %s67
      %p74 = scmp.eq.s32.totalorder %s36, 1
      %p75 = por %p73, %p74
      %p76 = scmp.ne.s32.totalorder %s67, %s68
      %p77 = scmp.eq.s32.totalorder %s36, 0
      %p78 = por %p76, %p77
      %p79 = scmp.ne.s32.totalorder %s67, %s68
      %p80 = scmp.eq.s32.totalorder %s37, 1
      %p81 = por %p79, %p80
      %p83 = scmp.ne.s32.totalorder %s68, %s82
      %p84 = scmp.eq.s32.totalorder %s37, 0
      %p85 = por %p83, %p84
      %s87 = sadd.s32 %s86, 1
      %p90 = scmp.eq.s32.totalorder %s31, 1
      %p91 = scmp.ne.s32.totalorder %s86, %s88
      %p92 = scmp.eq.s32.totalorder %s31, 0
      %p93 = por %p91, %p92
      %p94 = scmp.ne.s32.totalorder %s86, %s88
      %p95 = scmp.eq.s32.totalorder %s36, 1
      %p96 = por %p94, %p95
      %p97 = scmp.ne.s32.totalorder %s88, %s89
      %p98 = scmp.eq.s32.totalorder %s36, 0
      %p99 = por %p97, %p98
      %p100 = scmp.ne.s32.totalorder %s88, %s89
      %p101 = scmp.eq.s32.totalorder %s37, 1
      %p102 = por %p100, %p101
      %p104 = scmp.ne.s32.totalorder %s89, %s103
      %p105 = scmp.eq.s32.totalorder %s37, 0
      %p106 = por %p104, %p105
      %s108 = sadd.s32 %s107, 1
      %p111 = scmp.eq.s32.totalorder %s31, 1
      %p112 = scmp.ne.s32.totalorder %s107, %s109
      %p113 = scmp.eq.s32.totalorder %s31, 0
      %p114 = por %p112, %p113
      %p115 = scmp.ne.s32.totalorder %s107, %s109
      %p116 = scmp.eq.s32.totalorder %s36, 1
      %p117 = por %p115, %p116
      %p118 = scmp.ne.s32.totalorder %s109, %s110
      %p119 = scmp.eq.s32.totalorder %s36, 0
      %p120 = por %p118, %p119
      %p121 = scmp.ne.s32.totalorder %s109, %s110
      %p122 = scmp.eq.s32.totalorder %s37, 1
      %p123 = por %p121, %p122
      %p125 = scmp.ne.s32.totalorder %s110, %s124
      %p126 = scmp.eq.s32.totalorder %s37, 0
      %p127 = por %p125, %p126
      %s129 = sadd.s32 %s128, 1
      %p132 = scmp.eq.s32.totalorder %s31, 1
      %p133 = scmp.ne.s32.totalorder %s128, %s130
      %p134 = scmp.eq.s32.totalorder %s31, 0
      %p135 = por %p133, %p134
      %p136 = scmp.ne.s32.totalorder %s128, %s130
      %p137 = scmp.eq.s32.totalorder %s36, 1
      %p138 = por %p136, %p137
      %p139 = scmp.ne.s32.totalorder %s130, %s131
      %p140 = scmp.eq.s32.totalorder %s36, 0
      %p141 = por %p139, %p140
      %p142 = scmp.ne.s32.totalorder %s130, %s131
      %p143 = scmp.eq.s32.totalorder %s37, 1
      %p144 = por %p142, %p143
      %p146 = scmp.ne.s32.totalorder %s131, %s145
      %p147 = scmp.eq.s32.totalorder %s37, 0
      %p148 = por %p146, %p147
      %s150 = sadd.s32 %s149, 1
      %p153 = scmp.eq.s32.totalorder %s31, 1
      %p154 = scmp.ne.s32.totalorder %s149, %s151
      %p155 = scmp.eq.s32.totalorder %s31, 0
      %p156 = por %p154, %p155
      %p157 = scmp.ne.s32.totalorder %s149, %s151
      %p158 = scmp.eq.s32.totalorder %s36, 1
      %p159 = por %p157, %p158
      %p160 = scmp.ne.s32.totalorder %s151, %s152
      %p161 = scmp.eq.s32.totalorder %s36, 0
      %p162 = por %p160, %p161
      %p163 = scmp.ne.s32.totalorder %s151, %s152
      %p164 = scmp.eq.s32.totalorder %s37, 1
      %p165 = por %p163, %p164
      %p167 = scmp.ne.s32.totalorder %s152, %s166
      %p168 = scmp.eq.s32.totalorder %s37, 0
      %p169 = por %p167, %p168
      %s171 = sadd.s32 %s170, 1
      %p174 = scmp.eq.s32.totalorder %s31, 1
      %p175 = scmp.ne.s32.totalorder %s170, %s172
      %p176 = scmp.eq.s32.totalorder %s31, 0
      %p177 = por %p175, %p176
      %p178 = scmp.ne.s32.totalorder %s170, %s172
      %p179 = scmp.eq.s32.totalorder %s36, 1
      %p180 = por %p178, %p179
      %p181 = scmp.ne.s32.totalorder %s172, %s173
      %p182 = scmp.eq.s32.totalorder %s36, 0
      %p183 = por %p181, %p182
      %p184 = scmp.ne.s32.totalorder %s172, %s173
      %p185 = scmp.eq.s32.totalorder %s37, 1
      %p186 = por %p184, %p185
      %p188 = scmp.ne.s32.totalorder %s173, %s187
      %p189 = scmp.eq.s32.totalorder %s37, 0
      %p190 = por %p188, %p189
      %s192 = sadd.s32 %s191, 1
      %p195 = scmp.eq.s32.totalorder %s31, 1
      %p196 = scmp.ne.s32.totalorder %s191, %s193
      %p197 = scmp.eq.s32.totalorder %s31, 0
      %p198 = por %p196, %p197
      %p199 = scmp.ne.s32.totalorder %s191, %s193
      %p200 = scmp.eq.s32.totalorder %s36, 1
      %p201 = por %p199, %p200
      %p202 = scmp.ne.s32.totalorder %s193, %s194
      %p203 = scmp.eq.s32.totalorder %s36, 0
      %p204 = por %p202, %p203
      %p205 = scmp.ne.s32.totalorder %s193, %s194
      %p206 = scmp.eq.s32.totalorder %s37, 1
      %p207 = por %p205, %p206
      %p209 = scmp.ne.s32.totalorder %s194, %s208
      %p210 = scmp.eq.s32.totalorder %s37, 0
      %p211 = por %p209, %p210
      %s213 = sadd.s32 %s212, 1
      %p216 = scmp.eq.s32.totalorder %s31, 1
      %p217 = scmp.ne.s32.totalorder %s212, %s214
      %p218 = scmp.eq.s32.totalorder %s31, 0
      %p219 = por %p217, %p218
      %p220 = scmp.ne.s32.totalorder %s212, %s214
      %p221 = scmp.eq.s32.totalorder %s36, 1
      %p222 = por %p220, %p221
      %p223 = scmp.ne.s32.totalorder %s214, %s215
      %p224 = scmp.eq.s32.totalorder %s36, 0
      %p225 = por %p223, %p224
      %p226 = scmp.ne.s32.totalorder %s214, %s215
      %p227 = scmp.eq.s32.totalorder %s37, 1
      %p228 = por %p226, %p227
      %p230 = scmp.ne.s32.totalorder %s215, %s229
      %p231 = scmp.eq.s32.totalorder %s37, 0
      %p232 = por %p230, %p231
      %s234 = sadd.s32 %s233, 1
      %p237 = scmp.eq.s32.totalorder %s31, 1
      %p238 = scmp.ne.s32.totalorder %s233, %s235
      %p239 = scmp.eq.s32.totalorder %s31, 0
      %p240 = por %p238, %p239
      %p241 = scmp.ne.s32.totalorder %s233, %s235
      %p242 = scmp.eq.s32.totalorder %s36, 1
      %p243 = por %p241, %p242
      %p244 = scmp.ne.s32.totalorder %s235, %s236
      %p245 = scmp.eq.s32.totalorder %s36, 0
      %p246 = por %p244, %p245
      %p247 = scmp.ne.s32.totalorder %s235, %s236
      %p248 = scmp.eq.s32.totalorder %s37, 1
      %p249 = por %p247, %p248
      %p251 = scmp.ne.s32.totalorder %s236, %s250
      %p252 = scmp.eq.s32.totalorder %s37, 0
      %p253 = por %p251, %p252
      %s255 = sadd.s32 %s254, 1
      %p258 = scmp.eq.s32.totalorder %s31, 1
      %p259 = scmp.ne.s32.totalorder %s254, %s256
      %p260 = scmp.eq.s32.totalorder %s31, 0
      %p261 = por %p259, %p260
      %p262 = scmp.ne.s32.totalorder %s254, %s256
      %p263 = scmp.eq.s32.totalorder %s36, 1
      %p264 = por %p262, %p263
      %p265 = scmp.ne.s32.totalorder %s256, %s257
      %p266 = scmp.eq.s32.totalorder %s36, 0
      %p267 = por %p265, %p266
      %p268 = scmp.ne.s32.totalorder %s256, %s257
      %p269 = scmp.eq.s32.totalorder %s37, 1
      %p270 = por %p268, %p269
      %p272 = scmp.ne.s32.totalorder %s257, %s271
      %p273 = scmp.eq.s32.totalorder %s37, 0
      %p274 = por %p272, %p273
      %s276 = sadd.s32 %s275, 1
      %p279 = scmp.eq.s32.totalorder %s31, 1
      %p280 = scmp.ne.s32.totalorder %s275, %s277
      %p281 = scmp.eq.s32.totalorder %s31, 0
      %p282 = por %p280, %p281
      %p283 = scmp.ne.s32.totalorder %s275, %s277
      %p284 = scmp.eq.s32.totalorder %s36, 1
      %p285 = por %p283, %p284
      %p286 = scmp.ne.s32.totalorder %s277, %s278
      %p287 = scmp.eq.s32.totalorder %s36, 0
      %p288 = por %p286, %p287
      %p289 = scmp.ne.s32.totalorder %s277, %s278
      %p290 = scmp.eq.s32.totalorder %s37, 1
      %p291 = por %p289, %p290
      %p293 = scmp.ne.s32.totalorder %s278, %s292
      %p294 = scmp.eq.s32.totalorder %s37, 0
      %p295 = por %p293, %p294
      %s297 = sadd.s32 %s296, 1
      %p300 = scmp.eq.s32.totalorder %s31, 1
      %p301 = scmp.ne.s32.totalorder %s296, %s298
      %p302 = scmp.eq.s32.totalorder %s31, 0
      %p303 = por %p301, %p302
      %p304 = scmp.ne.s32.totalorder %s296, %s298
      %p305 = scmp.eq.s32.totalorder %s36, 1
      %p306 = por %p304, %p305
      %p307 = scmp.ne.s32.totalorder %s298, %s299
      %p308 = scmp.eq.s32.totalorder %s36, 0
      %p309 = por %p307, %p308
      %p310 = scmp.ne.s32.totalorder %s298, %s299
      %p311 = scmp.eq.s32.totalorder %s37, 1
      %p312 = por %p310, %p311
      %p314 = scmp.ne.s32.totalorder %s299, %s313
      %p315 = scmp.eq.s32.totalorder %s37, 0
      %p316 = por %p314, %p315
      %s318 = sadd.s32 %s317, 1
      %p321 = scmp.eq.s32.totalorder %s31, 1
      %p322 = scmp.ne.s32.totalorder %s317, %s319
      %p323 = scmp.eq.s32.totalorder %s31, 0
      %p324 = por %p322, %p323
      %p325 = scmp.ne.s32.totalorder %s317, %s319
      %p326 = scmp.eq.s32.totalorder %s36, 1
      %p327 = por %p325, %p326
      %p328 = scmp.ne.s32.totalorder %s319, %s320
      %p329 = scmp.eq.s32.totalorder %s36, 0
      %p330 = por %p328, %p329
      %p331 = scmp.ne.s32.totalorder %s319, %s320
      %p332 = scmp.eq.s32.totalorder %s37, 1
      %p333 = por %p331, %p332
      %p335 = scmp.ne.s32.totalorder %s320, %s334
      %p336 = scmp.eq.s32.totalorder %s37, 0
      %p337 = por %p335, %p336
      %s339 = sadd.s32 %s338, 1
      %p342 = scmp.eq.s32.totalorder %s31, 1
      %p343 = scmp.ne.s32.totalorder %s338, %s340
      %p344 = scmp.eq.s32.totalorder %s31, 0
      %p345 = por %p343, %p344
      %p346 = scmp.ne.s32.totalorder %s338, %s340
      %p347 = scmp.eq.s32.totalorder %s36, 1
      %p348 = por %p346, %p347
      %p349 = scmp.ne.s32.totalorder %s340, %s341
      %p350 = scmp.eq.s32.totalorder %s36, 0
      %p351 = por %p349, %p350
      %p352 = scmp.ne.s32.totalorder %s340, %s341
      %p353 = scmp.eq.s32.totalorder %s37, 1
      %p354 = por %p352, %p353
      %p356 = scmp.ne.s32.totalorder %s341, %s355
      %p357 = scmp.eq.s32.totalorder %s37, 0
      %p358 = por %p356, %p357
      %s360 = sadd.s32 %s359, 1
      %p363 = scmp.eq.s32.totalorder %s31, 1
      %p364 = scmp.ne.s32.totalorder %s359, %s361
      %p365 = scmp.eq.s32.totalorder %s31, 0
      %p366 = por %p364, %p365
      %p367 = scmp.ne.s32.totalorder %s359, %s361
      %p368 = scmp.eq.s32.totalorder %s36, 1
      %p369 = por %p367, %p368
      %p370 = scmp.ne.s32.totalorder %s361, %s362
      %p371 = scmp.eq.s32.totalorder %s36, 0
      %p372 = por %p370, %p371
      %p373 = scmp.ne.s32.totalorder %s361, %s362
      %p374 = scmp.eq.s32.totalorder %s37, 1
      %p375 = por %p373, %p374
      %p377 = scmp.ne.s32.totalorder %s362, %s376
      %p378 = scmp.eq.s32.totalorder %s37, 0
      %p379 = por %p377, %p378
      %s381 = sadd.s32 %s380, 1
      %p384 = scmp.eq.s32.totalorder %s31, 1
      %p385 = scmp.ne.s32.totalorder %s380, %s382
      %p386 = scmp.eq.s32.totalorder %s31, 0
      %p387 = por %p385, %p386
      %p388 = scmp.ne.s32.totalorder %s380, %s382
      %p389 = scmp.eq.s32.totalorder %s36, 1
      %p390 = por %p388, %p389
      %p391 = scmp.ne.s32.totalorder %s382, %s383
      %p392 = scmp.eq.s32.totalorder %s36, 0
      %p393 = por %p391, %p392
      %p394 = scmp.ne.s32.totalorder %s382, %s383
      %p395 = scmp.eq.s32.totalorder %s37, 1
      %p396 = por %p394, %p395
      %p398 = scmp.ne.s32.totalorder %s383, %s397
      %p399 = scmp.eq.s32.totalorder %s37, 0
      %p400 = por %p398, %p399
      %s402 = sadd.s32 %s401, 1
      %p405 = scmp.eq.s32.totalorder %s31, 1
      %p406 = scmp.ne.s32.totalorder %s401, %s403
      %p407 = scmp.eq.s32.totalorder %s31, 0
      %p408 = por %p406, %p407
      %p409 = scmp.ne.s32.totalorder %s401, %s403
      %p410 = scmp.eq.s32.totalorder %s36, 1
      %p411 = por %p409, %p410
      %p412 = scmp.ne.s32.totalorder %s403, %s404
      %p413 = scmp.eq.s32.totalorder %s36, 0
      %p414 = por %p412, %p413
      %p415 = scmp.ne.s32.totalorder %s403, %s404
      %p416 = scmp.eq.s32.totalorder %s37, 1
      %p417 = por %p415, %p416
      %p419 = scmp.ne.s32.totalorder %s404, %s418
      %p420 = scmp.eq.s32.totalorder %s37, 0
      %p421 = por %p419, %p420
      %s422 = ssub.s32 %s31, %s38
      %p423 = scmp.eq.s32.totalorder %s422, 0
      %s425 = sadd.s32 %s424, 1
      %s426 = scalar_select %p423, %s424, %s425
      %p429 = pneg %p423
      %p430 = scmp.eq.s32.totalorder %s31, 1
      %p431 = por %p429, %p430
      %p432 = scmp.ne.s32.totalorder %s424, %s427
      %p433 = scmp.eq.s32.totalorder %s31, 0
      %p434 = por %p432, %p433
      %p435 = scmp.ne.s32.totalorder %s424, %s427
      %p436 = scmp.eq.s32.totalorder %s36, 1
      %p437 = por %p435, %p436
      %p438 = scmp.ne.s32.totalorder %s427, %s428
      %p439 = scmp.eq.s32.totalorder %s36, 0
      %p440 = por %p438, %p439
      %p441 = scmp.ne.s32.totalorder %s427, %s428
      %p442 = scmp.eq.s32.totalorder %s37, 1
      %p443 = por %p441, %p442
      %p445 = scmp.ne.s32.totalorder %s428, %s444
      %p446 = scmp.eq.s32.totalorder %s37, 0
      %p447 = por %p445, %p446
      %p448 = scmp.le.s32.totalorder 1, %s31
      %p449 = scmp.lt.s32.totalorder %s31, 3
      %p450 = pnand %p448, %p449
      %p451 = pneg %p450
      // Predicated region
      $region9: #{tpu_custom_call.1} parent=5 // pred_check
        _
      $region10: #{tpu_custom_call.1} parent=5 // pred_check_branch
        %453 = sbr.rel (%p450) target = $region12
      $region11: #{tpu_custom_call.1} parent=5 // pred_region
        %s454 = ssub.s32 %s31, 1
        // Predicated region
        $region13: #{tpu_custom_call.1} parent=11 // pred_check
          %p455 = pneg %p78
        $region14: #{tpu_custom_call.1} parent=11 // pred_check_branch
          %457 = sbr.rel (%p455) target = $region16
        $region15: #{tpu_custom_call.1} parent=11 // pred_region
          %s459 = ssub.s32 2560, 2560
          %460 = vsyncadd [#allocation3], %s459
          %s461 = sshll.u32 [#allocation2], 4
          %s462 = int_to_ptr.vmem [resolvable:$true] %s461
          %467 = dma.hbm_to_vmem [thread:$0]  %s1, 2560, %s462, [#allocation3], 128, 128, 8
        $region16: #{tpu_custom_call.1} parent=11 // pred_fallthru
          _
        // Predicated region
        $region17: #{tpu_custom_call.1} parent=11 // pred_check
          %p468 = pneg %p99
        $region18: #{tpu_custom_call.1} parent=11 // pred_check_branch
          %470 = sbr.rel (%p468) target = $region20
        $region19: #{tpu_custom_call.1} parent=11 // pred_region
          _
        $region20: #{tpu_custom_call.1} parent=11 // pred_fallthru
          _
        // Predicated region
        $region21: #{tpu_custom_call.1} parent=11 // pred_check
          %p471 = pneg %p120
        $region22: #{tpu_custom_call.1} parent=11 // pred_check_branch
          %473 = sbr.rel (%p471) target = $region24
        $region23: #{tpu_custom_call.1} parent=11 // pred_region
          _
        $region24: #{tpu_custom_call.1} parent=11 // pred_fallthru
          _
        // Predicated region
        $region25: #{tpu_custom_call.1} parent=11 // pred_check
          %p474 = pneg %p141
        $region26: #{tpu_custom_call.1} parent=11 // pred_check_branch
          %476 = sbr.rel (%p474) target = $region28
        $region27: #{tpu_custom_call.1} parent=11 // pred_region
          %s478 = ssub.s32 2048, 2048
          %479 = vsyncadd [#allocation6], %s478
          %s480 = sshll.u32 [#allocation5], 4
          %s481 = int_to_ptr.vmem [resolvable:$true] %s480
          %486 = dma.hbm_to_vmem [thread:$0]  %s4, 2048, %s481, [#allocation6], 64, 64, 4
        $region28: #{tpu_custom_call.1} parent=11 // pred_fallthru
          _
        // Predicated region
        $region29: #{tpu_custom_call.1} parent=11 // pred_check
          %p487 = pneg %p162
        $region30: #{tpu_custom_call.1} parent=11 // pred_check_branch
          %489 = sbr.rel (%p487) target = $region32
        $region31: #{tpu_custom_call.1} parent=11 // pred_region
          %s491 = ssub.s32 2048, 2048
          %492 = vsyncadd [#allocation6], %s491
          %s493 = sshll.u32 [#allocation7], 4
          %s494 = int_to_ptr.vmem [resolvable:$true] %s493
          %499 = dma.hbm_to_vmem [thread:$0]  %s5, 2048, %s494, [#allocation6], 128, 128, 8
        $region32: #{tpu_custom_call.1} parent=11 // pred_fallthru
          _
        // Predicated region
        $region33: #{tpu_custom_call.1} parent=11 // pred_check
          %p500 = pneg %p183
        $region34: #{tpu_custom_call.1} parent=11 // pred_check_branch
          %502 = sbr.rel (%p500) target = $region36
        $region35: #{tpu_custom_call.1} parent=11 // pred_region
          _
        $region36: #{tpu_custom_call.1} parent=11 // pred_fallthru
          _
        // Predicated region
        $region37: #{tpu_custom_call.1} parent=11 // pred_check
          %p503 = pneg %p204
        $region38: #{tpu_custom_call.1} parent=11 // pred_check_branch
          %505 = sbr.rel (%p503) target = $region40
        $region39: #{tpu_custom_call.1} parent=11 // pred_region
          _
        $region40: #{tpu_custom_call.1} parent=11 // pred_fallthru
          _
        // Predicated region
        $region41: #{tpu_custom_call.1} parent=11 // pred_check
          %p506 = pneg %p225
        $region42: #{tpu_custom_call.1} parent=11 // pred_check_branch
          %508 = sbr.rel (%p506) target = $region44
        $region43: #{tpu_custom_call.1} parent=11 // pred_region
          %s510 = ssub.s32 12288, 12288
          %511 = vsyncadd [#allocation9], %s510
          %s512 = sshll.u32 [#allocation8], 4
          %s513 = int_to_ptr.vmem [resolvable:$true] %s512
          %518 = dma.hbm_to_vmem [thread:$0]  %s8, 12288, %s513, [#allocation9], 128, 128, 8
        $region44: #{tpu_custom_call.1} parent=11 // pred_fallthru
          _
        // Predicated region
        $region45: #{tpu_custom_call.1} parent=11 // pred_check
          %p519 = pneg %p246
        $region46: #{tpu_custom_call.1} parent=11 // pred_check_branch
          %521 = sbr.rel (%p519) target = $region48
        $region47: #{tpu_custom_call.1} parent=11 // pred_region
          _
        $region48: #{tpu_custom_call.1} parent=11 // pred_fallthru
          _
        // Predicated region
        $region49: #{tpu_custom_call.1} parent=11 // pred_check
          %p522 = pneg %p267
        $region50: #{tpu_custom_call.1} parent=11 // pred_check_branch
          %524 = sbr.rel (%p522) target = $region52
        $region51: #{tpu_custom_call.1} parent=11 // pred_region
          _
        $region52: #{tpu_custom_call.1} parent=11 // pred_fallthru
          _
        // Predicated region
        $region53: #{tpu_custom_call.1} parent=11 // pred_check
          %p525 = pneg %p288
        $region54: #{tpu_custom_call.1} parent=11 // pred_check_branch
          %527 = sbr.rel (%p525) target = $region56
        $region55: #{tpu_custom_call.1} parent=11 // pred_region
          %s529 = ssub.s32 2048, 2048
          %530 = vsyncadd [#allocation9], %s529
          %s531 = sshll.u32 [#allocation10], 4
          %s532 = int_to_ptr.vmem [resolvable:$true] %s531
          %537 = dma.hbm_to_vmem [thread:$0]  %s11, 2048, %s532, [#allocation9], 64, 64, 4
        $region56: #{tpu_custom_call.1} parent=11 // pred_fallthru
          _
        // Predicated region
        $region57: #{tpu_custom_call.1} parent=11 // pred_check
          %p538 = pneg %p309
        $region58: #{tpu_custom_call.1} parent=11 // pred_check_branch
          %540 = sbr.rel (%p538) target = $region60
        $region59: #{tpu_custom_call.1} parent=11 // pred_region
          _
        $region60: #{tpu_custom_call.1} parent=11 // pred_fallthru
          _
        // Predicated region
        $region61: #{tpu_custom_call.1} parent=11 // pred_check
          %p541 = pneg %p330
        $region62: #{tpu_custom_call.1} parent=11 // pred_check_branch
          %543 = sbr.rel (%p541) target = $region64
        $region63: #{tpu_custom_call.1} parent=11 // pred_region
          _
        $region64: #{tpu_custom_call.1} parent=11 // pred_fallthru
          _
        // Predicated region
        $region65: #{tpu_custom_call.1} parent=11 // pred_check
          %p544 = pneg %p351
        $region66: #{tpu_custom_call.1} parent=11 // pred_check_branch
          %546 = sbr.rel (%p544) target = $region68
        $region67: #{tpu_custom_call.1} parent=11 // pred_region
          %s548 = ssub.s32 3072, 3072
          %549 = vsyncadd [#allocation12], %s548
          %s550 = sshll.u32 [#allocation11], 4
          %s551 = int_to_ptr.vmem [resolvable:$true] %s550
          %556 = dma.hbm_to_vmem [thread:$0]  %s14, 3072, %s551, [#allocation12], 64, 64, 4
        $region68: #{tpu_custom_call.1} parent=11 // pred_fallthru
          _
        // Predicated region
        $region69: #{tpu_custom_call.1} parent=11 // pred_check
          %p557 = pneg %p372
        $region70: #{tpu_custom_call.1} parent=11 // pred_check_branch
          %559 = sbr.rel (%p557) target = $region72
        $region71: #{tpu_custom_call.1} parent=11 // pred_region
          _
        $region72: #{tpu_custom_call.1} parent=11 // pred_fallthru
          _
        // Predicated region
        $region73: #{tpu_custom_call.1} parent=11 // pred_check
          %p560 = pneg %p393
        $region74: #{tpu_custom_call.1} parent=11 // pred_check_branch
          %562 = sbr.rel (%p560) target = $region76
        $region75: #{tpu_custom_call.1} parent=11 // pred_region
          _
        $region76: #{tpu_custom_call.1} parent=11 // pred_fallthru
          _
        // Predicated region
        $region77: #{tpu_custom_call.1} parent=11 // pred_check
          %p563 = pneg %p414
        $region78: #{tpu_custom_call.1} parent=11 // pred_check_branch
          %565 = sbr.rel (%p563) target = $region80
        $region79: #{tpu_custom_call.1} parent=11 // pred_region
          _
        $region80: #{tpu_custom_call.1} parent=11 // pred_fallthru
          _
      $region12: #{tpu_custom_call.1} parent=5 // pred_fallthru
        _
      %p566 = scmp.lt.s32.totalorder %s31, 2
      // Predicated region
      $region81: #{tpu_custom_call.1} parent=5 // pred_check
        %p567 = pneg %p566
      $region82: #{tpu_custom_call.1} parent=5 // pred_check_branch
        %569 = sbr.rel (%p567) target = $region84
      $region83: #{tpu_custom_call.1} parent=5 // pred_region
        // Predicated region
        $region85: #{tpu_custom_call.1} parent=83 // pred_check
          %p570 = pneg %p51
        $region86: #{tpu_custom_call.1} parent=83 // pred_check_branch
          %572 = sbr.rel (%p570) target = $region88
        $region87: #{tpu_custom_call.1} parent=83 // pred_region
          %p573 = scmp.lt.s32.totalorder %s31, 1
          %s574 = scalar_select %p573, %s31, 1
          %s575 = smul.addr %s574, 4
          %s576 = smul.addr %s575, 8
          %s577 = scalar_lea.vmem %s0, %s576
        $region88: #{tpu_custom_call.1} parent=83 // pred_fallthru
          _
      $region84: #{tpu_custom_call.1} parent=5 // pred_fallthru
        _
      %p578 = scmp.le.s32.totalorder 1, %s31
      %p579 = scmp.lt.s32.totalorder %s31, 3
      %p580 = pnand %p578, %p579
      %p581 = pneg %p580
      // Predicated region
      $region89: #{tpu_custom_call.1} parent=5 // pred_check
        _
      $region90: #{tpu_custom_call.1} parent=5 // pred_check_branch
        %583 = sbr.rel (%p580) target = $region92
      $region91: #{tpu_custom_call.1} parent=5 // pred_region
        %s584 = ssub.s32 %s31, 1
        // Predicated region
        $region93: #{tpu_custom_call.1} parent=91 // pred_check
          %p585 = pneg %p78
        $region94: #{tpu_custom_call.1} parent=91 // pred_check_branch
          %587 = sbr.rel (%p585) target = $region96
        $region95: #{tpu_custom_call.1} parent=91 // pred_region
          %588 = dma.done [#allocation3], 2560
        $region96: #{tpu_custom_call.1} parent=91 // pred_fallthru
          _
        // Predicated region
        $region97: #{tpu_custom_call.1} parent=91 // pred_check
          %p589 = pneg %p141
        $region98: #{tpu_custom_call.1} parent=91 // pred_check_branch
          %591 = sbr.rel (%p589) target = $region100
        $region99: #{tpu_custom_call.1} parent=91 // pred_region
          %592 = dma.done [#allocation6], 2048
        $region100: #{tpu_custom_call.1} parent=91 // pred_fallthru
          _
        // Predicated region
        $region101: #{tpu_custom_call.1} parent=91 // pred_check
          %p593 = pneg %p162
        $region102: #{tpu_custom_call.1} parent=91 // pred_check_branch
          %595 = sbr.rel (%p593) target = $region104
        $region103: #{tpu_custom_call.1} parent=91 // pred_region
          %596 = dma.done [#allocation6], 2048
        $region104: #{tpu_custom_call.1} parent=91 // pred_fallthru
          _
        // Predicated region
        $region105: #{tpu_custom_call.1} parent=91 // pred_check
          %p597 = pneg %p225
        $region106: #{tpu_custom_call.1} parent=91 // pred_check_branch
          %599 = sbr.rel (%p597) target = $region108
        $region107: #{tpu_custom_call.1} parent=91 // pred_region
          %600 = dma.done [#allocation9], 12288
        $region108: #{tpu_custom_call.1} parent=91 // pred_fallthru
          _
        // Predicated region
        $region109: #{tpu_custom_call.1} parent=91 // pred_check
          %p601 = pneg %p288
        $region110: #{tpu_custom_call.1} parent=91 // pred_check_branch
          %603 = sbr.rel (%p601) target = $region112
        $region111: #{tpu_custom_call.1} parent=91 // pred_region
          %604 = dma.done [#allocation9], 2048
        $region112: #{tpu_custom_call.1} parent=91 // pred_fallthru
          _
        // Predicated region
        $region113: #{tpu_custom_call.1} parent=91 // pred_check
          %p605 = pneg %p351
        $region114: #{tpu_custom_call.1} parent=91 // pred_check_branch
          %607 = sbr.rel (%p605) target = $region116
        $region115: #{tpu_custom_call.1} parent=91 // pred_region
          %608 = dma.done [#allocation12], 3072
        $region116: #{tpu_custom_call.1} parent=91 // pred_fallthru
          _
        %p609 = scmp.lt.s32.totalorder %s36, 1
        %s610 = scalar_select %p609, %s36, 1
        %s611 = smul.addr %s610, 4
        %s612 = smul.addr %s611, 8
        %s613 = scalar_lea.vmem %s0, %s612
        %p614 = pneg %p57
        %p615 = pneg %p54
        %p616 = pneg %p78
        %p617 = pneg %p75
        %p618 = pneg %p99
        %p619 = pneg %p96
        %p620 = pneg %p120
        %p621 = pneg %p117
        %p622 = pneg %p141
        %p623 = pneg %p138
        %p624 = pneg %p162
        %p625 = pneg %p159
        %p626 = pneg %p183
        %p627 = pneg %p180
        %p628 = pneg %p204
        %p629 = pneg %p201
        %p630 = pneg %p225
        %p631 = pneg %p222
        %p632 = pneg %p246
        %p633 = pneg %p243
        %p634 = pneg %p267
        %p635 = pneg %p264
        %p636 = pneg %p288
        %p637 = pneg %p285
        %p638 = pneg %p309
        %p639 = pneg %p306
        %p640 = pneg %p330
        %p641 = pneg %p327
        %p642 = pneg %p351
        %p643 = pneg %p348
        %p644 = pneg %p372
        %p645 = pneg %p369
        %p646 = pneg %p393
        %p647 = pneg %p390
        %p648 = pneg %p414
        %p649 = pneg %p411
        %p650 = pneg %p440
        %p651 = pneg %p437
        %s652 = sand.u32 %s427, 1
        %s653 = scalar_lea.sflag [#allocation4], %s652
        %s654 = sand.u32 %s427, 1
        %s655 = scalar_lea.vmem [#allocation13], %s654
        %p656 = scmp.lt.s32.totalorder %s36, 1
        %s657 = scalar_select %p656, %s36, 1
        %s658 = smul.addr %s657, 4
        %s659 = smul.addr %s658, 8
        %s660 = scalar_lea.vmem %s0, %s659
        %v662 = vld [vmem:[%s660] sm:$0xff]
        %v663 = vld [vmem:[%s660 + $0x8] sm:$0xff]
        %v664 = vld [vmem:[%s660 + $0x10] sm:$0xff]
        %v665 = vld [vmem:[%s660 + $0x18] sm:$0xff]
        %vm670 = vcmask 1041408
        %v671 = vrot.slane %v662, 6
        %v672 = vrot.slane %v663, 6
        %v673 = vsel %vm670, %v671, %v672
        %v674 = vrot.slane %v664, 6
        %v675 = vsel %vm670, %v672, %v674
        %v676 = vrot.slane %v665, 6
        %v677 = vsel %vm670, %v674, %v676
        %v683 = vsel %vm670, 0.0, %v671
        %v684 = vsel %vm670, %v676, 0.0
        %v685 = vpack.c.bf16 %v673, %v683
        %v686 = vpack.c.bf16 %v677, %v675
        %v687 = vld [vmem:[#allocation2] sm:$0xff]
        %v688 = vld [vmem:[#allocation2 + $0x8] sm:$0xff]
        %v689 = vld [vmem:[#allocation2 + $0x10] sm:$0xff]
        %v690 = vld [vmem:[#allocation2 + $0x18] sm:$0xff]
        %v691 = vpack.c.bf16 %v684, %v684
        %s692 = scalar_lea.vmem [#allocation2], 32
        %v693 = vld [vmem:[%s692] sm:$0xff]
        %v694 = vld [vmem:[%s692 + $0x8] sm:$0xff]
        %v695 = vld [vmem:[%s692 + $0x10] sm:$0xff]
        %v696 = vld [vmem:[%s692 + $0x18] sm:$0xff]
        %vm697 = vsmask.f32 7424
        %v699 = vshrl.u32 %v685, 16
        %v701 = vshll.u32 %v685, 16
        %v703 = vrot.slane %v701, 1
        %v704 = vor.u32 %v699, %v703
        %v706 = vshll.u32 %v686, 16
        %v708 = vrot.slane %v706, 1
        %v709 = vsel %vm697, %v704, %v708
        %v710 = vshrl.u32 %v686, 16
        %v712 = vor.u32 %v710, %v708
        %v714 = vshll.u32 %v691, 16
        %v716 = vrot.slane %v714, 1
        %v717 = vsel %vm697, %v712, %v716
        %v722 = vunpack.c.l.b16 %v693
        %v723 = vunpack.c.h.b16 %v693
        %v724 = vunpack.c.l.b16 %v694
        %v725 = vunpack.c.h.b16 %v694
        %v726 = vunpack.c.l.b16 %v695
        %v727 = vunpack.c.h.b16 %v695
        %v728 = vunpack.c.l.b16 %v696
        %v729 = vunpack.c.h.b16 %v696
        %v730 = vpack.c.b16 %v724, %v722
        %v731 = vpack.c.b16 %v725, %v723
        %v732 = vpack.c.b16 %v728, %v726
        %v733 = vpack.c.b16 %v729, %v727
        %vm738 = vcmask 261120
        %v740 = vsel %vm738, %v709, 0
        %v743 = vsel %vm738, %v717, 0
        %745 = vmatprep.subr.bf16.mxu0 %v731
        %746 = vmatpush1.bf16.msra.mxu0 %v730
        %747 = vmatprep.subr.bf16.mxu0 %v733
        %748 = vmatpush1.bf16.msra.mxu0 %v732
        %749 = vmatprep.subr.bf16.mxu0 0
        %750 = vmatpush1.bf16.msra.mxu0 0
        %751 = vmatprep.subr.bf16.mxu0 0
        %752 = vmatpush1.bf16.msra.mxu0 0
        %753 = vmatprep.subr.bf16.mxu0 0
        %754 = vmatpush1.bf16.msra.mxu0 0
        %755 = vmatprep.subr.bf16.mxu0 0
        %756 = vmatpush1.bf16.msra.mxu0 0
        %757 = vmatprep.subr.bf16.mxu0 0
        %758 = vmatpush1.bf16.msra.mxu0 0
        %759 = vmatprep.subr.bf16.mxu0 0
        %760 = vmatpush1.bf16.msra.mxu0 0
        %761 = vmatprep.subr.bf16.mxu0 0
        %762 = vmatpush1.bf16.msra.mxu0 0
        %763 = vmatprep.subr.bf16.mxu0 0
        %764 = vmatpush1.bf16.msra.mxu0 0
        %765 = vmatprep.subr.bf16.mxu0 0
        %766 = vmatpush1.bf16.msra.mxu0 0
        %767 = vmatprep.subr.bf16.mxu0 0
        %768 = vmatpush1.bf16.msra.mxu0 0
        %769 = vmatprep.subr.bf16.mxu0 0
        %770 = vmatpush1.bf16.msra.mxu0 0
        %771 = vmatprep.subr.bf16.mxu0 0
        %772 = vmatpush1.bf16.msra.mxu0 0
        %773 = vmatprep.subr.bf16.mxu0 0
        %774 = vmatpush1.bf16.msra.mxu0 0
        %775 = vmatprep.subr.bf16.mxu0 0
        %776 = vmatpush1.bf16.msra.mxu0 0
        %777 = vmatprep.mubr.bf16.mxu0 0
        %778 = vmatmul.mubr.bf16.gmra.mrb[0].mxu0 %v740
        %v779 = vpop.f32.mrb[0].mxu0
        %v780 = vadd.f32 0.0, %v779
        %v781 = vpop.f32.mrb[0].mxu0
        %v782 = vadd.f32 0.0, %v781
        %v783 = vpop.f32.mrb[0].mxu0
        %v784 = vadd.f32 0.0, %v783
        %v785 = vpop.f32.mrb[0].mxu0
        %v786 = vadd.f32 0.0, %v785
        %787 = vmatprep.mubr.bf16.mxu0 0
        %788 = vmatmul.mubr.bf16.gmra.mrb[0].mxu0 %v743
        %v789 = vpop.f32.mrb[0].mxu0
        %v790 = vadd.f32 0.0, %v789
        %v791 = vpop.f32.mrb[0].mxu0
        %v792 = vadd.f32 0.0, %v791
        %v793 = vpop.f32.mrb[0].mxu0
        %v794 = vadd.f32 0.0, %v793
        %v795 = vpop.f32.mrb[0].mxu0
        %v796 = vadd.f32 0.0, %v795
        %797 = vdwg.mxu0
        %v802 = vunpack.c.l.b16 %v687
        %v803 = vunpack.c.h.b16 %v687
        %v804 = vunpack.c.l.b16 %v688
        %v805 = vunpack.c.h.b16 %v688
        %v806 = vunpack.c.l.b16 %v689
        %v807 = vunpack.c.h.b16 %v689
        %v808 = vunpack.c.l.b16 %v690
        %v809 = vunpack.c.h.b16 %v690
        %v810 = vpack.c.b16 %v804, %v802
        %v811 = vpack.c.b16 %v805, %v803
        %v812 = vpack.c.b16 %v808, %v806
        %v813 = vpack.c.b16 %v809, %v807
        %v818 = vsel %vm738, %v685, 0
        %v820 = vsel %vm738, %v686, 0
        %822 = vmatprep.subr.bf16.mxu0 %v811
        %823 = vmatpush1.bf16.msra.mxu0 %v810
        %824 = vmatprep.subr.bf16.mxu0 %v813
        %825 = vmatpush1.bf16.msra.mxu0 %v812
        %826 = vmatprep.subr.bf16.mxu0 0
        %827 = vmatpush1.bf16.msra.mxu0 0
        %828 = vmatprep.subr.bf16.mxu0 0
        %829 = vmatpush1.bf16.msra.mxu0 0
        %830 = vmatprep.subr.bf16.mxu0 0
        %831 = vmatpush1.bf16.msra.mxu0 0
        %832 = vmatprep.subr.bf16.mxu0 0
        %833 = vmatpush1.bf16.msra.mxu0 0
        %834 = vmatprep.subr.bf16.mxu0 0
        %835 = vmatpush1.bf16.msra.mxu0 0
        %836 = vmatprep.subr.bf16.mxu0 0
        %837 = vmatpush1.bf16.msra.mxu0 0
        %838 = vmatprep.subr.bf16.mxu0 0
        %839 = vmatpush1.bf16.msra.mxu0 0
        %840 = vmatprep.subr.bf16.mxu0 0
        %841 = vmatpush1.bf16.msra.mxu0 0
        %842 = vmatprep.subr.bf16.mxu0 0
        %843 = vmatpush1.bf16.msra.mxu0 0
        %844 = vmatprep.subr.bf16.mxu0 0
        %845 = vmatpush1.bf16.msra.mxu0 0
        %846 = vmatprep.subr.bf16.mxu0 0
        %847 = vmatpush1.bf16.msra.mxu0 0
        %848 = vmatprep.subr.bf16.mxu0 0
        %849 = vmatpush1.bf16.msra.mxu0 0
        %850 = vmatprep.subr.bf16.mxu0 0
        %851 = vmatpush1.bf16.msra.mxu0 0
        %852 = vmatprep.subr.bf16.mxu0 0
        %853 = vmatpush1.bf16.msra.mxu0 0
        %854 = vmatprep.mubr.bf16.mxu0 0
        %855 = vmatmul.mubr.bf16.gmra.mrb[0].mxu0 %v818
        %v856 = vpop.f32.mrb[0].mxu0
        %v857 = vadd.f32 %v780, %v856
        %v858 = vpop.f32.mrb[0].mxu0
        %v859 = vadd.f32 %v782, %v858
        %v860 = vpop.f32.mrb[0].mxu0
        %v861 = vadd.f32 %v784, %v860
        %v862 = vpop.f32.mrb[0].mxu0
        %v863 = vadd.f32 %v786, %v862
        %864 = vmatprep.mubr.bf16.mxu0 0
        %865 = vmatmul.mubr.bf16.gmra.mrb[0].mxu0 %v820
        %v866 = vpop.f32.mrb[0].mxu0
        %v867 = vadd.f32 %v790, %v866
        %v868 = vpop.f32.mrb[0].mxu0
        %v869 = vadd.f32 %v792, %v868
        %v870 = vpop.f32.mrb[0].mxu0
        %v871 = vadd.f32 %v794, %v870
        %v872 = vpop.f32.mrb[0].mxu0
        %v873 = vadd.f32 %v796, %v872
        %874 = vdwg.mxu0
        %s875 = scalar_lea.vmem [#allocation2], 64
        %v876 = vld [vmem:[%s875] sm:$0xff]
        %v877 = vld [vmem:[%s875 + $0x8] sm:$0xff]
        %v878 = vld [vmem:[%s875 + $0x10] sm:$0xff]
        %v879 = vld [vmem:[%s875 + $0x18] sm:$0xff]
        %vm883 = vcmask 1046528
        %v884 = vrot.slane %v685, 1
        %v885 = vrot.slane %v686, 1
        %v886 = vsel %vm883, %v884, %v885
        %v887 = vrot.slane %v691, 1
        %v888 = vsel %vm883, %v885, %v887
        %v893 = vunpack.c.l.b16 %v876
        %v894 = vunpack.c.h.b16 %v876
        %v895 = vunpack.c.l.b16 %v877
        %v896 = vunpack.c.h.b16 %v877
        %v897 = vunpack.c.l.b16 %v878
        %v898 = vunpack.c.h.b16 %v878
        %v899 = vunpack.c.l.b16 %v879
        %v900 = vunpack.c.h.b16 %v879
        %v901 = vpack.c.b16 %v895, %v893
        %v902 = vpack.c.b16 %v896, %v894
        %v903 = vpack.c.b16 %v899, %v897
        %v904 = vpack.c.b16 %v900, %v898
        %v910 = vsel %vm738, %v886, 0
        %v913 = vsel %vm738, %v888, 0
        %915 = vmatprep.subr.bf16.mxu0 %v902
        %916 = vmatpush1.bf16.msra.mxu0 %v901
        %917 = vmatprep.subr.bf16.mxu0 %v904
        %918 = vmatpush1.bf16.msra.mxu0 %v903
        %919 = vmatprep.subr.bf16.mxu0 0
        %920 = vmatpush1.bf16.msra.mxu0 0
        %921 = vmatprep.subr.bf16.mxu0 0
        %922 = vmatpush1.bf16.msra.mxu0 0
        %923 = vmatprep.subr.bf16.mxu0 0
        %924 = vmatpush1.bf16.msra.mxu0 0
        %925 = vmatprep.subr.bf16.mxu0 0
        %926 = vmatpush1.bf16.msra.mxu0 0
        %927 = vmatprep.subr.bf16.mxu0 0
        %928 = vmatpush1.bf16.msra.mxu0 0
        %929 = vmatprep.subr.bf16.mxu0 0
        %930 = vmatpush1.bf16.msra.mxu0 0
        %931 = vmatprep.subr.bf16.mxu0 0
        %932 = vmatpush1.bf16.msra.mxu0 0
        %933 = vmatprep.subr.bf16.mxu0 0
        %934 = vmatpush1.bf16.msra.mxu0 0
        %935 = vmatprep.subr.bf16.mxu0 0
        %936 = vmatpush1.bf16.msra.mxu0 0
        %937 = vmatprep.subr.bf16.mxu0 0
        %938 = vmatpush1.bf16.msra.mxu0 0
        %939 = vmatprep.subr.bf16.mxu0 0
        %940 = vmatpush1.bf16.msra.mxu0 0
        %941 = vmatprep.subr.bf16.mxu0 0
        %942 = vmatpush1.bf16.msra.mxu0 0
        %943 = vmatprep.subr.bf16.mxu0 0
        %944 = vmatpush1.bf16.msra.mxu0 0
        %945 = vmatprep.subr.bf16.mxu0 0
        %946 = vmatpush1.bf16.msra.mxu0 0
        %947 = vmatprep.mubr.bf16.mxu0 0
        %948 = vmatmul.mubr.bf16.gmra.mrb[0].mxu0 %v910
        %v949 = vpop.f32.mrb[0].mxu0
        %v950 = vadd.f32 0.0, %v949
        %v951 = vpop.f32.mrb[0].mxu0
        %v952 = vadd.f32 0.0, %v951
        %v953 = vpop.f32.mrb[0].mxu0
        %v954 = vadd.f32 0.0, %v953
        %v955 = vpop.f32.mrb[0].mxu0
        %v956 = vadd.f32 0.0, %v955
        %957 = vmatprep.mubr.bf16.mxu0 0
        %958 = vmatmul.mubr.bf16.gmra.mrb[0].mxu0 %v913
        %v959 = vpop.f32.mrb[0].mxu0
        %v960 = vadd.f32 0.0, %v959
        %v961 = vpop.f32.mrb[0].mxu0
        %v962 = vadd.f32 0.0, %v961
        %v963 = vpop.f32.mrb[0].mxu0
        %v964 = vadd.f32 0.0, %v963
        %v965 = vpop.f32.mrb[0].mxu0
        %v966 = vadd.f32 0.0, %v965
        %967 = vdwg.mxu0
        %v968 = vadd.f32 %v857, %v950
        %v969 = vadd.f32 %v859, %v952
        %v970 = vadd.f32 %v861, %v954
        %v971 = vadd.f32 %v863, %v956
        %v972 = vadd.f32 %v867, %v960
        %v973 = vadd.f32 %v869, %v962
        %v974 = vadd.f32 %v871, %v964
        %v975 = vadd.f32 %v873, %v966
        %s976 = scalar_lea.vmem [#allocation2], 96
        %v977 = vld [vmem:[%s976] sm:$0xff]
        %v978 = vld [vmem:[%s976 + $0x8] sm:$0xff]
        %v979 = vld [vmem:[%s976 + $0x10] sm:$0xff]
        %v980 = vld [vmem:[%s976 + $0x18] sm:$0xff]
        %vm981 = vsmask.f32 6400
        %v982 = vrot.slane %v699, 1
        %v983 = vrot.slane %v701, 2
        %v984 = vor.u32 %v982, %v983
        %v985 = vrot.slane %v710, 1
        %v986 = vrot.slane %v706, 2
        %v987 = vor.u32 %v985, %v986
        %v988 = vsel %vm981, %v984, %v987
        %v989 = vshrl.u32 %v691, 16
        %v991 = vrot.slane %v989, 1
        %v992 = vrot.slane %v714, 2
        %v993 = vor.u32 %v991, %v992
        %v994 = vsel %vm981, %v987, %v993
        %v999 = vunpack.c.l.b16 %v977
        %v1000 = vunpack.c.h.b16 %v977
        %v1001 = vunpack.c.l.b16 %v978
        %v1002 = vunpack.c.h.b16 %v978
        %v1003 = vunpack.c.l.b16 %v979
        %v1004 = vunpack.c.h.b16 %v979
        %v1005 = vunpack.c.l.b16 %v980
        %v1006 = vunpack.c.h.b16 %v980
        %v1007 = vpack.c.b16 %v1001, %v999
        %v1008 = vpack.c.b16 %v1002, %v1000
        %v1009 = vpack.c.b16 %v1005, %v1003
        %v1010 = vpack.c.b16 %v1006, %v1004
        %v1016 = vsel %vm738, %v988, 0
        %v1019 = vsel %vm738, %v994, 0
        %1021 = vmatprep.subr.bf16.mxu0 %v1008
        %1022 = vmatpush1.bf16.msra.mxu0 %v1007
        %1023 = vmatprep.subr.bf16.mxu0 %v1010
        %1024 = vmatpush1.bf16.msra.mxu0 %v1009
        %1025 = vmatprep.subr.bf16.mxu0 0
        %1026 = vmatpush1.bf16.msra.mxu0 0
        %1027 = vmatprep.subr.bf16.mxu0 0
        %1028 = vmatpush1.bf16.msra.mxu0 0
        %1029 = vmatprep.subr.bf16.mxu0 0
        %1030 = vmatpush1.bf16.msra.mxu0 0
        %1031 = vmatprep.subr.bf16.mxu0 0
        %1032 = vmatpush1.bf16.msra.mxu0 0
        %1033 = vmatprep.subr.bf16.mxu0 0
        %1034 = vmatpush1.bf16.msra.mxu0 0
        %1035 = vmatprep.subr.bf16.mxu0 0
        %1036 = vmatpush1.bf16.msra.mxu0 0
        %1037 = vmatprep.subr.bf16.mxu0 0
        %1038 = vmatpush1.bf16.msra.mxu0 0
        %1039 = vmatprep.subr.bf16.mxu0 0
        %1040 = vmatpush1.bf16.msra.mxu0 0
        %1041 = vmatprep.subr.bf16.mxu0 0
        %1042 = vmatpush1.bf16.msra.mxu0 0
        %1043 = vmatprep.subr.bf16.mxu0 0
        %1044 = vmatpush1.bf16.msra.mxu0 0
        %1045 = vmatprep.subr.bf16.mxu0 0
        %1046 = vmatpush1.bf16.msra.mxu0 0
        %1047 = vmatprep.subr.bf16.mxu0 0
        %1048 = vmatpush1.bf16.msra.mxu0 0
        %1049 = vmatprep.subr.bf16.mxu0 0
        %1050 = vmatpush1.bf16.msra.mxu0 0
        %1051 = vmatprep.subr.bf16.mxu0 0
        %1052 = vmatpush1.bf16.msra.mxu0 0
        %1053 = vmatprep.mubr.bf16.mxu0 0
        %1054 = vmatmul.mubr.bf16.gmra.mrb[0].mxu0 %v1016
        %v1055 = vpop.f32.mrb[0].mxu0
        %v1056 = vadd.f32 0.0, %v1055
        %v1057 = vpop.f32.mrb[0].mxu0
        %v1058 = vadd.f32 0.0, %v1057
        %v1059 = vpop.f32.mrb[0].mxu0
        %v1060 = vadd.f32 0.0, %v1059
        %v1061 = vpop.f32.mrb[0].mxu0
        %v1062 = vadd.f32 0.0, %v1061
        %1063 = vmatprep.mubr.bf16.mxu0 0
        %1064 = vmatmul.mubr.bf16.gmra.mrb[0].mxu0 %v1019
        %v1065 = vpop.f32.mrb[0].mxu0
        %v1066 = vadd.f32 0.0, %v1065
        %v1067 = vpop.f32.mrb[0].mxu0
        %v1068 = vadd.f32 0.0, %v1067
        %v1069 = vpop.f32.mrb[0].mxu0
        %v1070 = vadd.f32 0.0, %v1069
        %v1071 = vpop.f32.mrb[0].mxu0
        %v1072 = vadd.f32 0.0, %v1071
        %1073 = vdwg.mxu0
        %v1074 = vadd.f32 %v968, %v1056
        %v1075 = vadd.f32 %v969, %v1058
        %v1076 = vadd.f32 %v970, %v1060
        %v1077 = vadd.f32 %v971, %v1062
        %v1078 = vadd.f32 %v972, %v1066
        %v1079 = vadd.f32 %v973, %v1068
        %v1080 = vadd.f32 %v974, %v1070
        %v1081 = vadd.f32 %v975, %v1072
        %s1082 = scalar_lea.vmem [#allocation2], 128
        %v1083 = vld [vmem:[%s1082] sm:$0xff]
        %v1084 = vld [vmem:[%s1082 + $0x8] sm:$0xff]
        %v1085 = vld [vmem:[%s1082 + $0x10] sm:$0xff]
        %v1086 = vld [vmem:[%s1082 + $0x18] sm:$0xff]
        %vm1087 = vcmask 1045504
        %v1088 = vrot.slane %v685, 2
        %v1089 = vrot.slane %v686, 2
        %v1090 = vsel %vm1087, %v1088, %v1089
        %v1091 = vrot.slane %v691, 2
        %v1092 = vsel %vm1087, %v1089, %v1091
        %v1097 = vunpack.c.l.b16 %v1083
        %v1098 = vunpack.c.h.b16 %v1083
        %v1099 = vunpack.c.l.b16 %v1084
        %v1100 = vunpack.c.h.b16 %v1084
        %v1101 = vunpack.c.l.b16 %v1085
        %v1102 = vunpack.c.h.b16 %v1085
        %v1103 = vunpack.c.l.b16 %v1086
        %v1104 = vunpack.c.h.b16 %v1086
        %v1105 = vpack.c.b16 %v1099, %v1097
        %v1106 = vpack.c.b16 %v1100, %v1098
        %v1107 = vpack.c.b16 %v1103, %v1101
        %v1108 = vpack.c.b16 %v1104, %v1102
        %v1114 = vsel %vm738, %v1090, 0
        %v1117 = vsel %vm738, %v1092, 0
        %1119 = vmatprep.subr.bf16.mxu0 %v1106
        %1120 = vmatpush1.bf16.msra.mxu0 %v1105
        %1121 = vmatprep.subr.bf16.mxu0 %v1108
        %1122 = vmatpush1.bf16.msra.mxu0 %v1107
        %1123 = vmatprep.subr.bf16.mxu0 0
        %1124 = vmatpush1.bf16.msra.mxu0 0
        %1125 = vmatprep.subr.bf16.mxu0 0
        %1126 = vmatpush1.bf16.msra.mxu0 0
        %1127 = vmatprep.subr.bf16.mxu0 0
        %1128 = vmatpush1.bf16.msra.mxu0 0
        %1129 = vmatprep.subr.bf16.mxu0 0
        %1130 = vmatpush1.bf16.msra.mxu0 0
        %1131 = vmatprep.subr.bf16.mxu0 0
        %1132 = vmatpush1.bf16.msra.mxu0 0
        %1133 = vmatprep.subr.bf16.mxu0 0
        %1134 = vmatpush1.bf16.msra.mxu0 0
        %1135 = vmatprep.subr.bf16.mxu0 0
        %1136 = vmatpush1.bf16.msra.mxu0 0
        %1137 = vmatprep.subr.bf16.mxu0 0
        %1138 = vmatpush1.bf16.msra.mxu0 0
        %1139 = vmatprep.subr.bf16.mxu0 0
        %1140 = vmatpush1.bf16.msra.mxu0 0
        %1141 = vmatprep.subr.bf16.mxu0 0
        %1142 = vmatpush1.bf16.msra.mxu0 0
        %1143 = vmatprep.subr.bf16.mxu0 0
        %1144 = vmatpush1.bf16.msra.mxu0 0
        %1145 = vmatprep.subr.bf16.mxu0 0
        %1146 = vmatpush1.bf16.msra.mxu0 0
        %1147 = vmatprep.subr.bf16.mxu0 0
        %1148 = vmatpush1.bf16.msra.mxu0 0
        %1149 = vmatprep.subr.bf16.mxu0 0
        %1150 = vmatpush1.bf16.msra.mxu0 0
        %1151 = vmatprep.mubr.bf16.mxu0 0
        %1152 = vmatmul.mubr.bf16.gmra.mrb[0].mxu0 %v1114
        %v1153 = vpop.f32.mrb[0].mxu0
        %v1154 = vadd.f32 0.0, %v1153
        %v1155 = vpop.f32.mrb[0].mxu0
        %v1156 = vadd.f32 0.0, %v1155
        %v1157 = vpop.f32.mrb[0].mxu0
        %v1158 = vadd.f32 0.0, %v1157
        %v1159 = vpop.f32.mrb[0].mxu0
        %v1160 = vadd.f32 0.0, %v1159
        %1161 = vmatprep.mubr.bf16.mxu0 0
        %1162 = vmatmul.mubr.bf16.gmra.mrb[0].mxu0 %v1117
        %v1163 = vpop.f32.mrb[0].mxu0
        %v1164 = vadd.f32 0.0, %v1163
        %v1165 = vpop.f32.mrb[0].mxu0
        %v1166 = vadd.f32 0.0, %v1165
        %v1167 = vpop.f32.mrb[0].mxu0
        %v1168 = vadd.f32 0.0, %v1167
        %v1169 = vpop.f32.mrb[0].mxu0
        %v1170 = vadd.f32 0.0, %v1169
        %1171 = vdwg.mxu0
        %v1172 = vadd.f32 %v1074, %v1154
        %v1173 = vadd.f32 %v1075, %v1156
        %v1174 = vadd.f32 %v1076, %v1158
        %v1175 = vadd.f32 %v1077, %v1160
        %v1176 = vadd.f32 %v1078, %v1164
        %v1177 = vadd.f32 %v1079, %v1166
        %v1178 = vadd.f32 %v1080, %v1168
        %v1179 = vadd.f32 %v1081, %v1170
        %v1180 = vld [vmem:[%s2] sm:$0x3]
        %v1182 = vlaneseq
        %v1183 = vshrl.u32 %v1182, 7
        %v1184 = vsub.s32 0, %v1183
        %v1185 = vrot.slane %v1180, %v1184
        %v1186 = vlaneseq
        %v1187 = vshrl.u32 %v1186, 7
        %v1188 = vsub.s32 1, %v1187
        %v1189 = vrot.slane %v1180, %v1188
        %v1192 = vadd.f32 %v1172, %v1185
        %v1193 = vadd.f32 %v1173, %v1189
        %v1194 = vadd.f32 %v1174, %v1185
        %v1195 = vadd.f32 %v1175, %v1189
        %v1196 = vadd.f32 %v1176, %v1185
        %v1197 = vadd.f32 %v1177, %v1189
        %v1198 = vadd.f32 %v1178, %v1185
        %v1199 = vadd.f32 %v1179, %v1189
        %vm1200 = vcmp.ge.f32.partialorder %v1192, 0.0
        %vm1201 = vcmp.ge.f32.partialorder %v1193, 0.0
        %vm1202 = vcmp.ge.f32.partialorder %v1194, 0.0
        %vm1203 = vcmp.ge.f32.partialorder %v1195, 0.0
        %vm1204 = vcmp.ge.f32.partialorder %v1196, 0.0
        %vm1205 = vcmp.ge.f32.partialorder %v1197, 0.0
        %vm1206 = vcmp.ge.f32.partialorder %v1198, 0.0
        %vm1207 = vcmp.ge.f32.partialorder %v1199, 0.0
        %v1208 = vmul.f32 %v1192, 0.2
        %v1209 = vmul.f32 %v1193, 0.2
        %v1210 = vmul.f32 %v1194, 0.2
        %v1211 = vmul.f32 %v1195, 0.2
        %v1212 = vmul.f32 %v1196, 0.2
        %v1213 = vmul.f32 %v1197, 0.2
        %v1214 = vmul.f32 %v1198, 0.2
        %v1215 = vmul.f32 %v1199, 0.2
        %v1216 = vsel %vm1200, %v1192, %v1208
        %v1217 = vsel %vm1201, %v1193, %v1209
        %v1218 = vsel %vm1202, %v1194, %v1210
        %v1219 = vsel %vm1203, %v1195, %v1211
        %v1220 = vsel %vm1204, %v1196, %v1212
        %v1221 = vsel %vm1205, %v1197, %v1213
        %v1222 = vsel %vm1206, %v1198, %v1214
        %v1223 = vsel %vm1207, %v1199, %v1215
        %v1224 = vld [vmem:[%s3] sm:$0xf]
        %v1225 = vld [vmem:[%s3 + $0x4] sm:$0xf]
        %v1226 = vpack.c.bf16 %v1218, %v1216
        %v1227 = vpack.c.bf16 %v1219, %v1217
        %v1228 = vpack.c.bf16 %v1222, %v1220
        %v1229 = vpack.c.bf16 %v1223, %v1221
        %v1232 = vunpack.c.l.b16 %v1224
        %v1233 = vunpack.c.l.b16 %v1225
        %v1234 = vpack.c.b16 %v1233, %v1232
        %v1236 = vsel %vm738, %v1234, 0
        %1238 = vmatprep.subr.bf16.mxu0 %v1227
        %1239 = vmatpush1.bf16.msra.mxu0 %v1226
        %1240 = vmatprep.subr.bf16.mxu0 %v1229
        %1241 = vmatpush1.bf16.msra.mxu0 %v1228
        %1242 = vmatprep.subr.bf16.mxu0 0
        %1243 = vmatpush1.bf16.msra.mxu0 0
        %1244 = vmatprep.subr.bf16.mxu0 0
        %1245 = vmatpush1.bf16.msra.mxu0 0
        %1246 = vmatprep.subr.bf16.mxu0 0
        %1247 = vmatpush1.bf16.msra.mxu0 0
        %1248 = vmatprep.subr.bf16.mxu0 0
        %1249 = vmatpush1.bf16.msra.mxu0 0
        %1250 = vmatprep.subr.bf16.mxu0 0
        %1251 = vmatpush1.bf16.msra.mxu0 0
        %1252 = vmatprep.subr.bf16.mxu0 0
        %1253 = vmatpush1.bf16.msra.mxu0 0
        %1254 = vmatprep.subr.bf16.mxu0 0
        %1255 = vmatpush1.bf16.msra.mxu0 0
        %1256 = vmatprep.subr.bf16.mxu0 0
        %1257 = vmatpush1.bf16.msra.mxu0 0
        %1258 = vmatprep.subr.bf16.mxu0 0
        %1259 = vmatpush1.bf16.msra.mxu0 0
        %1260 = vmatprep.subr.bf16.mxu0 0
        %1261 = vmatpush1.bf16.msra.mxu0 0
        %1262 = vmatprep.subr.bf16.mxu0 0
        %1263 = vmatpush1.bf16.msra.mxu0 0
        %1264 = vmatprep.subr.bf16.mxu0 0
        %1265 = vmatpush1.bf16.msra.mxu0 0
        %1266 = vmatprep.subr.bf16.mxu0 0
        %1267 = vmatpush1.bf16.msra.mxu0 0
        %1268 = vmatprep.subr.bf16.mxu0 0
        %1269 = vmatpush1.bf16.msra.mxu0 0
        %1270 = vmatprep.mubr.bf16.mxu0 0
        %1271 = vmatmul.mubr.bf16.gmra.mrb[0].mxu0 %v1236
        %v1272 = vpop.f32.mrb[0].mxu0
        %v1273 = vadd.f32 0.0, %v1272
        %v1274 = vpop.f32.mrb[0].mxu0
        %v1275 = vadd.f32 0.0, %v1274
        %v1276 = vpop.f32.mrb[0].mxu0
        %v1277 = vadd.f32 0.0, %v1276
        %v1278 = vpop.f32.mrb[0].mxu0
        %v1279 = vadd.f32 0.0, %v1278
        %1280 = vdwg.mxu0
        %v1281 = vpack.c.bf16 %v1277, %v1273
        %v1282 = vpack.c.bf16 %v1279, %v1275
        %v1283 = vld [vmem:[#allocation5] sm:$0xf]
        %v1284 = vld [vmem:[#allocation5 + $0x4] sm:$0xf]
        %v1285 = vld [vmem:[#allocation5 + $0x8] sm:$0xf]
        %v1286 = vld [vmem:[#allocation5 + $0xc] sm:$0xf]
        %v1287 = vld [vmem:[#allocation5 + $0x10] sm:$0xf]
        %v1288 = vld [vmem:[#allocation5 + $0x14] sm:$0xf]
        %v1289 = vld [vmem:[#allocation5 + $0x18] sm:$0xf]
        %v1290 = vld [vmem:[#allocation5 + $0x1c] sm:$0xf]
        %v1291 = vld [vmem:[#allocation5 + $0x20] sm:$0xf]
        %v1292 = vld [vmem:[#allocation5 + $0x24] sm:$0xf]
        %v1293 = vld [vmem:[#allocation5 + $0x28] sm:$0xf]
        %v1294 = vld [vmem:[#allocation5 + $0x2c] sm:$0xf]
        %v1295 = vld [vmem:[#allocation5 + $0x30] sm:$0xf]
        %v1296 = vld [vmem:[#allocation5 + $0x34] sm:$0xf]
        %v1297 = vld [vmem:[#allocation5 + $0x38] sm:$0xf]
        %v1298 = vld [vmem:[#allocation5 + $0x3c] sm:$0xf]
        %v1299 = vld [vmem:[#allocation5 + $0x40] sm:$0xf]
        %v1300 = vld [vmem:[#allocation5 + $0x44] sm:$0xf]
        %v1301 = vld [vmem:[#allocation5 + $0x48] sm:$0xf]
        %v1302 = vld [vmem:[#allocation5 + $0x4c] sm:$0xf]
        %v1303 = vld [vmem:[#allocation5 + $0x50] sm:$0xf]
        %v1304 = vld [vmem:[#allocation5 + $0x54] sm:$0xf]
        %v1305 = vld [vmem:[#allocation5 + $0x58] sm:$0xf]
        %v1306 = vld [vmem:[#allocation5 + $0x5c] sm:$0xf]
        %v1307 = vld [vmem:[#allocation5 + $0x60] sm:$0xf]
        %v1308 = vld [vmem:[#allocation5 + $0x64] sm:$0xf]
        %v1309 = vld [vmem:[#allocation5 + $0x68] sm:$0xf]
        %v1310 = vld [vmem:[#allocation5 + $0x6c] sm:$0xf]
        %v1311 = vld [vmem:[#allocation5 + $0x70] sm:$0xf]
        %v1312 = vld [vmem:[#allocation5 + $0x74] sm:$0xf]
        %v1313 = vld [vmem:[#allocation5 + $0x78] sm:$0xf]
        %v1314 = vld [vmem:[#allocation5 + $0x7c] sm:$0xf]
        %v1347 = vunpack.c.l.b16 %v1283
        %v1348 = vunpack.c.l.b16 %v1284
        %v1349 = vunpack.c.l.b16 %v1285
        %v1350 = vunpack.c.l.b16 %v1286
        %v1351 = vunpack.c.l.b16 %v1287
        %v1352 = vunpack.c.l.b16 %v1288
        %v1353 = vunpack.c.l.b16 %v1289
        %v1354 = vunpack.c.l.b16 %v1290
        %v1355 = vunpack.c.l.b16 %v1291
        %v1356 = vunpack.c.l.b16 %v1292
        %v1357 = vunpack.c.l.b16 %v1293
        %v1358 = vunpack.c.l.b16 %v1294
        %v1359 = vunpack.c.l.b16 %v1295
        %v1360 = vunpack.c.l.b16 %v1296
        %v1361 = vunpack.c.l.b16 %v1297
        %v1362 = vunpack.c.l.b16 %v1298
        %v1363 = vunpack.c.l.b16 %v1299
        %v1364 = vunpack.c.l.b16 %v1300
        %v1365 = vunpack.c.l.b16 %v1301
        %v1366 = vunpack.c.l.b16 %v1302
        %v1367 = vunpack.c.l.b16 %v1303
        %v1368 = vunpack.c.l.b16 %v1304
        %v1369 = vunpack.c.l.b16 %v1305
        %v1370 = vunpack.c.l.b16 %v1306
        %v1371 = vunpack.c.l.b16 %v1307
        %v1372 = vunpack.c.l.b16 %v1308
        %v1373 = vunpack.c.l.b16 %v1309
        %v1374 = vunpack.c.l.b16 %v1310
        %v1375 = vunpack.c.l.b16 %v1311
        %v1376 = vunpack.c.l.b16 %v1312
        %v1377 = vunpack.c.l.b16 %v1313
        %v1378 = vunpack.c.l.b16 %v1314
        %v1379 = vpack.c.b16 %v1348, %v1347
        %v1380 = vpack.c.b16 %v1350, %v1349
        %v1381 = vpack.c.b16 %v1352, %v1351
        %v1382 = vpack.c.b16 %v1354, %v1353
        %v1383 = vpack.c.b16 %v1356, %v1355
        %v1384 = vpack.c.b16 %v1358, %v1357
        %v1385 = vpack.c.b16 %v1360, %v1359
        %v1386 = vpack.c.b16 %v1362, %v1361
        %v1387 = vpack.c.b16 %v1364, %v1363
        %v1388 = vpack.c.b16 %v1366, %v1365
        %v1389 = vpack.c.b16 %v1368, %v1367
        %v1390 = vpack.c.b16 %v1370, %v1369
        %v1391 = vpack.c.b16 %v1372, %v1371
        %v1392 = vpack.c.b16 %v1374, %v1373
        %v1393 = vpack.c.b16 %v1376, %v1375
        %v1394 = vpack.c.b16 %v1378, %v1377
        %1411 = vmatprep.subr.bf16.mxu0 0
        %1412 = vmatpush1.bf16.msra.mxu0 %v1379
        %1413 = vmatprep.subr.bf16.mxu0 0
        %1414 = vmatpush1.bf16.msra.mxu0 %v1380
        %1415 = vmatprep.subr.bf16.mxu0 0
        %1416 = vmatpush1.bf16.msra.mxu0 %v1381
        %1417 = vmatprep.subr.bf16.mxu0 0
        %1418 = vmatpush1.bf16.msra.mxu0 %v1382
        %1419 = vmatprep.subr.bf16.mxu0 0
        %1420 = vmatpush1.bf16.msra.mxu0 %v1383
        %1421 = vmatprep.subr.bf16.mxu0 0
        %1422 = vmatpush1.bf16.msra.mxu0 %v1384
        %1423 = vmatprep.subr.bf16.mxu0 0
        %1424 = vmatpush1.bf16.msra.mxu0 %v1385
        %1425 = vmatprep.subr.bf16.mxu0 0
        %1426 = vmatpush1.bf16.msra.mxu0 %v1386
        %1427 = vmatprep.subr.bf16.mxu0 0
        %1428 = vmatpush1.bf16.msra.mxu0 %v1387
        %1429 = vmatprep.subr.bf16.mxu0 0
        %1430 = vmatpush1.bf16.msra.mxu0 %v1388
        %1431 = vmatprep.subr.bf16.mxu0 0
        %1432 = vmatpush1.bf16.msra.mxu0 %v1389
        %1433 = vmatprep.subr.bf16.mxu0 0
        %1434 = vmatpush1.bf16.msra.mxu0 %v1390
        %1435 = vmatprep.subr.bf16.mxu0 0
        %1436 = vmatpush1.bf16.msra.mxu0 %v1391
        %1437 = vmatprep.subr.bf16.mxu0 0
        %1438 = vmatpush1.bf16.msra.mxu0 %v1392
        %1439 = vmatprep.subr.bf16.mxu0 0
        %1440 = vmatpush1.bf16.msra.mxu0 %v1393
        %1441 = vmatprep.subr.bf16.mxu0 0
        %1442 = vmatpush1.bf16.msra.mxu0 %v1394
        %1443 = vmatprep.mubr.bf16.mxu0 %v1282
        %1444 = vmatmul.mubr.bf16.gmra.mrb[0].mxu0 %v1281
        %v1445 = vpop.f32.mrb[0].mxu0
        %v1446 = vadd.f32 0.0, %v1445
        %v1447 = vpop.f32.mrb[0].mxu0
        %v1448 = vpop.f32.mrb[0].mxu0
        %v1449 = vadd.f32 0.0, %v1448
        %v1450 = vpop.f32.mrb[0].mxu0
        %1451 = vdwg.mxu0
        %v1452 = vpack.c.bf16 %v1449, %v1446
        %v1453 = vld [vmem:[#allocation7] sm:$0xff]
        %v1454 = vld [vmem:[#allocation7 + $0x8] sm:$0xff]
        %v1455 = vld [vmem:[#allocation7 + $0x10] sm:$0xff]
        %v1456 = vld [vmem:[#allocation7 + $0x18] sm:$0xff]
        %v1457 = vld [vmem:[#allocation7 + $0x20] sm:$0xff]
        %v1458 = vld [vmem:[#allocation7 + $0x28] sm:$0xff]
        %v1459 = vld [vmem:[#allocation7 + $0x30] sm:$0xff]
        %v1460 = vld [vmem:[#allocation7 + $0x38] sm:$0xff]
        %v1461 = vld [vmem:[#allocation7 + $0x40] sm:$0xff]
        %v1462 = vld [vmem:[#allocation7 + $0x48] sm:$0xff]
        %v1463 = vld [vmem:[#allocation7 + $0x50] sm:$0xff]
        %v1464 = vld [vmem:[#allocation7 + $0x58] sm:$0xff]
        %v1465 = vld [vmem:[#allocation7 + $0x60] sm:$0xff]
        %v1466 = vld [vmem:[#allocation7 + $0x68] sm:$0xff]
        %v1467 = vld [vmem:[#allocation7 + $0x70] sm:$0xff]
        %v1468 = vld [vmem:[#allocation7 + $0x78] sm:$0xff]
        %v1485 = vunpack.c.l.b16 %v1453
        %v1486 = vunpack.c.h.b16 %v1453
        %v1487 = vunpack.c.l.b16 %v1454
        %v1488 = vunpack.c.h.b16 %v1454
        %v1489 = vunpack.c.l.b16 %v1455
        %v1490 = vunpack.c.h.b16 %v1455
        %v1491 = vunpack.c.l.b16 %v1456
        %v1492 = vunpack.c.h.b16 %v1456
        %v1493 = vunpack.c.l.b16 %v1457
        %v1494 = vunpack.c.h.b16 %v1457
        %v1495 = vunpack.c.l.b16 %v1458
        %v1496 = vunpack.c.h.b16 %v1458
        %v1497 = vunpack.c.l.b16 %v1459
        %v1498 = vunpack.c.h.b16 %v1459
        %v1499 = vunpack.c.l.b16 %v1460
        %v1500 = vunpack.c.h.b16 %v1460
        %v1501 = vunpack.c.l.b16 %v1461
        %v1502 = vunpack.c.h.b16 %v1461
        %v1503 = vunpack.c.l.b16 %v1462
        %v1504 = vunpack.c.h.b16 %v1462
        %v1505 = vunpack.c.l.b16 %v1463
        %v1506 = vunpack.c.h.b16 %v1463
        %v1507 = vunpack.c.l.b16 %v1464
        %v1508 = vunpack.c.h.b16 %v1464
        %v1509 = vunpack.c.l.b16 %v1465
        %v1510 = vunpack.c.h.b16 %v1465
        %v1511 = vunpack.c.l.b16 %v1466
        %v1512 = vunpack.c.h.b16 %v1466
        %v1513 = vunpack.c.l.b16 %v1467
        %v1514 = vunpack.c.h.b16 %v1467
        %v1515 = vunpack.c.l.b16 %v1468
        %v1516 = vunpack.c.h.b16 %v1468
        %v1517 = vpack.c.b16 %v1487, %v1485
        %v1518 = vpack.c.b16 %v1488, %v1486
        %v1519 = vpack.c.b16 %v1491, %v1489
        %v1520 = vpack.c.b16 %v1492, %v1490
        %v1521 = vpack.c.b16 %v1495, %v1493
        %v1522 = vpack.c.b16 %v1496, %v1494
        %v1523 = vpack.c.b16 %v1499, %v1497
        %v1524 = vpack.c.b16 %v1500, %v1498
        %v1525 = vpack.c.b16 %v1503, %v1501
        %v1526 = vpack.c.b16 %v1504, %v1502
        %v1527 = vpack.c.b16 %v1507, %v1505
        %v1528 = vpack.c.b16 %v1508, %v1506
        %v1529 = vpack.c.b16 %v1511, %v1509
        %v1530 = vpack.c.b16 %v1512, %v1510
        %v1531 = vpack.c.b16 %v1515, %v1513
        %v1532 = vpack.c.b16 %v1516, %v1514
        %1549 = vmatprep.subr.bf16.mxu0 %v1518
        %1550 = vmatpush1.bf16.msra.mxu0 %v1517
        %1551 = vmatprep.subr.bf16.mxu0 %v1520
        %1552 = vmatpush1.bf16.msra.mxu0 %v1519
        %1553 = vmatprep.subr.bf16.mxu0 %v1522
        %1554 = vmatpush1.bf16.msra.mxu0 %v1521
        %1555 = vmatprep.subr.bf16.mxu0 %v1524
        %1556 = vmatpush1.bf16.msra.mxu0 %v1523
        %1557 = vmatprep.subr.bf16.mxu0 %v1526
        %1558 = vmatpush1.bf16.msra.mxu0 %v1525
        %1559 = vmatprep.subr.bf16.mxu0 %v1528
        %1560 = vmatpush1.bf16.msra.mxu0 %v1527
        %1561 = vmatprep.subr.bf16.mxu0 %v1530
        %1562 = vmatpush1.bf16.msra.mxu0 %v1529
        %1563 = vmatprep.subr.bf16.mxu0 %v1532
        %1564 = vmatpush1.bf16.msra.mxu0 %v1531
        %1565 = vmatprep.subr.bf16.mxu0 0
        %1566 = vmatpush1.bf16.msra.mxu0 0
        %1567 = vmatprep.subr.bf16.mxu0 0
        %1568 = vmatpush1.bf16.msra.mxu0 0
        %1569 = vmatprep.subr.bf16.mxu0 0
        %1570 = vmatpush1.bf16.msra.mxu0 0
        %1571 = vmatprep.subr.bf16.mxu0 0
        %1572 = vmatpush1.bf16.msra.mxu0 0
        %1573 = vmatprep.subr.bf16.mxu0 0
        %1574 = vmatpush1.bf16.msra.mxu0 0
        %1575 = vmatprep.subr.bf16.mxu0 0
        %1576 = vmatpush1.bf16.msra.mxu0 0
        %1577 = vmatprep.subr.bf16.mxu0 0
        %1578 = vmatpush1.bf16.msra.mxu0 0
        %1579 = vmatprep.subr.bf16.mxu0 0
        %1580 = vmatpush1.bf16.msra.mxu0 0
        %1581 = vmatprep.mubr.bf16.mxu0 0
        %1582 = vmatmul.mubr.bf16.gmra.mrb[0].mxu0 %v1452
        %v1583 = vpop.f32.mrb[0].mxu0
        %v1584 = vadd.f32 0.0, %v1583
        %v1585 = vpop.f32.mrb[0].mxu0
        %v1586 = vadd.f32 0.0, %v1585
        %v1587 = vpop.f32.mrb[0].mxu0
        %v1588 = vadd.f32 0.0, %v1587
        %v1589 = vpop.f32.mrb[0].mxu0
        %v1590 = vadd.f32 0.0, %v1589
        %1591 = vdwg.mxu0
        %vm1594 = vcmask 1040384
        %v1595 = vrot.slane %v1446, 7
        %v1596 = vrot.slane %v1449, 7
        %v1597 = vsel %vm1594, %v1595, %v1596
        %v1601 = vsel %vm1594, 0.0, %v1595
        %v1602 = vsel %vm1594, %v1596, 0.0
        %v1603 = vpack.c.bf16 %v1597, %v1601
        %v1604 = vld [vmem:[%s6] sm:$0xff]
        %v1605 = vld [vmem:[%s6 + $0x8] sm:$0xff]
        %v1606 = vld [vmem:[%s6 + $0x10] sm:$0xff]
        %v1607 = vld [vmem:[%s6 + $0x18] sm:$0xff]
        %v1608 = vld [vmem:[%s6 + $0x20] sm:$0xff]
        %v1609 = vld [vmem:[%s6 + $0x28] sm:$0xff]
        %v1610 = vld [vmem:[%s6 + $0x30] sm:$0xff]
        %v1611 = vld [vmem:[%s6 + $0x38] sm:$0xff]
        %v1612 = vld [vmem:[%s6 + $0x40] sm:$0xff]
        %v1613 = vld [vmem:[%s6 + $0x48] sm:$0xff]
        %v1614 = vld [vmem:[%s6 + $0x50] sm:$0xff]
        %v1615 = vld [vmem:[%s6 + $0x58] sm:$0xff]
        %v1616 = vld [vmem:[%s6 + $0x60] sm:$0xff]
        %v1617 = vld [vmem:[%s6 + $0x68] sm:$0xff]
        %v1618 = vld [vmem:[%s6 + $0x70] sm:$0xff]
        %v1619 = vld [vmem:[%s6 + $0x78] sm:$0xff]
        %v1620 = vpack.c.bf16 %v1602, %v1602
        %s1621 = scalar_lea.vmem %s6, 128
        %v1622 = vld [vmem:[%s1621] sm:$0xff]
        %v1623 = vld [vmem:[%s1621 + $0x8] sm:$0xff]
        %v1624 = vld [vmem:[%s1621 + $0x10] sm:$0xff]
        %v1625 = vld [vmem:[%s1621 + $0x18] sm:$0xff]
        %v1626 = vld [vmem:[%s1621 + $0x20] sm:$0xff]
        %v1627 = vld [vmem:[%s1621 + $0x28] sm:$0xff]
        %v1628 = vld [vmem:[%s1621 + $0x30] sm:$0xff]
        %v1629 = vld [vmem:[%s1621 + $0x38] sm:$0xff]
        %v1630 = vld [vmem:[%s1621 + $0x40] sm:$0xff]
        %v1631 = vld [vmem:[%s1621 + $0x48] sm:$0xff]
        %v1632 = vld [vmem:[%s1621 + $0x50] sm:$0xff]
        %v1633 = vld [vmem:[%s1621 + $0x58] sm:$0xff]
        %v1634 = vld [vmem:[%s1621 + $0x60] sm:$0xff]
        %v1635 = vld [vmem:[%s1621 + $0x68] sm:$0xff]
        %v1636 = vld [vmem:[%s1621 + $0x70] sm:$0xff]
        %v1637 = vld [vmem:[%s1621 + $0x78] sm:$0xff]
        %v1639 = vshrl.u32 %v1603, 16
        %v1641 = vshll.u32 %v1603, 16
        %v1643 = vrot.slane %v1641, 1
        %v1644 = vor.u32 %v1639, %v1643
        %v1646 = vshll.u32 %v1620, 16
        %v1648 = vrot.slane %v1646, 1
        %v1649 = vsel %vm697, %v1644, %v1648
        %v1667 = vunpack.c.l.b16 %v1622
        %v1668 = vunpack.c.h.b16 %v1622
        %v1669 = vunpack.c.l.b16 %v1623
        %v1670 = vunpack.c.h.b16 %v1623
        %v1671 = vunpack.c.l.b16 %v1624
        %v1672 = vunpack.c.h.b16 %v1624
        %v1673 = vunpack.c.l.b16 %v1625
        %v1674 = vunpack.c.h.b16 %v1625
        %v1675 = vunpack.c.l.b16 %v1626
        %v1676 = vunpack.c.h.b16 %v1626
        %v1677 = vunpack.c.l.b16 %v1627
        %v1678 = vunpack.c.h.b16 %v1627
        %v1679 = vunpack.c.l.b16 %v1628
        %v1680 = vunpack.c.h.b16 %v1628
        %v1681 = vunpack.c.l.b16 %v1629
        %v1682 = vunpack.c.h.b16 %v1629
        %v1683 = vunpack.c.l.b16 %v1630
        %v1684 = vunpack.c.h.b16 %v1630
        %v1685 = vunpack.c.l.b16 %v1631
        %v1686 = vunpack.c.h.b16 %v1631
        %v1687 = vunpack.c.l.b16 %v1632
        %v1688 = vunpack.c.h.b16 %v1632
        %v1689 = vunpack.c.l.b16 %v1633
        %v1690 = vunpack.c.h.b16 %v1633
        %v1691 = vunpack.c.l.b16 %v1634
        %v1692 = vunpack.c.h.b16 %v1634
        %v1693 = vunpack.c.l.b16 %v1635
        %v1694 = vunpack.c.h.b16 %v1635
        %v1695 = vunpack.c.l.b16 %v1636
        %v1696 = vunpack.c.h.b16 %v1636
        %v1697 = vunpack.c.l.b16 %v1637
        %v1698 = vunpack.c.h.b16 %v1637
        %v1699 = vpack.c.b16 %v1669, %v1667
        %v1700 = vpack.c.b16 %v1670, %v1668
        %v1701 = vpack.c.b16 %v1673, %v1671
        %v1702 = vpack.c.b16 %v1674, %v1672
        %v1703 = vpack.c.b16 %v1677, %v1675
        %v1704 = vpack.c.b16 %v1678, %v1676
        %v1705 = vpack.c.b16 %v1681, %v1679
        %v1706 = vpack.c.b16 %v1682, %v1680
        %v1707 = vpack.c.b16 %v1685, %v1683
        %v1708 = vpack.c.b16 %v1686, %v1684
        %v1709 = vpack.c.b16 %v1689, %v1687
        %v1710 = vpack.c.b16 %v1690, %v1688
        %v1711 = vpack.c.b16 %v1693, %v1691
        %v1712 = vpack.c.b16 %v1694, %v1692
        %v1713 = vpack.c.b16 %v1697, %v1695
        %v1714 = vpack.c.b16 %v1698, %v1696
        %1731 = vmatprep.subr.bf16.mxu0 %v1700
        %1732 = vmatpush1.bf16.msra.mxu0 %v1699
        %1733 = vmatprep.subr.bf16.mxu0 %v1702
        %1734 = vmatpush1.bf16.msra.mxu0 %v1701
        %1735 = vmatprep.subr.bf16.mxu0 %v1704
        %1736 = vmatpush1.bf16.msra.mxu0 %v1703
        %1737 = vmatprep.subr.bf16.mxu0 %v1706
        %1738 = vmatpush1.bf16.msra.mxu0 %v1705
        %1739 = vmatprep.subr.bf16.mxu0 %v1708
        %1740 = vmatpush1.bf16.msra.mxu0 %v1707
        %1741 = vmatprep.subr.bf16.mxu0 %v1710
        %1742 = vmatpush1.bf16.msra.mxu0 %v1709
        %1743 = vmatprep.subr.bf16.mxu0 %v1712
        %1744 = vmatpush1.bf16.msra.mxu0 %v1711
        %1745 = vmatprep.subr.bf16.mxu0 %v1714
        %1746 = vmatpush1.bf16.msra.mxu0 %v1713
        %1747 = vmatprep.subr.bf16.mxu0 0
        %1748 = vmatpush1.bf16.msra.mxu0 0
        %1749 = vmatprep.subr.bf16.mxu0 0
        %1750 = vmatpush1.bf16.msra.mxu0 0
        %1751 = vmatprep.subr.bf16.mxu0 0
        %1752 = vmatpush1.bf16.msra.mxu0 0
        %1753 = vmatprep.subr.bf16.mxu0 0
        %1754 = vmatpush1.bf16.msra.mxu0 0
        %1755 = vmatprep.subr.bf16.mxu0 0
        %1756 = vmatpush1.bf16.msra.mxu0 0
        %1757 = vmatprep.subr.bf16.mxu0 0
        %1758 = vmatpush1.bf16.msra.mxu0 0
        %1759 = vmatprep.subr.bf16.mxu0 0
        %1760 = vmatpush1.bf16.msra.mxu0 0
        %1761 = vmatprep.subr.bf16.mxu0 0
        %1762 = vmatpush1.bf16.msra.mxu0 0
        %1763 = vmatprep.mubr.bf16.mxu0 0
        %1764 = vmatmul.mubr.bf16.gmra.mrb[0].mxu0 %v1649
        %v1765 = vpop.f32.mrb[0].mxu0
        %v1766 = vadd.f32 0.0, %v1765
        %v1767 = vpop.f32.mrb[0].mxu0
        %v1768 = vadd.f32 0.0, %v1767
        %v1769 = vpop.f32.mrb[0].mxu0
        %v1770 = vadd.f32 0.0, %v1769
        %v1771 = vpop.f32.mrb[0].mxu0
        %v1772 = vadd.f32 0.0, %v1771
        %1773 = vdwg.mxu0
        %v1790 = vunpack.c.l.b16 %v1604
        %v1791 = vunpack.c.h.b16 %v1604
        %v1792 = vunpack.c.l.b16 %v1605
        %v1793 = vunpack.c.h.b16 %v1605
        %v1794 = vunpack.c.l.b16 %v1606
        %v1795 = vunpack.c.h.b16 %v1606
        %v1796 = vunpack.c.l.b16 %v1607
        %v1797 = vunpack.c.h.b16 %v1607
        %v1798 = vunpack.c.l.b16 %v1608
        %v1799 = vunpack.c.h.b16 %v1608
        %v1800 = vunpack.c.l.b16 %v1609
        %v1801 = vunpack.c.h.b16 %v1609
        %v1802 = vunpack.c.l.b16 %v1610
        %v1803 = vunpack.c.h.b16 %v1610
        %v1804 = vunpack.c.l.b16 %v1611
        %v1805 = vunpack.c.h.b16 %v1611
        %v1806 = vunpack.c.l.b16 %v1612
        %v1807 = vunpack.c.h.b16 %v1612
        %v1808 = vunpack.c.l.b16 %v1613
        %v1809 = vunpack.c.h.b16 %v1613
        %v1810 = vunpack.c.l.b16 %v1614
        %v1811 = vunpack.c.h.b16 %v1614
        %v1812 = vunpack.c.l.b16 %v1615
        %v1813 = vunpack.c.h.b16 %v1615
        %v1814 = vunpack.c.l.b16 %v1616
        %v1815 = vunpack.c.h.b16 %v1616
        %v1816 = vunpack.c.l.b16 %v1617
        %v1817 = vunpack.c.h.b16 %v1617
        %v1818 = vunpack.c.l.b16 %v1618
        %v1819 = vunpack.c.h.b16 %v1618
        %v1820 = vunpack.c.l.b16 %v1619
        %v1821 = vunpack.c.h.b16 %v1619
        %v1822 = vpack.c.b16 %v1792, %v1790
        %v1823 = vpack.c.b16 %v1793, %v1791
        %v1824 = vpack.c.b16 %v1796, %v1794
        %v1825 = vpack.c.b16 %v1797, %v1795
        %v1826 = vpack.c.b16 %v1800, %v1798
        %v1827 = vpack.c.b16 %v1801, %v1799
        %v1828 = vpack.c.b16 %v1804, %v1802
        %v1829 = vpack.c.b16 %v1805, %v1803
        %v1830 = vpack.c.b16 %v1808, %v1806
        %v1831 = vpack.c.b16 %v1809, %v1807
        %v1832 = vpack.c.b16 %v1812, %v1810
        %v1833 = vpack.c.b16 %v1813, %v1811
        %v1834 = vpack.c.b16 %v1816, %v1814
        %v1835 = vpack.c.b16 %v1817, %v1815
        %v1836 = vpack.c.b16 %v1820, %v1818
        %v1837 = vpack.c.b16 %v1821, %v1819
        %1854 = vmatprep.subr.bf16.mxu0 %v1823
        %1855 = vmatpush1.bf16.msra.mxu0 %v1822
        %1856 = vmatprep.subr.bf16.mxu0 %v1825
        %1857 = vmatpush1.bf16.msra.mxu0 %v1824
        %1858 = vmatprep.subr.bf16.mxu0 %v1827
        %1859 = vmatpush1.bf16.msra.mxu0 %v1826
        %1860 = vmatprep.subr.bf16.mxu0 %v1829
        %1861 = vmatpush1.bf16.msra.mxu0 %v1828
        %1862 = vmatprep.subr.bf16.mxu0 %v1831
        %1863 = vmatpush1.bf16.msra.mxu0 %v1830
        %1864 = vmatprep.subr.bf16.mxu0 %v1833
        %1865 = vmatpush1.bf16.msra.mxu0 %v1832
        %1866 = vmatprep.subr.bf16.mxu0 %v1835
        %1867 = vmatpush1.bf16.msra.mxu0 %v1834
        %1868 = vmatprep.subr.bf16.mxu0 %v1837
        %1869 = vmatpush1.bf16.msra.mxu0 %v1836
        %1870 = vmatprep.subr.bf16.mxu0 0
        %1871 = vmatpush1.bf16.msra.mxu0 0
        %1872 = vmatprep.subr.bf16.mxu0 0
        %1873 = vmatpush1.bf16.msra.mxu0 0
        %1874 = vmatprep.subr.bf16.mxu0 0
        %1875 = vmatpush1.bf16.msra.mxu0 0
        %1876 = vmatprep.subr.bf16.mxu0 0
        %1877 = vmatpush1.bf16.msra.mxu0 0
        %1878 = vmatprep.subr.bf16.mxu0 0
        %1879 = vmatpush1.bf16.msra.mxu0 0
        %1880 = vmatprep.subr.bf16.mxu0 0
        %1881 = vmatpush1.bf16.msra.mxu0 0
        %1882 = vmatprep.subr.bf16.mxu0 0
        %1883 = vmatpush1.bf16.msra.mxu0 0
        %1884 = vmatprep.subr.bf16.mxu0 0
        %1885 = vmatpush1.bf16.msra.mxu0 0
        %1886 = vmatprep.mubr.bf16.mxu0 0
        %1887 = vmatmul.mubr.bf16.gmra.mrb[0].mxu0 %v1603
        %v1888 = vpop.f32.mrb[0].mxu0
        %v1889 = vadd.f32 %v1766, %v1888
        %v1890 = vpop.f32.mrb[0].mxu0
        %v1891 = vadd.f32 %v1768, %v1890
        %v1892 = vpop.f32.mrb[0].mxu0
        %v1893 = vadd.f32 %v1770, %v1892
        %v1894 = vpop.f32.mrb[0].mxu0
        %v1895 = vadd.f32 %v1772, %v1894
        %1896 = vdwg.mxu0
        %s1897 = scalar_lea.vmem %s6, 256
        %v1898 = vld [vmem:[%s1897] sm:$0xff]
        %v1899 = vld [vmem:[%s1897 + $0x8] sm:$0xff]
        %v1900 = vld [vmem:[%s1897 + $0x10] sm:$0xff]
        %v1901 = vld [vmem:[%s1897 + $0x18] sm:$0xff]
        %v1902 = vld [vmem:[%s1897 + $0x20] sm:$0xff]
        %v1903 = vld [vmem:[%s1897 + $0x28] sm:$0xff]
        %v1904 = vld [vmem:[%s1897 + $0x30] sm:$0xff]
        %v1905 = vld [vmem:[%s1897 + $0x38] sm:$0xff]
        %v1906 = vld [vmem:[%s1897 + $0x40] sm:$0xff]
        %v1907 = vld [vmem:[%s1897 + $0x48] sm:$0xff]
        %v1908 = vld [vmem:[%s1897 + $0x50] sm:$0xff]
        %v1909 = vld [vmem:[%s1897 + $0x58] sm:$0xff]
        %v1910 = vld [vmem:[%s1897 + $0x60] sm:$0xff]
        %v1911 = vld [vmem:[%s1897 + $0x68] sm:$0xff]
        %v1912 = vld [vmem:[%s1897 + $0x70] sm:$0xff]
        %v1913 = vld [vmem:[%s1897 + $0x78] sm:$0xff]
        %v1916 = vrot.slane %v1603, 1
        %v1917 = vrot.slane %v1620, 1
        %v1918 = vsel %vm883, %v1916, %v1917
        %v1936 = vunpack.c.l.b16 %v1898
        %v1937 = vunpack.c.h.b16 %v1898
        %v1938 = vunpack.c.l.b16 %v1899
        %v1939 = vunpack.c.h.b16 %v1899
        %v1940 = vunpack.c.l.b16 %v1900
        %v1941 = vunpack.c.h.b16 %v1900
        %v1942 = vunpack.c.l.b16 %v1901
        %v1943 = vunpack.c.h.b16 %v1901
        %v1944 = vunpack.c.l.b16 %v1902
        %v1945 = vunpack.c.h.b16 %v1902
        %v1946 = vunpack.c.l.b16 %v1903
        %v1947 = vunpack.c.h.b16 %v1903
        %v1948 = vunpack.c.l.b16 %v1904
        %v1949 = vunpack.c.h.b16 %v1904
        %v1950 = vunpack.c.l.b16 %v1905
        %v1951 = vunpack.c.h.b16 %v1905
        %v1952 = vunpack.c.l.b16 %v1906
        %v1953 = vunpack.c.h.b16 %v1906
        %v1954 = vunpack.c.l.b16 %v1907
        %v1955 = vunpack.c.h.b16 %v1907
        %v1956 = vunpack.c.l.b16 %v1908
        %v1957 = vunpack.c.h.b16 %v1908
        %v1958 = vunpack.c.l.b16 %v1909
        %v1959 = vunpack.c.h.b16 %v1909
        %v1960 = vunpack.c.l.b16 %v1910
        %v1961 = vunpack.c.h.b16 %v1910
        %v1962 = vunpack.c.l.b16 %v1911
        %v1963 = vunpack.c.h.b16 %v1911
        %v1964 = vunpack.c.l.b16 %v1912
        %v1965 = vunpack.c.h.b16 %v1912
        %v1966 = vunpack.c.l.b16 %v1913
        %v1967 = vunpack.c.h.b16 %v1913
        %v1968 = vpack.c.b16 %v1938, %v1936
        %v1969 = vpack.c.b16 %v1939, %v1937
        %v1970 = vpack.c.b16 %v1942, %v1940
        %v1971 = vpack.c.b16 %v1943, %v1941
        %v1972 = vpack.c.b16 %v1946, %v1944
        %v1973 = vpack.c.b16 %v1947, %v1945
        %v1974 = vpack.c.b16 %v1950, %v1948
        %v1975 = vpack.c.b16 %v1951, %v1949
        %v1976 = vpack.c.b16 %v1954, %v1952
        %v1977 = vpack.c.b16 %v1955, %v1953
        %v1978 = vpack.c.b16 %v1958, %v1956
        %v1979 = vpack.c.b16 %v1959, %v1957
        %v1980 = vpack.c.b16 %v1962, %v1960
        %v1981 = vpack.c.b16 %v1963, %v1961
        %v1982 = vpack.c.b16 %v1966, %v1964
        %v1983 = vpack.c.b16 %v1967, %v1965
        %2000 = vmatprep.subr.bf16.mxu0 %v1969
        %2001 = vmatpush1.bf16.msra.mxu0 %v1968
        %2002 = vmatprep.subr.bf16.mxu0 %v1971
        %2003 = vmatpush1.bf16.msra.mxu0 %v1970
        %2004 = vmatprep.subr.bf16.mxu0 %v1973
        %2005 = vmatpush1.bf16.msra.mxu0 %v1972
        %2006 = vmatprep.subr.bf16.mxu0 %v1975
        %2007 = vmatpush1.bf16.msra.mxu0 %v1974
        %2008 = vmatprep.subr.bf16.mxu0 %v1977
        %2009 = vmatpush1.bf16.msra.mxu0 %v1976
        %2010 = vmatprep.subr.bf16.mxu0 %v1979
        %2011 = vmatpush1.bf16.msra.mxu0 %v1978
        %2012 = vmatprep.subr.bf16.mxu0 %v1981
        %2013 = vmatpush1.bf16.msra.mxu0 %v1980
        %2014 = vmatprep.subr.bf16.mxu0 %v1983
        %2015 = vmatpush1.bf16.msra.mxu0 %v1982
        %2016 = vmatprep.subr.bf16.mxu0 0
        %2017 = vmatpush1.bf16.msra.mxu0 0
        %2018 = vmatprep.subr.bf16.mxu0 0
        %2019 = vmatpush1.bf16.msra.mxu0 0
        %2020 = vmatprep.subr.bf16.mxu0 0
        %2021 = vmatpush1.bf16.msra.mxu0 0
        %2022 = vmatprep.subr.bf16.mxu0 0
        %2023 = vmatpush1.bf16.msra.mxu0 0
        %2024 = vmatprep.subr.bf16.mxu0 0
        %2025 = vmatpush1.bf16.msra.mxu0 0
        %2026 = vmatprep.subr.bf16.mxu0 0
        %2027 = vmatpush1.bf16.msra.mxu0 0
        %2028 = vmatprep.subr.bf16.mxu0 0
        %2029 = vmatpush1.bf16.msra.mxu0 0
        %2030 = vmatprep.subr.bf16.mxu0 0
        %2031 = vmatpush1.bf16.msra.mxu0 0
        %2032 = vmatprep.mubr.bf16.mxu0 0
        %2033 = vmatmul.mubr.bf16.gmra.mrb[0].mxu0 %v1918
        %v2034 = vpop.f32.mrb[0].mxu0
        %v2035 = vadd.f32 0.0, %v2034
        %v2036 = vpop.f32.mrb[0].mxu0
        %v2037 = vadd.f32 0.0, %v2036
        %v2038 = vpop.f32.mrb[0].mxu0
        %v2039 = vadd.f32 0.0, %v2038
        %v2040 = vpop.f32.mrb[0].mxu0
        %v2041 = vadd.f32 0.0, %v2040
        %2042 = vdwg.mxu0
        %v2043 = vadd.f32 %v1889, %v2035
        %v2044 = vadd.f32 %v1891, %v2037
        %v2045 = vadd.f32 %v1893, %v2039
        %v2046 = vadd.f32 %v1895, %v2041
        %v2047 = vld [vmem:[%s7] sm:$0x3]
        %v2049 = vlaneseq
        %v2050 = vshrl.u32 %v2049, 7
        %v2051 = vsub.s32 0, %v2050
        %v2052 = vrot.slane %v2047, %v2051
        %v2053 = vlaneseq
        %v2054 = vshrl.u32 %v2053, 7
        %v2055 = vsub.s32 1, %v2054
        %v2056 = vrot.slane %v2047, %v2055
        %v2059 = vadd.f32 %v2043, %v2052
        %v2060 = vadd.f32 %v2044, %v2056
        %v2061 = vadd.f32 %v2045, %v2052
        %v2062 = vadd.f32 %v2046, %v2056
        %vm2063 = vcmp.ge.f32.partialorder %v2059, 0.0
        %vm2064 = vcmp.ge.f32.partialorder %v2060, 0.0
        %vm2065 = vcmp.ge.f32.partialorder %v2061, 0.0
        %vm2066 = vcmp.ge.f32.partialorder %v2062, 0.0
        %v2067 = vmul.f32 %v2059, 0.2
        %v2068 = vmul.f32 %v2060, 0.2
        %v2069 = vmul.f32 %v2061, 0.2
        %v2070 = vmul.f32 %v2062, 0.2
        %v2071 = vsel %vm2063, %v2059, %v2067
        %v2072 = vsel %vm2064, %v2060, %v2068
        %v2073 = vsel %vm2065, %v2061, %v2069
        %v2074 = vsel %vm2066, %v2062, %v2070
        %v2079 = vrot.slane %v2071, 7
        %v2080 = vrot.slane %v2072, 7
        %v2081 = vrot.slane %v2073, 7
        %v2082 = vsel %vm1594, %v2079, %v2081
        %v2083 = vrot.slane %v2074, 7
        %v2084 = vsel %vm1594, %v2080, %v2083
        %v2091 = vsel %vm1594, 0.0, %v2079
        %v2092 = vsel %vm1594, 0.0, %v2080
        %v2093 = vsel %vm1594, %v2081, 0.0
        %v2094 = vsel %vm1594, %v2083, 0.0
        %v2095 = vpack.c.bf16 %v2082, %v2091
        %v2096 = vpack.c.bf16 %v2084, %v2092
        %v2097 = vld [vmem:[#allocation8] sm:$0xff]
        %v2098 = vld [vmem:[#allocation8 + $0x8] sm:$0xff]
        %v2099 = vld [vmem:[#allocation8 + $0x10] sm:$0xff]
        %v2100 = vld [vmem:[#allocation8 + $0x18] sm:$0xff]
        %v2101 = vld [vmem:[#allocation8 + $0x20] sm:$0xff]
        %v2102 = vld [vmem:[#allocation8 + $0x28] sm:$0xff]
        %v2103 = vld [vmem:[#allocation8 + $0x30] sm:$0xff]
        %v2104 = vld [vmem:[#allocation8 + $0x38] sm:$0xff]
        %v2105 = vld [vmem:[#allocation8 + $0x40] sm:$0xff]
        %v2106 = vld [vmem:[#allocation8 + $0x48] sm:$0xff]
        %v2107 = vld [vmem:[#allocation8 + $0x50] sm:$0xff]
        %v2108 = vld [vmem:[#allocation8 + $0x58] sm:$0xff]
        %v2109 = vld [vmem:[#allocation8 + $0x60] sm:$0xff]
        %v2110 = vld [vmem:[#allocation8 + $0x68] sm:$0xff]
        %v2111 = vld [vmem:[#allocation8 + $0x70] sm:$0xff]
        %v2112 = vld [vmem:[#allocation8 + $0x78] sm:$0xff]
        %v2113 = vld [vmem:[#allocation8 + $0x80] sm:$0xff]
        %v2114 = vld [vmem:[#allocation8 + $0x88] sm:$0xff]
        %v2115 = vld [vmem:[#allocation8 + $0x90] sm:$0xff]
        %v2116 = vld [vmem:[#allocation8 + $0x98] sm:$0xff]
        %v2117 = vld [vmem:[#allocation8 + $0xa0] sm:$0xff]
        %v2118 = vld [vmem:[#allocation8 + $0xa8] sm:$0xff]
        %v2119 = vld [vmem:[#allocation8 + $0xb0] sm:$0xff]
        %v2120 = vld [vmem:[#allocation8 + $0xb8] sm:$0xff]
        %v2121 = vld [vmem:[#allocation8 + $0xc0] sm:$0xff]
        %v2122 = vld [vmem:[#allocation8 + $0xc8] sm:$0xff]
        %v2123 = vld [vmem:[#allocation8 + $0xd0] sm:$0xff]
        %v2124 = vld [vmem:[#allocation8 + $0xd8] sm:$0xff]
        %v2125 = vld [vmem:[#allocation8 + $0xe0] sm:$0xff]
        %v2126 = vld [vmem:[#allocation8 + $0xe8] sm:$0xff]
        %v2127 = vld [vmem:[#allocation8 + $0xf0] sm:$0xff]
        %v2128 = vld [vmem:[#allocation8 + $0xf8] sm:$0xff]
        %v2129 = vpack.c.bf16 %v2093, %v2093
        %v2130 = vpack.c.bf16 %v2094, %v2094
        %s2131 = scalar_lea.vmem [#allocation8], 256
        %v2132 = vld [vmem:[%s2131] sm:$0xff]
        %v2133 = vld [vmem:[%s2131 + $0x8] sm:$0xff]
        %v2134 = vld [vmem:[%s2131 + $0x10] sm:$0xff]
        %v2135 = vld [vmem:[%s2131 + $0x18] sm:$0xff]
        %v2136 = vld [vmem:[%s2131 + $0x20] sm:$0xff]
        %v2137 = vld [vmem:[%s2131 + $0x28] sm:$0xff]
        %v2138 = vld [vmem:[%s2131 + $0x30] sm:$0xff]
        %v2139 = vld [vmem:[%s2131 + $0x38] sm:$0xff]
        %v2140 = vld [vmem:[%s2131 + $0x40] sm:$0xff]
        %v2141 = vld [vmem:[%s2131 + $0x48] sm:$0xff]
        %v2142 = vld [vmem:[%s2131 + $0x50] sm:$0xff]
        %v2143 = vld [vmem:[%s2131 + $0x58] sm:$0xff]
        %v2144 = vld [vmem:[%s2131 + $0x60] sm:$0xff]
        %v2145 = vld [vmem:[%s2131 + $0x68] sm:$0xff]
        %v2146 = vld [vmem:[%s2131 + $0x70] sm:$0xff]
        %v2147 = vld [vmem:[%s2131 + $0x78] sm:$0xff]
        %v2148 = vld [vmem:[%s2131 + $0x80] sm:$0xff]
        %v2149 = vld [vmem:[%s2131 + $0x88] sm:$0xff]
        %v2150 = vld [vmem:[%s2131 + $0x90] sm:$0xff]
        %v2151 = vld [vmem:[%s2131 + $0x98] sm:$0xff]
        %v2152 = vld [vmem:[%s2131 + $0xa0] sm:$0xff]
        %v2153 = vld [vmem:[%s2131 + $0xa8] sm:$0xff]
        %v2154 = vld [vmem:[%s2131 + $0xb0] sm:$0xff]
        %v2155 = vld [vmem:[%s2131 + $0xb8] sm:$0xff]
        %v2156 = vld [vmem:[%s2131 + $0xc0] sm:$0xff]
        %v2157 = vld [vmem:[%s2131 + $0xc8] sm:$0xff]
        %v2158 = vld [vmem:[%s2131 + $0xd0] sm:$0xff]
        %v2159 = vld [vmem:[%s2131 + $0xd8] sm:$0xff]
        %v2160 = vld [vmem:[%s2131 + $0xe0] sm:$0xff]
        %v2161 = vld [vmem:[%s2131 + $0xe8] sm:$0xff]
        %v2162 = vld [vmem:[%s2131 + $0xf0] sm:$0xff]
        %v2163 = vld [vmem:[%s2131 + $0xf8] sm:$0xff]
        %v2165 = vshrl.u32 %v2095, 16
        %v2167 = vshll.u32 %v2095, 16
        %v2169 = vrot.slane %v2167, 1
        %v2170 = vor.u32 %v2165, %v2169
        %v2172 = vshll.u32 %v2129, 16
        %v2174 = vrot.slane %v2172, 1
        %v2175 = vsel %vm697, %v2170, %v2174
        %v2177 = vshrl.u32 %v2096, 16
        %v2179 = vshll.u32 %v2096, 16
        %v2181 = vrot.slane %v2179, 1
        %v2182 = vor.u32 %v2177, %v2181
        %v2184 = vshll.u32 %v2130, 16
        %v2186 = vrot.slane %v2184, 1
        %v2187 = vsel %vm697, %v2182, %v2186
        %v2222 = vunpack.c.l.b16 %v2132
        %v2223 = vunpack.c.h.b16 %v2132
        %v2224 = vunpack.c.l.b16 %v2133
        %v2225 = vunpack.c.h.b16 %v2133
        %v2226 = vunpack.c.l.b16 %v2134
        %v2227 = vunpack.c.h.b16 %v2134
        %v2228 = vunpack.c.l.b16 %v2135
        %v2229 = vunpack.c.h.b16 %v2135
        %v2230 = vunpack.c.l.b16 %v2136
        %v2231 = vunpack.c.h.b16 %v2136
        %v2232 = vunpack.c.l.b16 %v2137
        %v2233 = vunpack.c.h.b16 %v2137
        %v2234 = vunpack.c.l.b16 %v2138
        %v2235 = vunpack.c.h.b16 %v2138
        %v2236 = vunpack.c.l.b16 %v2139
        %v2237 = vunpack.c.h.b16 %v2139
        %v2238 = vunpack.c.l.b16 %v2140
        %v2239 = vunpack.c.h.b16 %v2140
        %v2240 = vunpack.c.l.b16 %v2141
        %v2241 = vunpack.c.h.b16 %v2141
        %v2242 = vunpack.c.l.b16 %v2142
        %v2243 = vunpack.c.h.b16 %v2142
        %v2244 = vunpack.c.l.b16 %v2143
        %v2245 = vunpack.c.h.b16 %v2143
        %v2246 = vunpack.c.l.b16 %v2144
        %v2247 = vunpack.c.h.b16 %v2144
        %v2248 = vunpack.c.l.b16 %v2145
        %v2249 = vunpack.c.h.b16 %v2145
        %v2250 = vunpack.c.l.b16 %v2146
        %v2251 = vunpack.c.h.b16 %v2146
        %v2252 = vunpack.c.l.b16 %v2147
        %v2253 = vunpack.c.h.b16 %v2147
        %v2254 = vunpack.c.l.b16 %v2148
        %v2255 = vunpack.c.h.b16 %v2148
        %v2256 = vunpack.c.l.b16 %v2149
        %v2257 = vunpack.c.h.b16 %v2149
        %v2258 = vunpack.c.l.b16 %v2150
        %v2259 = vunpack.c.h.b16 %v2150
        %v2260 = vunpack.c.l.b16 %v2151
        %v2261 = vunpack.c.h.b16 %v2151
        %v2262 = vunpack.c.l.b16 %v2152
        %v2263 = vunpack.c.h.b16 %v2152
        %v2264 = vunpack.c.l.b16 %v2153
        %v2265 = vunpack.c.h.b16 %v2153
        %v2266 = vunpack.c.l.b16 %v2154
        %v2267 = vunpack.c.h.b16 %v2154
        %v2268 = vunpack.c.l.b16 %v2155
        %v2269 = vunpack.c.h.b16 %v2155
        %v2270 = vunpack.c.l.b16 %v2156
        %v2271 = vunpack.c.h.b16 %v2156
        %v2272 = vunpack.c.l.b16 %v2157
        %v2273 = vunpack.c.h.b16 %v2157
        %v2274 = vunpack.c.l.b16 %v2158
        %v2275 = vunpack.c.h.b16 %v2158
        %v2276 = vunpack.c.l.b16 %v2159
        %v2277 = vunpack.c.h.b16 %v2159
        %v2278 = vunpack.c.l.b16 %v2160
        %v2279 = vunpack.c.h.b16 %v2160
        %v2280 = vunpack.c.l.b16 %v2161
        %v2281 = vunpack.c.h.b16 %v2161
        %v2282 = vunpack.c.l.b16 %v2162
        %v2283 = vunpack.c.h.b16 %v2162
        %v2284 = vunpack.c.l.b16 %v2163
        %v2285 = vunpack.c.h.b16 %v2163
        %v2286 = vpack.c.b16 %v2224, %v2222
        %v2287 = vpack.c.b16 %v2225, %v2223
        %v2288 = vpack.c.b16 %v2228, %v2226
        %v2289 = vpack.c.b16 %v2229, %v2227
        %v2290 = vpack.c.b16 %v2232, %v2230
        %v2291 = vpack.c.b16 %v2233, %v2231
        %v2292 = vpack.c.b16 %v2236, %v2234
        %v2293 = vpack.c.b16 %v2237, %v2235
        %v2294 = vpack.c.b16 %v2240, %v2238
        %v2295 = vpack.c.b16 %v2241, %v2239
        %v2296 = vpack.c.b16 %v2244, %v2242
        %v2297 = vpack.c.b16 %v2245, %v2243
        %v2298 = vpack.c.b16 %v2248, %v2246
        %v2299 = vpack.c.b16 %v2249, %v2247
        %v2300 = vpack.c.b16 %v2252, %v2250
        %v2301 = vpack.c.b16 %v2253, %v2251
        %v2302 = vpack.c.b16 %v2256, %v2254
        %v2303 = vpack.c.b16 %v2257, %v2255
        %v2304 = vpack.c.b16 %v2260, %v2258
        %v2305 = vpack.c.b16 %v2261, %v2259
        %v2306 = vpack.c.b16 %v2264, %v2262
        %v2307 = vpack.c.b16 %v2265, %v2263
        %v2308 = vpack.c.b16 %v2268, %v2266
        %v2309 = vpack.c.b16 %v2269, %v2267
        %v2310 = vpack.c.b16 %v2272, %v2270
        %v2311 = vpack.c.b16 %v2273, %v2271
        %v2312 = vpack.c.b16 %v2276, %v2274
        %v2313 = vpack.c.b16 %v2277, %v2275
        %v2314 = vpack.c.b16 %v2280, %v2278
        %v2315 = vpack.c.b16 %v2281, %v2279
        %v2316 = vpack.c.b16 %v2284, %v2282
        %v2317 = vpack.c.b16 %v2285, %v2283
        %2350 = vmatprep.subr.bf16.mxu0 %v2287
        %2351 = vmatpush1.bf16.msra.mxu0 %v2286
        %2352 = vmatprep.subr.bf16.mxu0 %v2289
        %2353 = vmatpush1.bf16.msra.mxu0 %v2288
        %2354 = vmatprep.subr.bf16.mxu0 %v2291
        %2355 = vmatpush1.bf16.msra.mxu0 %v2290
        %2356 = vmatprep.subr.bf16.mxu0 %v2293
        %2357 = vmatpush1.bf16.msra.mxu0 %v2292
        %2358 = vmatprep.subr.bf16.mxu0 %v2295
        %2359 = vmatpush1.bf16.msra.mxu0 %v2294
        %2360 = vmatprep.subr.bf16.mxu0 %v2297
        %2361 = vmatpush1.bf16.msra.mxu0 %v2296
        %2362 = vmatprep.subr.bf16.mxu0 %v2299
        %2363 = vmatpush1.bf16.msra.mxu0 %v2298
        %2364 = vmatprep.subr.bf16.mxu0 %v2301
        %2365 = vmatpush1.bf16.msra.mxu0 %v2300
        %2366 = vmatprep.subr.bf16.mxu0 %v2303
        %2367 = vmatpush1.bf16.msra.mxu0 %v2302
        %2368 = vmatprep.subr.bf16.mxu0 %v2305
        %2369 = vmatpush1.bf16.msra.mxu0 %v2304
        %2370 = vmatprep.subr.bf16.mxu0 %v2307
        %2371 = vmatpush1.bf16.msra.mxu0 %v2306
        %2372 = vmatprep.subr.bf16.mxu0 %v2309
        %2373 = vmatpush1.bf16.msra.mxu0 %v2308
        %2374 = vmatprep.subr.bf16.mxu0 %v2311
        %2375 = vmatpush1.bf16.msra.mxu0 %v2310
        %2376 = vmatprep.subr.bf16.mxu0 %v2313
        %2377 = vmatpush1.bf16.msra.mxu0 %v2312
        %2378 = vmatprep.subr.bf16.mxu0 %v2315
        %2379 = vmatpush1.bf16.msra.mxu0 %v2314
        %2380 = vmatprep.subr.bf16.mxu0 %v2317
        %2381 = vmatpush1.bf16.msra.mxu0 %v2316
        %2382 = vmatprep.mubr.bf16.mxu0 %v2187
        %2383 = vmatmul.mubr.bf16.gmra.mrb[0].mxu0 %v2175
        %v2384 = vpop.f32.mrb[0].mxu0
        %v2385 = vadd.f32 0.0, %v2384
        %v2386 = vpop.f32.mrb[0].mxu0
        %v2387 = vadd.f32 0.0, %v2386
        %v2388 = vpop.f32.mrb[0].mxu0
        %v2389 = vadd.f32 0.0, %v2388
        %v2390 = vpop.f32.mrb[0].mxu0
        %v2391 = vadd.f32 0.0, %v2390
        %2392 = vdwg.mxu0
        %v2425 = vunpack.c.l.b16 %v2097
        %v2426 = vunpack.c.h.b16 %v2097
        %v2427 = vunpack.c.l.b16 %v2098
        %v2428 = vunpack.c.h.b16 %v2098
        %v2429 = vunpack.c.l.b16 %v2099
        %v2430 = vunpack.c.h.b16 %v2099
        %v2431 = vunpack.c.l.b16 %v2100
        %v2432 = vunpack.c.h.b16 %v2100
        %v2433 = vunpack.c.l.b16 %v2101
        %v2434 = vunpack.c.h.b16 %v2101
        %v2435 = vunpack.c.l.b16 %v2102
        %v2436 = vunpack.c.h.b16 %v2102
        %v2437 = vunpack.c.l.b16 %v2103
        %v2438 = vunpack.c.h.b16 %v2103
        %v2439 = vunpack.c.l.b16 %v2104
        %v2440 = vunpack.c.h.b16 %v2104
        %v2441 = vunpack.c.l.b16 %v2105
        %v2442 = vunpack.c.h.b16 %v2105
        %v2443 = vunpack.c.l.b16 %v2106
        %v2444 = vunpack.c.h.b16 %v2106
        %v2445 = vunpack.c.l.b16 %v2107
        %v2446 = vunpack.c.h.b16 %v2107
        %v2447 = vunpack.c.l.b16 %v2108
        %v2448 = vunpack.c.h.b16 %v2108
        %v2449 = vunpack.c.l.b16 %v2109
        %v2450 = vunpack.c.h.b16 %v2109
        %v2451 = vunpack.c.l.b16 %v2110
        %v2452 = vunpack.c.h.b16 %v2110
        %v2453 = vunpack.c.l.b16 %v2111
        %v2454 = vunpack.c.h.b16 %v2111
        %v2455 = vunpack.c.l.b16 %v2112
        %v2456 = vunpack.c.h.b16 %v2112
        %v2457 = vunpack.c.l.b16 %v2113
        %v2458 = vunpack.c.h.b16 %v2113
        %v2459 = vunpack.c.l.b16 %v2114
        %v2460 = vunpack.c.h.b16 %v2114
        %v2461 = vunpack.c.l.b16 %v2115
        %v2462 = vunpack.c.h.b16 %v2115
        %v2463 = vunpack.c.l.b16 %v2116
        %v2464 = vunpack.c.h.b16 %v2116
        %v2465 = vunpack.c.l.b16 %v2117
        %v2466 = vunpack.c.h.b16 %v2117
        %v2467 = vunpack.c.l.b16 %v2118
        %v2468 = vunpack.c.h.b16 %v2118
        %v2469 = vunpack.c.l.b16 %v2119
        %v2470 = vunpack.c.h.b16 %v2119
        %v2471 = vunpack.c.l.b16 %v2120
        %v2472 = vunpack.c.h.b16 %v2120
        %v2473 = vunpack.c.l.b16 %v2121
        %v2474 = vunpack.c.h.b16 %v2121
        %v2475 = vunpack.c.l.b16 %v2122
        %v2476 = vunpack.c.h.b16 %v2122
        %v2477 = vunpack.c.l.b16 %v2123
        %v2478 = vunpack.c.h.b16 %v2123
        %v2479 = vunpack.c.l.b16 %v2124
        %v2480 = vunpack.c.h.b16 %v2124
        %v2481 = vunpack.c.l.b16 %v2125
        %v2482 = vunpack.c.h.b16 %v2125
        %v2483 = vunpack.c.l.b16 %v2126
        %v2484 = vunpack.c.h.b16 %v2126
        %v2485 = vunpack.c.l.b16 %v2127
        %v2486 = vunpack.c.h.b16 %v2127
        %v2487 = vunpack.c.l.b16 %v2128
        %v2488 = vunpack.c.h.b16 %v2128
        %v2489 = vpack.c.b16 %v2427, %v2425
        %v2490 = vpack.c.b16 %v2428, %v2426
        %v2491 = vpack.c.b16 %v2431, %v2429
        %v2492 = vpack.c.b16 %v2432, %v2430
        %v2493 = vpack.c.b16 %v2435, %v2433
        %v2494 = vpack.c.b16 %v2436, %v2434
        %v2495 = vpack.c.b16 %v2439, %v2437
        %v2496 = vpack.c.b16 %v2440, %v2438
        %v2497 = vpack.c.b16 %v2443, %v2441
        %v2498 = vpack.c.b16 %v2444, %v2442
        %v2499 = vpack.c.b16 %v2447, %v2445
        %v2500 = vpack.c.b16 %v2448, %v2446
        %v2501 = vpack.c.b16 %v2451, %v2449
        %v2502 = vpack.c.b16 %v2452, %v2450
        %v2503 = vpack.c.b16 %v2455, %v2453
        %v2504 = vpack.c.b16 %v2456, %v2454
        %v2505 = vpack.c.b16 %v2459, %v2457
        %v2506 = vpack.c.b16 %v2460, %v2458
        %v2507 = vpack.c.b16 %v2463, %v2461
        %v2508 = vpack.c.b16 %v2464, %v2462
        %v2509 = vpack.c.b16 %v2467, %v2465
        %v2510 = vpack.c.b16 %v2468, %v2466
        %v2511 = vpack.c.b16 %v2471, %v2469
        %v2512 = vpack.c.b16 %v2472, %v2470
        %v2513 = vpack.c.b16 %v2475, %v2473
        %v2514 = vpack.c.b16 %v2476, %v2474
        %v2515 = vpack.c.b16 %v2479, %v2477
        %v2516 = vpack.c.b16 %v2480, %v2478
        %v2517 = vpack.c.b16 %v2483, %v2481
        %v2518 = vpack.c.b16 %v2484, %v2482
        %v2519 = vpack.c.b16 %v2487, %v2485
        %v2520 = vpack.c.b16 %v2488, %v2486
        %2553 = vmatprep.subr.bf16.mxu0 %v2490
        %2554 = vmatpush1.bf16.msra.mxu0 %v2489
        %2555 = vmatprep.subr.bf16.mxu0 %v2492
        %2556 = vmatpush1.bf16.msra.mxu0 %v2491
        %2557 = vmatprep.subr.bf16.mxu0 %v2494
        %2558 = vmatpush1.bf16.msra.mxu0 %v2493
        %2559 = vmatprep.subr.bf16.mxu0 %v2496
        %2560 = vmatpush1.bf16.msra.mxu0 %v2495
        %2561 = vmatprep.subr.bf16.mxu0 %v2498
        %2562 = vmatpush1.bf16.msra.mxu0 %v2497
        %2563 = vmatprep.subr.bf16.mxu0 %v2500
        %2564 = vmatpush1.bf16.msra.mxu0 %v2499
        %2565 = vmatprep.subr.bf16.mxu0 %v2502
        %2566 = vmatpush1.bf16.msra.mxu0 %v2501
        %2567 = vmatprep.subr.bf16.mxu0 %v2504
        %2568 = vmatpush1.bf16.msra.mxu0 %v2503
        %2569 = vmatprep.subr.bf16.mxu0 %v2506
        %2570 = vmatpush1.bf16.msra.mxu0 %v2505
        %2571 = vmatprep.subr.bf16.mxu0 %v2508
        %2572 = vmatpush1.bf16.msra.mxu0 %v2507
        %2573 = vmatprep.subr.bf16.mxu0 %v2510
        %2574 = vmatpush1.bf16.msra.mxu0 %v2509
        %2575 = vmatprep.subr.bf16.mxu0 %v2512
        %2576 = vmatpush1.bf16.msra.mxu0 %v2511
        %2577 = vmatprep.subr.bf16.mxu0 %v2514
        %2578 = vmatpush1.bf16.msra.mxu0 %v2513
        %2579 = vmatprep.subr.bf16.mxu0 %v2516
        %2580 = vmatpush1.bf16.msra.mxu0 %v2515
        %2581 = vmatprep.subr.bf16.mxu0 %v2518
        %2582 = vmatpush1.bf16.msra.mxu0 %v2517
        %2583 = vmatprep.subr.bf16.mxu0 %v2520
        %2584 = vmatpush1.bf16.msra.mxu0 %v2519
        %2585 = vmatprep.mubr.bf16.mxu0 %v2096
        %2586 = vmatmul.mubr.bf16.gmra.mrb[0].mxu0 %v2095
        %v2587 = vpop.f32.mrb[0].mxu0
        %v2588 = vadd.f32 %v2385, %v2587
        %v2589 = vpop.f32.mrb[0].mxu0
        %v2590 = vadd.f32 %v2387, %v2589
        %v2591 = vpop.f32.mrb[0].mxu0
        %v2592 = vadd.f32 %v2389, %v2591
        %v2593 = vpop.f32.mrb[0].mxu0
        %v2594 = vadd.f32 %v2391, %v2593
        %2595 = vdwg.mxu0
        %s2596 = scalar_lea.vmem [#allocation8], 512
        %v2597 = vld [vmem:[%s2596] sm:$0xff]
        %v2598 = vld [vmem:[%s2596 + $0x8] sm:$0xff]
        %v2599 = vld [vmem:[%s2596 + $0x10] sm:$0xff]
        %v2600 = vld [vmem:[%s2596 + $0x18] sm:$0xff]
        %v2601 = vld [vmem:[%s2596 + $0x20] sm:$0xff]
        %v2602 = vld [vmem:[%s2596 + $0x28] sm:$0xff]
        %v2603 = vld [vmem:[%s2596 + $0x30] sm:$0xff]
        %v2604 = vld [vmem:[%s2596 + $0x38] sm:$0xff]
        %v2605 = vld [vmem:[%s2596 + $0x40] sm:$0xff]
        %v2606 = vld [vmem:[%s2596 + $0x48] sm:$0xff]
        %v2607 = vld [vmem:[%s2596 + $0x50] sm:$0xff]
        %v2608 = vld [vmem:[%s2596 + $0x58] sm:$0xff]
        %v2609 = vld [vmem:[%s2596 + $0x60] sm:$0xff]
        %v2610 = vld [vmem:[%s2596 + $0x68] sm:$0xff]
        %v2611 = vld [vmem:[%s2596 + $0x70] sm:$0xff]
        %v2612 = vld [vmem:[%s2596 + $0x78] sm:$0xff]
        %v2613 = vld [vmem:[%s2596 + $0x80] sm:$0xff]
        %v2614 = vld [vmem:[%s2596 + $0x88] sm:$0xff]
        %v2615 = vld [vmem:[%s2596 + $0x90] sm:$0xff]
        %v2616 = vld [vmem:[%s2596 + $0x98] sm:$0xff]
        %v2617 = vld [vmem:[%s2596 + $0xa0] sm:$0xff]
        %v2618 = vld [vmem:[%s2596 + $0xa8] sm:$0xff]
        %v2619 = vld [vmem:[%s2596 + $0xb0] sm:$0xff]
        %v2620 = vld [vmem:[%s2596 + $0xb8] sm:$0xff]
        %v2621 = vld [vmem:[%s2596 + $0xc0] sm:$0xff]
        %v2622 = vld [vmem:[%s2596 + $0xc8] sm:$0xff]
        %v2623 = vld [vmem:[%s2596 + $0xd0] sm:$0xff]
        %v2624 = vld [vmem:[%s2596 + $0xd8] sm:$0xff]
        %v2625 = vld [vmem:[%s2596 + $0xe0] sm:$0xff]
        %v2626 = vld [vmem:[%s2596 + $0xe8] sm:$0xff]
        %v2627 = vld [vmem:[%s2596 + $0xf0] sm:$0xff]
        %v2628 = vld [vmem:[%s2596 + $0xf8] sm:$0xff]
        %v2633 = vrot.slane %v2095, 1
        %v2634 = vrot.slane %v2129, 1
        %v2635 = vsel %vm883, %v2633, %v2634
        %v2636 = vrot.slane %v2096, 1
        %v2637 = vrot.slane %v2130, 1
        %v2638 = vsel %vm883, %v2636, %v2637
        %v2673 = vunpack.c.l.b16 %v2597
        %v2674 = vunpack.c.h.b16 %v2597
        %v2675 = vunpack.c.l.b16 %v2598
        %v2676 = vunpack.c.h.b16 %v2598
        %v2677 = vunpack.c.l.b16 %v2599
        %v2678 = vunpack.c.h.b16 %v2599
        %v2679 = vunpack.c.l.b16 %v2600
        %v2680 = vunpack.c.h.b16 %v2600
        %v2681 = vunpack.c.l.b16 %v2601
        %v2682 = vunpack.c.h.b16 %v2601
        %v2683 = vunpack.c.l.b16 %v2602
        %v2684 = vunpack.c.h.b16 %v2602
        %v2685 = vunpack.c.l.b16 %v2603
        %v2686 = vunpack.c.h.b16 %v2603
        %v2687 = vunpack.c.l.b16 %v2604
        %v2688 = vunpack.c.h.b16 %v2604
        %v2689 = vunpack.c.l.b16 %v2605
        %v2690 = vunpack.c.h.b16 %v2605
        %v2691 = vunpack.c.l.b16 %v2606
        %v2692 = vunpack.c.h.b16 %v2606
        %v2693 = vunpack.c.l.b16 %v2607
        %v2694 = vunpack.c.h.b16 %v2607
        %v2695 = vunpack.c.l.b16 %v2608
        %v2696 = vunpack.c.h.b16 %v2608
        %v2697 = vunpack.c.l.b16 %v2609
        %v2698 = vunpack.c.h.b16 %v2609
        %v2699 = vunpack.c.l.b16 %v2610
        %v2700 = vunpack.c.h.b16 %v2610
        %v2701 = vunpack.c.l.b16 %v2611
        %v2702 = vunpack.c.h.b16 %v2611
        %v2703 = vunpack.c.l.b16 %v2612
        %v2704 = vunpack.c.h.b16 %v2612
        %v2705 = vunpack.c.l.b16 %v2613
        %v2706 = vunpack.c.h.b16 %v2613
        %v2707 = vunpack.c.l.b16 %v2614
        %v2708 = vunpack.c.h.b16 %v2614
        %v2709 = vunpack.c.l.b16 %v2615
        %v2710 = vunpack.c.h.b16 %v2615
        %v2711 = vunpack.c.l.b16 %v2616
        %v2712 = vunpack.c.h.b16 %v2616
        %v2713 = vunpack.c.l.b16 %v2617
        %v2714 = vunpack.c.h.b16 %v2617
        %v2715 = vunpack.c.l.b16 %v2618
        %v2716 = vunpack.c.h.b16 %v2618
        %v2717 = vunpack.c.l.b16 %v2619
        %v2718 = vunpack.c.h.b16 %v2619
        %v2719 = vunpack.c.l.b16 %v2620
        %v2720 = vunpack.c.h.b16 %v2620
        %v2721 = vunpack.c.l.b16 %v2621
        %v2722 = vunpack.c.h.b16 %v2621
        %v2723 = vunpack.c.l.b16 %v2622
        %v2724 = vunpack.c.h.b16 %v2622
        %v2725 = vunpack.c.l.b16 %v2623
        %v2726 = vunpack.c.h.b16 %v2623
        %v2727 = vunpack.c.l.b16 %v2624
        %v2728 = vunpack.c.h.b16 %v2624
        %v2729 = vunpack.c.l.b16 %v2625
        %v2730 = vunpack.c.h.b16 %v2625
        %v2731 = vunpack.c.l.b16 %v2626
        %v2732 = vunpack.c.h.b16 %v2626
        %v2733 = vunpack.c.l.b16 %v2627
        %v2734 = vunpack.c.h.b16 %v2627
        %v2735 = vunpack.c.l.b16 %v2628
        %v2736 = vunpack.c.h.b16 %v2628
        %v2737 = vpack.c.b16 %v2675, %v2673
        %v2738 = vpack.c.b16 %v2676, %v2674
        %v2739 = vpack.c.b16 %v2679, %v2677
        %v2740 = vpack.c.b16 %v2680, %v2678
        %v2741 = vpack.c.b16 %v2683, %v2681
        %v2742 = vpack.c.b16 %v2684, %v2682
        %v2743 = vpack.c.b16 %v2687, %v2685
        %v2744 = vpack.c.b16 %v2688, %v2686
        %v2745 = vpack.c.b16 %v2691, %v2689
        %v2746 = vpack.c.b16 %v2692, %v2690
        %v2747 = vpack.c.b16 %v2695, %v2693
        %v2748 = vpack.c.b16 %v2696, %v2694
        %v2749 = vpack.c.b16 %v2699, %v2697
        %v2750 = vpack.c.b16 %v2700, %v2698
        %v2751 = vpack.c.b16 %v2703, %v2701
        %v2752 = vpack.c.b16 %v2704, %v2702
        %v2753 = vpack.c.b16 %v2707, %v2705
        %v2754 = vpack.c.b16 %v2708, %v2706
        %v2755 = vpack.c.b16 %v2711, %v2709
        %v2756 = vpack.c.b16 %v2712, %v2710
        %v2757 = vpack.c.b16 %v2715, %v2713
        %v2758 = vpack.c.b16 %v2716, %v2714
        %v2759 = vpack.c.b16 %v2719, %v2717
        %v2760 = vpack.c.b16 %v2720, %v2718
        %v2761 = vpack.c.b16 %v2723, %v2721
        %v2762 = vpack.c.b16 %v2724, %v2722
        %v2763 = vpack.c.b16 %v2727, %v2725
        %v2764 = vpack.c.b16 %v2728, %v2726
        %v2765 = vpack.c.b16 %v2731, %v2729
        %v2766 = vpack.c.b16 %v2732, %v2730
        %v2767 = vpack.c.b16 %v2735, %v2733
        %v2768 = vpack.c.b16 %v2736, %v2734
        %2801 = vmatprep.subr.bf16.mxu0 %v2738
        %2802 = vmatpush1.bf16.msra.mxu0 %v2737
        %2803 = vmatprep.subr.bf16.mxu0 %v2740
        %2804 = vmatpush1.bf16.msra.mxu0 %v2739
        %2805 = vmatprep.subr.bf16.mxu0 %v2742
        %2806 = vmatpush1.bf16.msra.mxu0 %v2741
        %2807 = vmatprep.subr.bf16.mxu0 %v2744
        %2808 = vmatpush1.bf16.msra.mxu0 %v2743
        %2809 = vmatprep.subr.bf16.mxu0 %v2746
        %2810 = vmatpush1.bf16.msra.mxu0 %v2745
        %2811 = vmatprep.subr.bf16.mxu0 %v2748
        %2812 = vmatpush1.bf16.msra.mxu0 %v2747
        %2813 = vmatprep.subr.bf16.mxu0 %v2750
        %2814 = vmatpush1.bf16.msra.mxu0 %v2749
        %2815 = vmatprep.subr.bf16.mxu0 %v2752
        %2816 = vmatpush1.bf16.msra.mxu0 %v2751
        %2817 = vmatprep.subr.bf16.mxu0 %v2754
        %2818 = vmatpush1.bf16.msra.mxu0 %v2753
        %2819 = vmatprep.subr.bf16.mxu0 %v2756
        %2820 = vmatpush1.bf16.msra.mxu0 %v2755
        %2821 = vmatprep.subr.bf16.mxu0 %v2758
        %2822 = vmatpush1.bf16.msra.mxu0 %v2757
        %2823 = vmatprep.subr.bf16.mxu0 %v2760
        %2824 = vmatpush1.bf16.msra.mxu0 %v2759
        %2825 = vmatprep.subr.bf16.mxu0 %v2762
        %2826 = vmatpush1.bf16.msra.mxu0 %v2761
        %2827 = vmatprep.subr.bf16.mxu0 %v2764
        %2828 = vmatpush1.bf16.msra.mxu0 %v2763
        %2829 = vmatprep.subr.bf16.mxu0 %v2766
        %2830 = vmatpush1.bf16.msra.mxu0 %v2765
        %2831 = vmatprep.subr.bf16.mxu0 %v2768
        %2832 = vmatpush1.bf16.msra.mxu0 %v2767
        %2833 = vmatprep.mubr.bf16.mxu0 %v2638
        %2834 = vmatmul.mubr.bf16.gmra.mrb[0].mxu0 %v2635
        %v2835 = vpop.f32.mrb[0].mxu0
        %v2836 = vadd.f32 0.0, %v2835
        %v2837 = vpop.f32.mrb[0].mxu0
        %v2838 = vadd.f32 0.0, %v2837
        %v2839 = vpop.f32.mrb[0].mxu0
        %v2840 = vadd.f32 0.0, %v2839
        %v2841 = vpop.f32.mrb[0].mxu0
        %v2842 = vadd.f32 0.0, %v2841
        %2843 = vdwg.mxu0
        %v2844 = vadd.f32 %v2588, %v2836
        %v2845 = vadd.f32 %v2590, %v2838
        %v2846 = vadd.f32 %v2592, %v2840
        %v2847 = vadd.f32 %v2594, %v2842
        %v2848 = vld [vmem:[%s9] sm:$0x3]
        %v2850 = vlaneseq
        %v2851 = vshrl.u32 %v2850, 7
        %v2852 = vsub.s32 0, %v2851
        %v2853 = vrot.slane %v2848, %v2852
        %v2854 = vlaneseq
        %v2855 = vshrl.u32 %v2854, 7
        %v2856 = vsub.s32 1, %v2855
        %v2857 = vrot.slane %v2848, %v2856
        %v2860 = vadd.f32 %v2844, %v2853
        %v2861 = vadd.f32 %v2845, %v2857
        %v2862 = vadd.f32 %v2846, %v2853
        %v2863 = vadd.f32 %v2847, %v2857
        %v2864 = vadd.f32 %v2860, %v1584
        %v2865 = vadd.f32 %v2861, %v1586
        %v2866 = vadd.f32 %v2862, %v1588
        %v2867 = vadd.f32 %v2863, %v1590
        %vm2868 = vcmp.ge.f32.partialorder %v2864, 0.0
        %vm2869 = vcmp.ge.f32.partialorder %v2865, 0.0
        %vm2870 = vcmp.ge.f32.partialorder %v2866, 0.0
        %vm2871 = vcmp.ge.f32.partialorder %v2867, 0.0
        %v2872 = vmul.f32 %v2864, 0.2
        %v2873 = vmul.f32 %v2865, 0.2
        %v2874 = vmul.f32 %v2866, 0.2
        %v2875 = vmul.f32 %v2867, 0.2
        %v2876 = vsel %vm2868, %v2864, %v2872
        %v2877 = vsel %vm2869, %v2865, %v2873
        %v2878 = vsel %vm2870, %v2866, %v2874
        %v2879 = vsel %vm2871, %v2867, %v2875
        %v2880 = vld [vmem:[%s10] sm:$0xf]
        %v2881 = vpack.c.bf16 %v2878, %v2876
        %v2882 = vpack.c.bf16 %v2879, %v2877
        %vm2883 = vcmask 130048
        %v2885 = vsel %vm2883, %v2880, 0
        %2887 = vmatprep.subr.bf16.mxu0 %v2882
        %2888 = vmatpush1.bf16.msra.mxu0 %v2881
        %2889 = vmatprep.subr.bf16.mxu0 0
        %2890 = vmatpush1.bf16.msra.mxu0 0
        %2891 = vmatprep.subr.bf16.mxu0 0
        %2892 = vmatpush1.bf16.msra.mxu0 0
        %2893 = vmatprep.subr.bf16.mxu0 0
        %2894 = vmatpush1.bf16.msra.mxu0 0
        %2895 = vmatprep.subr.bf16.mxu0 0
        %2896 = vmatpush1.bf16.msra.mxu0 0
        %2897 = vmatprep.subr.bf16.mxu0 0
        %2898 = vmatpush1.bf16.msra.mxu0 0
        %2899 = vmatprep.subr.bf16.mxu0 0
        %2900 = vmatpush1.bf16.msra.mxu0 0
        %2901 = vmatprep.subr.bf16.mxu0 0
        %2902 = vmatpush1.bf16.msra.mxu0 0
        %2903 = vmatprep.subr.bf16.mxu0 0
        %2904 = vmatpush1.bf16.msra.mxu0 0
        %2905 = vmatprep.subr.bf16.mxu0 0
        %2906 = vmatpush1.bf16.msra.mxu0 0
        %2907 = vmatprep.subr.bf16.mxu0 0
        %2908 = vmatpush1.bf16.msra.mxu0 0
        %2909 = vmatprep.subr.bf16.mxu0 0
        %2910 = vmatpush1.bf16.msra.mxu0 0
        %2911 = vmatprep.subr.bf16.mxu0 0
        %2912 = vmatpush1.bf16.msra.mxu0 0
        %2913 = vmatprep.subr.bf16.mxu0 0
        %2914 = vmatpush1.bf16.msra.mxu0 0
        %2915 = vmatprep.subr.bf16.mxu0 0
        %2916 = vmatpush1.bf16.msra.mxu0 0
        %2917 = vmatprep.subr.bf16.mxu0 0
        %2918 = vmatpush1.bf16.msra.mxu0 0
        %2919 = vmatprep.mubr.bf16.mxu0 0
        %2920 = vmatmul.mubr.bf16.gmra.mrb[0].mxu0 %v2885
        %v2921 = vpop.f32.mrb[0].mxu0
        %v2922 = vadd.f32 0.0, %v2921
        %v2923 = vpop.f32.mrb[0].mxu0
        %v2924 = vadd.f32 0.0, %v2923
        %v2925 = vpop.f32.mrb[0].mxu0
        %v2926 = vpop.f32.mrb[0].mxu0
        %2927 = vdwg.mxu0
        %v2928 = vpack.c.bf16 %v2922, %v2922
        %v2929 = vpack.c.bf16 %v2924, %v2924
        %v2930 = vld [vmem:[#allocation10] sm:$0xf]
        %v2931 = vld [vmem:[#allocation10 + $0x4] sm:$0xf]
        %v2932 = vld [vmem:[#allocation10 + $0x8] sm:$0xf]
        %v2933 = vld [vmem:[#allocation10 + $0xc] sm:$0xf]
        %v2934 = vld [vmem:[#allocation10 + $0x10] sm:$0xf]
        %v2935 = vld [vmem:[#allocation10 + $0x14] sm:$0xf]
        %v2936 = vld [vmem:[#allocation10 + $0x18] sm:$0xf]
        %v2937 = vld [vmem:[#allocation10 + $0x1c] sm:$0xf]
        %v2938 = vld [vmem:[#allocation10 + $0x20] sm:$0xf]
        %v2939 = vld [vmem:[#allocation10 + $0x24] sm:$0xf]
        %v2940 = vld [vmem:[#allocation10 + $0x28] sm:$0xf]
        %v2941 = vld [vmem:[#allocation10 + $0x2c] sm:$0xf]
        %v2942 = vld [vmem:[#allocation10 + $0x30] sm:$0xf]
        %v2943 = vld [vmem:[#allocation10 + $0x34] sm:$0xf]
        %v2944 = vld [vmem:[#allocation10 + $0x38] sm:$0xf]
        %v2945 = vld [vmem:[#allocation10 + $0x3c] sm:$0xf]
        %v2946 = vld [vmem:[#allocation10 + $0x40] sm:$0xf]
        %v2947 = vld [vmem:[#allocation10 + $0x44] sm:$0xf]
        %v2948 = vld [vmem:[#allocation10 + $0x48] sm:$0xf]
        %v2949 = vld [vmem:[#allocation10 + $0x4c] sm:$0xf]
        %v2950 = vld [vmem:[#allocation10 + $0x50] sm:$0xf]
        %v2951 = vld [vmem:[#allocation10 + $0x54] sm:$0xf]
        %v2952 = vld [vmem:[#allocation10 + $0x58] sm:$0xf]
        %v2953 = vld [vmem:[#allocation10 + $0x5c] sm:$0xf]
        %v2954 = vld [vmem:[#allocation10 + $0x60] sm:$0xf]
        %v2955 = vld [vmem:[#allocation10 + $0x64] sm:$0xf]
        %v2956 = vld [vmem:[#allocation10 + $0x68] sm:$0xf]
        %v2957 = vld [vmem:[#allocation10 + $0x6c] sm:$0xf]
        %v2958 = vld [vmem:[#allocation10 + $0x70] sm:$0xf]
        %v2959 = vld [vmem:[#allocation10 + $0x74] sm:$0xf]
        %v2960 = vld [vmem:[#allocation10 + $0x78] sm:$0xf]
        %v2961 = vld [vmem:[#allocation10 + $0x7c] sm:$0xf]
        %v2994 = vunpack.c.l.b16 %v2930
        %v2995 = vunpack.c.l.b16 %v2931
        %v2996 = vunpack.c.l.b16 %v2932
        %v2997 = vunpack.c.l.b16 %v2933
        %v2998 = vunpack.c.l.b16 %v2934
        %v2999 = vunpack.c.l.b16 %v2935
        %v3000 = vunpack.c.l.b16 %v2936
        %v3001 = vunpack.c.l.b16 %v2937
        %v3002 = vunpack.c.l.b16 %v2938
        %v3003 = vunpack.c.l.b16 %v2939
        %v3004 = vunpack.c.l.b16 %v2940
        %v3005 = vunpack.c.l.b16 %v2941
        %v3006 = vunpack.c.l.b16 %v2942
        %v3007 = vunpack.c.l.b16 %v2943
        %v3008 = vunpack.c.l.b16 %v2944
        %v3009 = vunpack.c.l.b16 %v2945
        %v3010 = vunpack.c.l.b16 %v2946
        %v3011 = vunpack.c.l.b16 %v2947
        %v3012 = vunpack.c.l.b16 %v2948
        %v3013 = vunpack.c.l.b16 %v2949
        %v3014 = vunpack.c.l.b16 %v2950
        %v3015 = vunpack.c.l.b16 %v2951
        %v3016 = vunpack.c.l.b16 %v2952
        %v3017 = vunpack.c.l.b16 %v2953
        %v3018 = vunpack.c.l.b16 %v2954
        %v3019 = vunpack.c.l.b16 %v2955
        %v3020 = vunpack.c.l.b16 %v2956
        %v3021 = vunpack.c.l.b16 %v2957
        %v3022 = vunpack.c.l.b16 %v2958
        %v3023 = vunpack.c.l.b16 %v2959
        %v3024 = vunpack.c.l.b16 %v2960
        %v3025 = vunpack.c.l.b16 %v2961
        %v3026 = vpack.c.b16 %v2995, %v2994
        %v3027 = vpack.c.b16 %v2997, %v2996
        %v3028 = vpack.c.b16 %v2999, %v2998
        %v3029 = vpack.c.b16 %v3001, %v3000
        %v3030 = vpack.c.b16 %v3003, %v3002
        %v3031 = vpack.c.b16 %v3005, %v3004
        %v3032 = vpack.c.b16 %v3007, %v3006
        %v3033 = vpack.c.b16 %v3009, %v3008
        %v3034 = vpack.c.b16 %v3011, %v3010
        %v3035 = vpack.c.b16 %v3013, %v3012
        %v3036 = vpack.c.b16 %v3015, %v3014
        %v3037 = vpack.c.b16 %v3017, %v3016
        %v3038 = vpack.c.b16 %v3019, %v3018
        %v3039 = vpack.c.b16 %v3021, %v3020
        %v3040 = vpack.c.b16 %v3023, %v3022
        %v3041 = vpack.c.b16 %v3025, %v3024
        %3058 = vmatprep.subr.bf16.mxu0 0
        %3059 = vmatpush1.bf16.msra.mxu0 %v3026
        %3060 = vmatprep.subr.bf16.mxu0 0
        %3061 = vmatpush1.bf16.msra.mxu0 %v3027
        %3062 = vmatprep.subr.bf16.mxu0 0
        %3063 = vmatpush1.bf16.msra.mxu0 %v3028
        %3064 = vmatprep.subr.bf16.mxu0 0
        %3065 = vmatpush1.bf16.msra.mxu0 %v3029
        %3066 = vmatprep.subr.bf16.mxu0 0
        %3067 = vmatpush1.bf16.msra.mxu0 %v3030
        %3068 = vmatprep.subr.bf16.mxu0 0
        %3069 = vmatpush1.bf16.msra.mxu0 %v3031
        %3070 = vmatprep.subr.bf16.mxu0 0
        %3071 = vmatpush1.bf16.msra.mxu0 %v3032
        %3072 = vmatprep.subr.bf16.mxu0 0
        %3073 = vmatpush1.bf16.msra.mxu0 %v3033
        %3074 = vmatprep.subr.bf16.mxu0 0
        %3075 = vmatpush1.bf16.msra.mxu0 %v3034
        %3076 = vmatprep.subr.bf16.mxu0 0
        %3077 = vmatpush1.bf16.msra.mxu0 %v3035
        %3078 = vmatprep.subr.bf16.mxu0 0
        %3079 = vmatpush1.bf16.msra.mxu0 %v3036
        %3080 = vmatprep.subr.bf16.mxu0 0
        %3081 = vmatpush1.bf16.msra.mxu0 %v3037
        %3082 = vmatprep.subr.bf16.mxu0 0
        %3083 = vmatpush1.bf16.msra.mxu0 %v3038
        %3084 = vmatprep.subr.bf16.mxu0 0
        %3085 = vmatpush1.bf16.msra.mxu0 %v3039
        %3086 = vmatprep.subr.bf16.mxu0 0
        %3087 = vmatpush1.bf16.msra.mxu0 %v3040
        %3088 = vmatprep.subr.bf16.mxu0 0
        %3089 = vmatpush1.bf16.msra.mxu0 %v3041
        %3090 = vmatprep.mubr.bf16.mxu0 %v2929
        %3091 = vmatmul.mubr.bf16.gmra.mrb[0].mxu0 %v2928
        %v3092 = vpop.f32.mrb[0].mxu0
        %v3093 = vadd.f32 0.0, %v3092
        %v3094 = vpop.f32.mrb[0].mxu0
        %v3095 = vpop.f32.mrb[0].mxu0
        %v3096 = vpop.f32.mrb[0].mxu0
        %3097 = vdwg.mxu0
        %v3099 = vrot.slane %v3093, 7
        %v3101 = vsel %vm1594, 0.0, %v3099
        %v3102 = vsel %vm1594, %v3099, 0.0
        %v3103 = vpack.c.bf16 %v3101, %v3101
        %v3104 = vld [vmem:[%s12] sm:$0xf]
        %v3105 = vld [vmem:[%s12 + $0x4] sm:$0xf]
        %v3106 = vld [vmem:[%s12 + $0x8] sm:$0xf]
        %v3107 = vld [vmem:[%s12 + $0xc] sm:$0xf]
        %v3108 = vld [vmem:[%s12 + $0x10] sm:$0xf]
        %v3109 = vld [vmem:[%s12 + $0x14] sm:$0xf]
        %v3110 = vld [vmem:[%s12 + $0x18] sm:$0xf]
        %v3111 = vld [vmem:[%s12 + $0x1c] sm:$0xf]
        %v3112 = vld [vmem:[%s12 + $0x20] sm:$0xf]
        %v3113 = vld [vmem:[%s12 + $0x24] sm:$0xf]
        %v3114 = vld [vmem:[%s12 + $0x28] sm:$0xf]
        %v3115 = vld [vmem:[%s12 + $0x2c] sm:$0xf]
        %v3116 = vld [vmem:[%s12 + $0x30] sm:$0xf]
        %v3117 = vld [vmem:[%s12 + $0x34] sm:$0xf]
        %v3118 = vld [vmem:[%s12 + $0x38] sm:$0xf]
        %v3119 = vld [vmem:[%s12 + $0x3c] sm:$0xf]
        %v3120 = vpack.c.bf16 %v3102, %v3101
        %s3121 = scalar_lea.vmem %s12, 64
        %v3122 = vld [vmem:[%s3121] sm:$0xf]
        %v3123 = vld [vmem:[%s3121 + $0x4] sm:$0xf]
        %v3124 = vld [vmem:[%s3121 + $0x8] sm:$0xf]
        %v3125 = vld [vmem:[%s3121 + $0xc] sm:$0xf]
        %v3126 = vld [vmem:[%s3121 + $0x10] sm:$0xf]
        %v3127 = vld [vmem:[%s3121 + $0x14] sm:$0xf]
        %v3128 = vld [vmem:[%s3121 + $0x18] sm:$0xf]
        %v3129 = vld [vmem:[%s3121 + $0x1c] sm:$0xf]
        %v3130 = vld [vmem:[%s3121 + $0x20] sm:$0xf]
        %v3131 = vld [vmem:[%s3121 + $0x24] sm:$0xf]
        %v3132 = vld [vmem:[%s3121 + $0x28] sm:$0xf]
        %v3133 = vld [vmem:[%s3121 + $0x2c] sm:$0xf]
        %v3134 = vld [vmem:[%s3121 + $0x30] sm:$0xf]
        %v3135 = vld [vmem:[%s3121 + $0x34] sm:$0xf]
        %v3136 = vld [vmem:[%s3121 + $0x38] sm:$0xf]
        %v3137 = vld [vmem:[%s3121 + $0x3c] sm:$0xf]
        %v3139 = vshrl.u32 %v3120, 16
        %v3141 = vshll.u32 %v3120, 16
        %v3143 = vrot.slane %v3141, 1
        %v3144 = vor.u32 %v3139, %v3143
        %v3162 = vunpack.c.l.b16 %v3122
        %v3163 = vunpack.c.l.b16 %v3123
        %v3164 = vunpack.c.l.b16 %v3124
        %v3165 = vunpack.c.l.b16 %v3125
        %v3166 = vunpack.c.l.b16 %v3126
        %v3167 = vunpack.c.l.b16 %v3127
        %v3168 = vunpack.c.l.b16 %v3128
        %v3169 = vunpack.c.l.b16 %v3129
        %v3170 = vunpack.c.l.b16 %v3130
        %v3171 = vunpack.c.l.b16 %v3131
        %v3172 = vunpack.c.l.b16 %v3132
        %v3173 = vunpack.c.l.b16 %v3133
        %v3174 = vunpack.c.l.b16 %v3134
        %v3175 = vunpack.c.l.b16 %v3135
        %v3176 = vunpack.c.l.b16 %v3136
        %v3177 = vunpack.c.l.b16 %v3137
        %v3178 = vpack.c.b16 %v3163, %v3162
        %v3179 = vpack.c.b16 %v3165, %v3164
        %v3180 = vpack.c.b16 %v3167, %v3166
        %v3181 = vpack.c.b16 %v3169, %v3168
        %v3182 = vpack.c.b16 %v3171, %v3170
        %v3183 = vpack.c.b16 %v3173, %v3172
        %v3184 = vpack.c.b16 %v3175, %v3174
        %v3185 = vpack.c.b16 %v3177, %v3176
        %3194 = vmatprep.subr.bf16.mxu0 0
        %3195 = vmatpush1.bf16.msra.mxu0 %v3178
        %3196 = vmatprep.subr.bf16.mxu0 0
        %3197 = vmatpush1.bf16.msra.mxu0 %v3179
        %3198 = vmatprep.subr.bf16.mxu0 0
        %3199 = vmatpush1.bf16.msra.mxu0 %v3180
        %3200 = vmatprep.subr.bf16.mxu0 0
        %3201 = vmatpush1.bf16.msra.mxu0 %v3181
        %3202 = vmatprep.subr.bf16.mxu0 0
        %3203 = vmatpush1.bf16.msra.mxu0 %v3182
        %3204 = vmatprep.subr.bf16.mxu0 0
        %3205 = vmatpush1.bf16.msra.mxu0 %v3183
        %3206 = vmatprep.subr.bf16.mxu0 0
        %3207 = vmatpush1.bf16.msra.mxu0 %v3184
        %3208 = vmatprep.subr.bf16.mxu0 0
        %3209 = vmatpush1.bf16.msra.mxu0 %v3185
        %3210 = vmatprep.subr.bf16.mxu0 0
        %3211 = vmatpush1.bf16.msra.mxu0 0
        %3212 = vmatprep.subr.bf16.mxu0 0
        %3213 = vmatpush1.bf16.msra.mxu0 0
        %3214 = vmatprep.subr.bf16.mxu0 0
        %3215 = vmatpush1.bf16.msra.mxu0 0
        %3216 = vmatprep.subr.bf16.mxu0 0
        %3217 = vmatpush1.bf16.msra.mxu0 0
        %3218 = vmatprep.subr.bf16.mxu0 0
        %3219 = vmatpush1.bf16.msra.mxu0 0
        %3220 = vmatprep.subr.bf16.mxu0 0
        %3221 = vmatpush1.bf16.msra.mxu0 0
        %3222 = vmatprep.subr.bf16.mxu0 0
        %3223 = vmatpush1.bf16.msra.mxu0 0
        %3224 = vmatprep.subr.bf16.mxu0 0
        %3225 = vmatpush1.bf16.msra.mxu0 0
        %3226 = vmatprep.mubr.bf16.mxu0 0
        %3227 = vmatmul.mubr.bf16.gmra.mrb[0].mxu0 %v3144
        %v3228 = vpop.f32.mrb[0].mxu0
        %v3229 = vadd.f32 0.0, %v3228
        %v3230 = vpop.f32.mrb[0].mxu0
        %v3231 = vpop.f32.mrb[0].mxu0
        %v3232 = vpop.f32.mrb[0].mxu0
        %3233 = vdwg.mxu0
        %v3250 = vunpack.c.l.b16 %v3104
        %v3251 = vunpack.c.l.b16 %v3105
        %v3252 = vunpack.c.l.b16 %v3106
        %v3253 = vunpack.c.l.b16 %v3107
        %v3254 = vunpack.c.l.b16 %v3108
        %v3255 = vunpack.c.l.b16 %v3109
        %v3256 = vunpack.c.l.b16 %v3110
        %v3257 = vunpack.c.l.b16 %v3111
        %v3258 = vunpack.c.l.b16 %v3112
        %v3259 = vunpack.c.l.b16 %v3113
        %v3260 = vunpack.c.l.b16 %v3114
        %v3261 = vunpack.c.l.b16 %v3115
        %v3262 = vunpack.c.l.b16 %v3116
        %v3263 = vunpack.c.l.b16 %v3117
        %v3264 = vunpack.c.l.b16 %v3118
        %v3265 = vunpack.c.l.b16 %v3119
        %v3266 = vpack.c.b16 %v3251, %v3250
        %v3267 = vpack.c.b16 %v3253, %v3252
        %v3268 = vpack.c.b16 %v3255, %v3254
        %v3269 = vpack.c.b16 %v3257, %v3256
        %v3270 = vpack.c.b16 %v3259, %v3258
        %v3271 = vpack.c.b16 %v3261, %v3260
        %v3272 = vpack.c.b16 %v3263, %v3262
        %v3273 = vpack.c.b16 %v3265, %v3264
        %3282 = vmatprep.subr.bf16.mxu0 0
        %3283 = vmatpush1.bf16.msra.mxu0 %v3266
        %3284 = vmatprep.subr.bf16.mxu0 0
        %3285 = vmatpush1.bf16.msra.mxu0 %v3267
        %3286 = vmatprep.subr.bf16.mxu0 0
        %3287 = vmatpush1.bf16.msra.mxu0 %v3268
        %3288 = vmatprep.subr.bf16.mxu0 0
        %3289 = vmatpush1.bf16.msra.mxu0 %v3269
        %3290 = vmatprep.subr.bf16.mxu0 0
        %3291 = vmatpush1.bf16.msra.mxu0 %v3270
        %3292 = vmatprep.subr.bf16.mxu0 0
        %3293 = vmatpush1.bf16.msra.mxu0 %v3271
        %3294 = vmatprep.subr.bf16.mxu0 0
        %3295 = vmatpush1.bf16.msra.mxu0 %v3272
        %3296 = vmatprep.subr.bf16.mxu0 0
        %3297 = vmatpush1.bf16.msra.mxu0 %v3273
        %3298 = vmatprep.subr.bf16.mxu0 0
        %3299 = vmatpush1.bf16.msra.mxu0 0
        %3300 = vmatprep.subr.bf16.mxu0 0
        %3301 = vmatpush1.bf16.msra.mxu0 0
        %3302 = vmatprep.subr.bf16.mxu0 0
        %3303 = vmatpush1.bf16.msra.mxu0 0
        %3304 = vmatprep.subr.bf16.mxu0 0
        %3305 = vmatpush1.bf16.msra.mxu0 0
        %3306 = vmatprep.subr.bf16.mxu0 0
        %3307 = vmatpush1.bf16.msra.mxu0 0
        %3308 = vmatprep.subr.bf16.mxu0 0
        %3309 = vmatpush1.bf16.msra.mxu0 0
        %3310 = vmatprep.subr.bf16.mxu0 0
        %3311 = vmatpush1.bf16.msra.mxu0 0
        %3312 = vmatprep.subr.bf16.mxu0 0
        %3313 = vmatpush1.bf16.msra.mxu0 0
        %3314 = vmatprep.mubr.bf16.mxu0 0
        %3315 = vmatmul.mubr.bf16.gmra.mrb[0].mxu0 %v3103
        %v3316 = vpop.f32.mrb[0].mxu0
        %v3317 = vadd.f32 %v3229, %v3316
        %v3318 = vpop.f32.mrb[0].mxu0
        %v3319 = vpop.f32.mrb[0].mxu0
        %v3320 = vpop.f32.mrb[0].mxu0
        %3321 = vdwg.mxu0
        %s3322 = scalar_lea.vmem %s12, 128
        %v3323 = vld [vmem:[%s3322] sm:$0xf]
        %v3324 = vld [vmem:[%s3322 + $0x4] sm:$0xf]
        %v3325 = vld [vmem:[%s3322 + $0x8] sm:$0xf]
        %v3326 = vld [vmem:[%s3322 + $0xc] sm:$0xf]
        %v3327 = vld [vmem:[%s3322 + $0x10] sm:$0xf]
        %v3328 = vld [vmem:[%s3322 + $0x14] sm:$0xf]
        %v3329 = vld [vmem:[%s3322 + $0x18] sm:$0xf]
        %v3330 = vld [vmem:[%s3322 + $0x1c] sm:$0xf]
        %v3331 = vld [vmem:[%s3322 + $0x20] sm:$0xf]
        %v3332 = vld [vmem:[%s3322 + $0x24] sm:$0xf]
        %v3333 = vld [vmem:[%s3322 + $0x28] sm:$0xf]
        %v3334 = vld [vmem:[%s3322 + $0x2c] sm:$0xf]
        %v3335 = vld [vmem:[%s3322 + $0x30] sm:$0xf]
        %v3336 = vld [vmem:[%s3322 + $0x34] sm:$0xf]
        %v3337 = vld [vmem:[%s3322 + $0x38] sm:$0xf]
        %v3338 = vld [vmem:[%s3322 + $0x3c] sm:$0xf]
        %v3340 = vrot.slane %v3120, 1
        %v3358 = vunpack.c.l.b16 %v3323
        %v3359 = vunpack.c.l.b16 %v3324
        %v3360 = vunpack.c.l.b16 %v3325
        %v3361 = vunpack.c.l.b16 %v3326
        %v3362 = vunpack.c.l.b16 %v3327
        %v3363 = vunpack.c.l.b16 %v3328
        %v3364 = vunpack.c.l.b16 %v3329
        %v3365 = vunpack.c.l.b16 %v3330
        %v3366 = vunpack.c.l.b16 %v3331
        %v3367 = vunpack.c.l.b16 %v3332
        %v3368 = vunpack.c.l.b16 %v3333
        %v3369 = vunpack.c.l.b16 %v3334
        %v3370 = vunpack.c.l.b16 %v3335
        %v3371 = vunpack.c.l.b16 %v3336
        %v3372 = vunpack.c.l.b16 %v3337
        %v3373 = vunpack.c.l.b16 %v3338
        %v3374 = vpack.c.b16 %v3359, %v3358
        %v3375 = vpack.c.b16 %v3361, %v3360
        %v3376 = vpack.c.b16 %v3363, %v3362
        %v3377 = vpack.c.b16 %v3365, %v3364
        %v3378 = vpack.c.b16 %v3367, %v3366
        %v3379 = vpack.c.b16 %v3369, %v3368
        %v3380 = vpack.c.b16 %v3371, %v3370
        %v3381 = vpack.c.b16 %v3373, %v3372
        %3390 = vmatprep.subr.bf16.mxu0 0
        %3391 = vmatpush1.bf16.msra.mxu0 %v3374
        %3392 = vmatprep.subr.bf16.mxu0 0
        %3393 = vmatpush1.bf16.msra.mxu0 %v3375
        %3394 = vmatprep.subr.bf16.mxu0 0
        %3395 = vmatpush1.bf16.msra.mxu0 %v3376
        %3396 = vmatprep.subr.bf16.mxu0 0
        %3397 = vmatpush1.bf16.msra.mxu0 %v3377
        %3398 = vmatprep.subr.bf16.mxu0 0
        %3399 = vmatpush1.bf16.msra.mxu0 %v3378
        %3400 = vmatprep.subr.bf16.mxu0 0
        %3401 = vmatpush1.bf16.msra.mxu0 %v3379
        %3402 = vmatprep.subr.bf16.mxu0 0
        %3403 = vmatpush1.bf16.msra.mxu0 %v3380
        %3404 = vmatprep.subr.bf16.mxu0 0
        %3405 = vmatpush1.bf16.msra.mxu0 %v3381
        %3406 = vmatprep.subr.bf16.mxu0 0
        %3407 = vmatpush1.bf16.msra.mxu0 0
        %3408 = vmatprep.subr.bf16.mxu0 0
        %3409 = vmatpush1.bf16.msra.mxu0 0
        %3410 = vmatprep.subr.bf16.mxu0 0
        %3411 = vmatpush1.bf16.msra.mxu0 0
        %3412 = vmatprep.subr.bf16.mxu0 0
        %3413 = vmatpush1.bf16.msra.mxu0 0
        %3414 = vmatprep.subr.bf16.mxu0 0
        %3415 = vmatpush1.bf16.msra.mxu0 0
        %3416 = vmatprep.subr.bf16.mxu0 0
        %3417 = vmatpush1.bf16.msra.mxu0 0
        %3418 = vmatprep.subr.bf16.mxu0 0
        %3419 = vmatpush1.bf16.msra.mxu0 0
        %3420 = vmatprep.subr.bf16.mxu0 0
        %3421 = vmatpush1.bf16.msra.mxu0 0
        %3422 = vmatprep.mubr.bf16.mxu0 0
        %3423 = vmatmul.mubr.bf16.gmra.mrb[0].mxu0 %v3340
        %v3424 = vpop.f32.mrb[0].mxu0
        %v3425 = vadd.f32 0.0, %v3424
        %v3426 = vpop.f32.mrb[0].mxu0
        %v3427 = vpop.f32.mrb[0].mxu0
        %v3428 = vpop.f32.mrb[0].mxu0
        %3429 = vdwg.mxu0
        %v3430 = vadd.f32 %v3317, %v3425
        %v3431 = vld [vmem:[%s13] sm:$0x1]
        %v3433 = vlaneseq
        %v3434 = vshrl.u32 %v3433, 7
        %v3435 = vsub.s32 0, %v3434
        %v3436 = vrot.slane %v3431, %v3435
        %v3438 = vadd.f32 %v3430, %v3436
        %vm3439 = vcmp.ge.f32.partialorder %v3438, 0.0
        %v3440 = vmul.f32 %v3438, 0.2
        %v3441 = vsel %vm3439, %v3438, %v3440
        %v3443 = vrot.slane %v3441, 7
        %v3445 = vsel %vm1594, 0.0, %v3443
        %v3446 = vsel %vm1594, %v3443, 0.0
        %v3447 = vpack.c.bf16 %v3445, %v3445
        %v3448 = vld [vmem:[#allocation11] sm:$0xf]
        %v3449 = vld [vmem:[#allocation11 + $0x4] sm:$0xf]
        %v3450 = vld [vmem:[#allocation11 + $0x8] sm:$0xf]
        %v3451 = vld [vmem:[#allocation11 + $0xc] sm:$0xf]
        %v3452 = vld [vmem:[#allocation11 + $0x10] sm:$0xf]
        %v3453 = vld [vmem:[#allocation11 + $0x14] sm:$0xf]
        %v3454 = vld [vmem:[#allocation11 + $0x18] sm:$0xf]
        %v3455 = vld [vmem:[#allocation11 + $0x1c] sm:$0xf]
        %v3456 = vld [vmem:[#allocation11 + $0x20] sm:$0xf]
        %v3457 = vld [vmem:[#allocation11 + $0x24] sm:$0xf]
        %v3458 = vld [vmem:[#allocation11 + $0x28] sm:$0xf]
        %v3459 = vld [vmem:[#allocation11 + $0x2c] sm:$0xf]
        %v3460 = vld [vmem:[#allocation11 + $0x30] sm:$0xf]
        %v3461 = vld [vmem:[#allocation11 + $0x34] sm:$0xf]
        %v3462 = vld [vmem:[#allocation11 + $0x38] sm:$0xf]
        %v3463 = vld [vmem:[#allocation11 + $0x3c] sm:$0xf]
        %v3464 = vpack.c.bf16 %v3446, %v3445
        %s3465 = scalar_lea.vmem [#allocation11], 64
        %v3466 = vld [vmem:[%s3465] sm:$0xf]
        %v3467 = vld [vmem:[%s3465 + $0x4] sm:$0xf]
        %v3468 = vld [vmem:[%s3465 + $0x8] sm:$0xf]
        %v3469 = vld [vmem:[%s3465 + $0xc] sm:$0xf]
        %v3470 = vld [vmem:[%s3465 + $0x10] sm:$0xf]
        %v3471 = vld [vmem:[%s3465 + $0x14] sm:$0xf]
        %v3472 = vld [vmem:[%s3465 + $0x18] sm:$0xf]
        %v3473 = vld [vmem:[%s3465 + $0x1c] sm:$0xf]
        %v3474 = vld [vmem:[%s3465 + $0x20] sm:$0xf]
        %v3475 = vld [vmem:[%s3465 + $0x24] sm:$0xf]
        %v3476 = vld [vmem:[%s3465 + $0x28] sm:$0xf]
        %v3477 = vld [vmem:[%s3465 + $0x2c] sm:$0xf]
        %v3478 = vld [vmem:[%s3465 + $0x30] sm:$0xf]
        %v3479 = vld [vmem:[%s3465 + $0x34] sm:$0xf]
        %v3480 = vld [vmem:[%s3465 + $0x38] sm:$0xf]
        %v3481 = vld [vmem:[%s3465 + $0x3c] sm:$0xf]
        %v3483 = vshrl.u32 %v3464, 16
        %v3485 = vshll.u32 %v3464, 16
        %v3487 = vrot.slane %v3485, 1
        %v3488 = vor.u32 %v3483, %v3487
        %v3506 = vunpack.c.l.b16 %v3466
        %v3507 = vunpack.c.l.b16 %v3467
        %v3508 = vunpack.c.l.b16 %v3468
        %v3509 = vunpack.c.l.b16 %v3469
        %v3510 = vunpack.c.l.b16 %v3470
        %v3511 = vunpack.c.l.b16 %v3471
        %v3512 = vunpack.c.l.b16 %v3472
        %v3513 = vunpack.c.l.b16 %v3473
        %v3514 = vunpack.c.l.b16 %v3474
        %v3515 = vunpack.c.l.b16 %v3475
        %v3516 = vunpack.c.l.b16 %v3476
        %v3517 = vunpack.c.l.b16 %v3477
        %v3518 = vunpack.c.l.b16 %v3478
        %v3519 = vunpack.c.l.b16 %v3479
        %v3520 = vunpack.c.l.b16 %v3480
        %v3521 = vunpack.c.l.b16 %v3481
        %v3522 = vpack.c.b16 %v3507, %v3506
        %v3523 = vpack.c.b16 %v3509, %v3508
        %v3524 = vpack.c.b16 %v3511, %v3510
        %v3525 = vpack.c.b16 %v3513, %v3512
        %v3526 = vpack.c.b16 %v3515, %v3514
        %v3527 = vpack.c.b16 %v3517, %v3516
        %v3528 = vpack.c.b16 %v3519, %v3518
        %v3529 = vpack.c.b16 %v3521, %v3520
        %3538 = vmatprep.subr.bf16.mxu0 0
        %3539 = vmatpush1.bf16.msra.mxu0 %v3522
        %3540 = vmatprep.subr.bf16.mxu0 0
        %3541 = vmatpush1.bf16.msra.mxu0 %v3523
        %3542 = vmatprep.subr.bf16.mxu0 0
        %3543 = vmatpush1.bf16.msra.mxu0 %v3524
        %3544 = vmatprep.subr.bf16.mxu0 0
        %3545 = vmatpush1.bf16.msra.mxu0 %v3525
        %3546 = vmatprep.subr.bf16.mxu0 0
        %3547 = vmatpush1.bf16.msra.mxu0 %v3526
        %3548 = vmatprep.subr.bf16.mxu0 0
        %3549 = vmatpush1.bf16.msra.mxu0 %v3527
        %3550 = vmatprep.subr.bf16.mxu0 0
        %3551 = vmatpush1.bf16.msra.mxu0 %v3528
        %3552 = vmatprep.subr.bf16.mxu0 0
        %3553 = vmatpush1.bf16.msra.mxu0 %v3529
        %3554 = vmatprep.subr.bf16.mxu0 0
        %3555 = vmatpush1.bf16.msra.mxu0 0
        %3556 = vmatprep.subr.bf16.mxu0 0
        %3557 = vmatpush1.bf16.msra.mxu0 0
        %3558 = vmatprep.subr.bf16.mxu0 0
        %3559 = vmatpush1.bf16.msra.mxu0 0
        %3560 = vmatprep.subr.bf16.mxu0 0
        %3561 = vmatpush1.bf16.msra.mxu0 0
        %3562 = vmatprep.subr.bf16.mxu0 0
        %3563 = vmatpush1.bf16.msra.mxu0 0
        %3564 = vmatprep.subr.bf16.mxu0 0
        %3565 = vmatpush1.bf16.msra.mxu0 0
        %3566 = vmatprep.subr.bf16.mxu0 0
        %3567 = vmatpush1.bf16.msra.mxu0 0
        %3568 = vmatprep.subr.bf16.mxu0 0
        %3569 = vmatpush1.bf16.msra.mxu0 0
        %3570 = vmatprep.mubr.bf16.mxu0 0
        %3571 = vmatmul.mubr.bf16.gmra.mrb[0].mxu0 %v3488
        %v3572 = vpop.f32.mrb[0].mxu0
        %v3573 = vadd.f32 0.0, %v3572
        %v3574 = vpop.f32.mrb[0].mxu0
        %v3575 = vpop.f32.mrb[0].mxu0
        %v3576 = vpop.f32.mrb[0].mxu0
        %3577 = vdwg.mxu0
        %v3594 = vunpack.c.l.b16 %v3448
        %v3595 = vunpack.c.l.b16 %v3449
        %v3596 = vunpack.c.l.b16 %v3450
        %v3597 = vunpack.c.l.b16 %v3451
        %v3598 = vunpack.c.l.b16 %v3452
        %v3599 = vunpack.c.l.b16 %v3453
        %v3600 = vunpack.c.l.b16 %v3454
        %v3601 = vunpack.c.l.b16 %v3455
        %v3602 = vunpack.c.l.b16 %v3456
        %v3603 = vunpack.c.l.b16 %v3457
        %v3604 = vunpack.c.l.b16 %v3458
        %v3605 = vunpack.c.l.b16 %v3459
        %v3606 = vunpack.c.l.b16 %v3460
        %v3607 = vunpack.c.l.b16 %v3461
        %v3608 = vunpack.c.l.b16 %v3462
        %v3609 = vunpack.c.l.b16 %v3463
        %v3610 = vpack.c.b16 %v3595, %v3594
        %v3611 = vpack.c.b16 %v3597, %v3596
        %v3612 = vpack.c.b16 %v3599, %v3598
        %v3613 = vpack.c.b16 %v3601, %v3600
        %v3614 = vpack.c.b16 %v3603, %v3602
        %v3615 = vpack.c.b16 %v3605, %v3604
        %v3616 = vpack.c.b16 %v3607, %v3606
        %v3617 = vpack.c.b16 %v3609, %v3608
        %3626 = vmatprep.subr.bf16.mxu0 0
        %3627 = vmatpush1.bf16.msra.mxu0 %v3610
        %3628 = vmatprep.subr.bf16.mxu0 0
        %3629 = vmatpush1.bf16.msra.mxu0 %v3611
        %3630 = vmatprep.subr.bf16.mxu0 0
        %3631 = vmatpush1.bf16.msra.mxu0 %v3612
        %3632 = vmatprep.subr.bf16.mxu0 0
        %3633 = vmatpush1.bf16.msra.mxu0 %v3613
        %3634 = vmatprep.subr.bf16.mxu0 0
        %3635 = vmatpush1.bf16.msra.mxu0 %v3614
        %3636 = vmatprep.subr.bf16.mxu0 0
        %3637 = vmatpush1.bf16.msra.mxu0 %v3615
        %3638 = vmatprep.subr.bf16.mxu0 0
        %3639 = vmatpush1.bf16.msra.mxu0 %v3616
        %3640 = vmatprep.subr.bf16.mxu0 0
        %3641 = vmatpush1.bf16.msra.mxu0 %v3617
        %3642 = vmatprep.subr.bf16.mxu0 0
        %3643 = vmatpush1.bf16.msra.mxu0 0
        %3644 = vmatprep.subr.bf16.mxu0 0
        %3645 = vmatpush1.bf16.msra.mxu0 0
        %3646 = vmatprep.subr.bf16.mxu0 0
        %3647 = vmatpush1.bf16.msra.mxu0 0
        %3648 = vmatprep.subr.bf16.mxu0 0
        %3649 = vmatpush1.bf16.msra.mxu0 0
        %3650 = vmatprep.subr.bf16.mxu0 0
        %3651 = vmatpush1.bf16.msra.mxu0 0
        %3652 = vmatprep.subr.bf16.mxu0 0
        %3653 = vmatpush1.bf16.msra.mxu0 0
        %3654 = vmatprep.subr.bf16.mxu0 0
        %3655 = vmatpush1.bf16.msra.mxu0 0
        %3656 = vmatprep.subr.bf16.mxu0 0
        %3657 = vmatpush1.bf16.msra.mxu0 0
        %3658 = vmatprep.mubr.bf16.mxu0 0
        %3659 = vmatmul.mubr.bf16.gmra.mrb[0].mxu0 %v3447
        %v3660 = vpop.f32.mrb[0].mxu0
        %v3661 = vadd.f32 %v3573, %v3660
        %v3662 = vpop.f32.mrb[0].mxu0
        %v3663 = vpop.f32.mrb[0].mxu0
        %v3664 = vpop.f32.mrb[0].mxu0
        %3665 = vdwg.mxu0
        %s3666 = scalar_lea.vmem [#allocation11], 128
        %v3667 = vld [vmem:[%s3666] sm:$0xf]
        %v3668 = vld [vmem:[%s3666 + $0x4] sm:$0xf]
        %v3669 = vld [vmem:[%s3666 + $0x8] sm:$0xf]
        %v3670 = vld [vmem:[%s3666 + $0xc] sm:$0xf]
        %v3671 = vld [vmem:[%s3666 + $0x10] sm:$0xf]
        %v3672 = vld [vmem:[%s3666 + $0x14] sm:$0xf]
        %v3673 = vld [vmem:[%s3666 + $0x18] sm:$0xf]
        %v3674 = vld [vmem:[%s3666 + $0x1c] sm:$0xf]
        %v3675 = vld [vmem:[%s3666 + $0x20] sm:$0xf]
        %v3676 = vld [vmem:[%s3666 + $0x24] sm:$0xf]
        %v3677 = vld [vmem:[%s3666 + $0x28] sm:$0xf]
        %v3678 = vld [vmem:[%s3666 + $0x2c] sm:$0xf]
        %v3679 = vld [vmem:[%s3666 + $0x30] sm:$0xf]
        %v3680 = vld [vmem:[%s3666 + $0x34] sm:$0xf]
        %v3681 = vld [vmem:[%s3666 + $0x38] sm:$0xf]
        %v3682 = vld [vmem:[%s3666 + $0x3c] sm:$0xf]
        %v3684 = vrot.slane %v3464, 1
        %v3702 = vunpack.c.l.b16 %v3667
        %v3703 = vunpack.c.l.b16 %v3668
        %v3704 = vunpack.c.l.b16 %v3669
        %v3705 = vunpack.c.l.b16 %v3670
        %v3706 = vunpack.c.l.b16 %v3671
        %v3707 = vunpack.c.l.b16 %v3672
        %v3708 = vunpack.c.l.b16 %v3673
        %v3709 = vunpack.c.l.b16 %v3674
        %v3710 = vunpack.c.l.b16 %v3675
        %v3711 = vunpack.c.l.b16 %v3676
        %v3712 = vunpack.c.l.b16 %v3677
        %v3713 = vunpack.c.l.b16 %v3678
        %v3714 = vunpack.c.l.b16 %v3679
        %v3715 = vunpack.c.l.b16 %v3680
        %v3716 = vunpack.c.l.b16 %v3681
        %v3717 = vunpack.c.l.b16 %v3682
        %v3718 = vpack.c.b16 %v3703, %v3702
        %v3719 = vpack.c.b16 %v3705, %v3704
        %v3720 = vpack.c.b16 %v3707, %v3706
        %v3721 = vpack.c.b16 %v3709, %v3708
        %v3722 = vpack.c.b16 %v3711, %v3710
        %v3723 = vpack.c.b16 %v3713, %v3712
        %v3724 = vpack.c.b16 %v3715, %v3714
        %v3725 = vpack.c.b16 %v3717, %v3716
        %3734 = vmatprep.subr.bf16.mxu0 0
        %3735 = vmatpush1.bf16.msra.mxu0 %v3718
        %3736 = vmatprep.subr.bf16.mxu0 0
        %3737 = vmatpush1.bf16.msra.mxu0 %v3719
        %3738 = vmatprep.subr.bf16.mxu0 0
        %3739 = vmatpush1.bf16.msra.mxu0 %v3720
        %3740 = vmatprep.subr.bf16.mxu0 0
        %3741 = vmatpush1.bf16.msra.mxu0 %v3721
        %3742 = vmatprep.subr.bf16.mxu0 0
        %3743 = vmatpush1.bf16.msra.mxu0 %v3722
        %3744 = vmatprep.subr.bf16.mxu0 0
        %3745 = vmatpush1.bf16.msra.mxu0 %v3723
        %3746 = vmatprep.subr.bf16.mxu0 0
        %3747 = vmatpush1.bf16.msra.mxu0 %v3724
        %3748 = vmatprep.subr.bf16.mxu0 0
        %3749 = vmatpush1.bf16.msra.mxu0 %v3725
        %3750 = vmatprep.subr.bf16.mxu0 0
        %3751 = vmatpush1.bf16.msra.mxu0 0
        %3752 = vmatprep.subr.bf16.mxu0 0
        %3753 = vmatpush1.bf16.msra.mxu0 0
        %3754 = vmatprep.subr.bf16.mxu0 0
        %3755 = vmatpush1.bf16.msra.mxu0 0
        %3756 = vmatprep.subr.bf16.mxu0 0
        %3757 = vmatpush1.bf16.msra.mxu0 0
        %3758 = vmatprep.subr.bf16.mxu0 0
        %3759 = vmatpush1.bf16.msra.mxu0 0
        %3760 = vmatprep.subr.bf16.mxu0 0
        %3761 = vmatpush1.bf16.msra.mxu0 0
        %3762 = vmatprep.subr.bf16.mxu0 0
        %3763 = vmatpush1.bf16.msra.mxu0 0
        %3764 = vmatprep.subr.bf16.mxu0 0
        %3765 = vmatpush1.bf16.msra.mxu0 0
        %3766 = vmatprep.mubr.bf16.mxu0 0
        %3767 = vmatmul.mubr.bf16.gmra.mrb[0].mxu0 %v3684
        %v3768 = vpop.f32.mrb[0].mxu0
        %v3769 = vadd.f32 0.0, %v3768
        %v3770 = vpop.f32.mrb[0].mxu0
        %v3771 = vpop.f32.mrb[0].mxu0
        %v3772 = vpop.f32.mrb[0].mxu0
        %3773 = vdwg.mxu0
        %v3774 = vadd.f32 %v3661, %v3769
        %v3775 = vld [vmem:[%s15] sm:$0x1]
        %v3777 = vlaneseq
        %v3778 = vshrl.u32 %v3777, 7
        %v3779 = vsub.s32 0, %v3778
        %v3780 = vrot.slane %v3775, %v3779
        %v3782 = vadd.f32 %v3774, %v3780
        %v3783 = vadd.f32 %v3782, %v3093
        %vm3784 = vcmp.ge.f32.partialorder %v3783, 0.0
        %v3785 = vmul.f32 %v3783, 0.2
        %v3786 = vsel %vm3784, %v3783, %v3785
        %v3787 = vld [vmem:[%s17] sm:$0x1]
        %v3788 = vpack.c.bf16 %v3786, %v3786
        %v3789 = vld [vmem:[%s16] sm:$0xf]
        %v3790 = vld [vmem:[%s16 + $0x4] sm:$0xf]
        %v3791 = vld [vmem:[%s16 + $0x8] sm:$0xf]
        %v3792 = vld [vmem:[%s16 + $0xc] sm:$0xf]
        %v3793 = vld [vmem:[%s16 + $0x10] sm:$0xf]
        %v3794 = vld [vmem:[%s16 + $0x14] sm:$0xf]
        %v3795 = vld [vmem:[%s16 + $0x18] sm:$0xf]
        %v3796 = vld [vmem:[%s16 + $0x1c] sm:$0xf]
        %v3797 = vld [vmem:[%s16 + $0x20] sm:$0xf]
        %v3798 = vld [vmem:[%s16 + $0x24] sm:$0xf]
        %v3799 = vld [vmem:[%s16 + $0x28] sm:$0xf]
        %v3800 = vld [vmem:[%s16 + $0x2c] sm:$0xf]
        %v3801 = vld [vmem:[%s16 + $0x30] sm:$0xf]
        %v3802 = vld [vmem:[%s16 + $0x34] sm:$0xf]
        %v3803 = vld [vmem:[%s16 + $0x38] sm:$0xf]
        %v3804 = vld [vmem:[%s16 + $0x3c] sm:$0xf]
        %v3821 = vunpack.c.l.b16 %v3789
        %v3822 = vunpack.c.l.b16 %v3790
        %v3823 = vunpack.c.l.b16 %v3791
        %v3824 = vunpack.c.l.b16 %v3792
        %v3825 = vunpack.c.l.b16 %v3793
        %v3826 = vunpack.c.l.b16 %v3794
        %v3827 = vunpack.c.l.b16 %v3795
        %v3828 = vunpack.c.l.b16 %v3796
        %v3829 = vunpack.c.l.b16 %v3797
        %v3830 = vunpack.c.l.b16 %v3798
        %v3831 = vunpack.c.l.b16 %v3799
        %v3832 = vunpack.c.l.b16 %v3800
        %v3833 = vunpack.c.l.b16 %v3801
        %v3834 = vunpack.c.l.b16 %v3802
        %v3835 = vunpack.c.l.b16 %v3803
        %v3836 = vunpack.c.l.b16 %v3804
        %v3837 = vpack.c.b16 %v3822, %v3821
        %v3838 = vpack.c.b16 %v3824, %v3823
        %v3839 = vpack.c.b16 %v3826, %v3825
        %v3840 = vpack.c.b16 %v3828, %v3827
        %v3841 = vpack.c.b16 %v3830, %v3829
        %v3842 = vpack.c.b16 %v3832, %v3831
        %v3843 = vpack.c.b16 %v3834, %v3833
        %v3844 = vpack.c.b16 %v3836, %v3835
        %3853 = vmatprep.subr.bf16.mxu0 0
        %3854 = vmatpush1.bf16.msra.mxu0 %v3837
        %3855 = vmatprep.subr.bf16.mxu0 0
        %3856 = vmatpush1.bf16.msra.mxu0 %v3838
        %3857 = vmatprep.subr.bf16.mxu0 0
        %3858 = vmatpush1.bf16.msra.mxu0 %v3839
        %3859 = vmatprep.subr.bf16.mxu0 0
        %3860 = vmatpush1.bf16.msra.mxu0 %v3840
        %3861 = vmatprep.subr.bf16.mxu0 0
        %3862 = vmatpush1.bf16.msra.mxu0 %v3841
        %3863 = vmatprep.subr.bf16.mxu0 0
        %3864 = vmatpush1.bf16.msra.mxu0 %v3842
        %3865 = vmatprep.subr.bf16.mxu0 0
        %3866 = vmatpush1.bf16.msra.mxu0 %v3843
        %3867 = vmatprep.subr.bf16.mxu0 0
        %3868 = vmatpush1.bf16.msra.mxu0 %v3844
        %3869 = vmatprep.subr.bf16.mxu0 0
        %3870 = vmatpush1.bf16.msra.mxu0 0
        %3871 = vmatprep.subr.bf16.mxu0 0
        %3872 = vmatpush1.bf16.msra.mxu0 0
        %3873 = vmatprep.subr.bf16.mxu0 0
        %3874 = vmatpush1.bf16.msra.mxu0 0
        %3875 = vmatprep.subr.bf16.mxu0 0
        %3876 = vmatpush1.bf16.msra.mxu0 0
        %3877 = vmatprep.subr.bf16.mxu0 0
        %3878 = vmatpush1.bf16.msra.mxu0 0
        %3879 = vmatprep.subr.bf16.mxu0 0
        %3880 = vmatpush1.bf16.msra.mxu0 0
        %3881 = vmatprep.subr.bf16.mxu0 0
        %3882 = vmatpush1.bf16.msra.mxu0 0
        %3883 = vmatprep.subr.bf16.mxu0 0
        %3884 = vmatpush1.bf16.msra.mxu0 0
        %3885 = vmatprep.mubr.bf16.mxu0 0
        %3886 = vmatmul.mubr.bf16.gmra.mrb[0].mxu0 %v3788
        %v3887 = vpop.f32.mrb[0].mxu0
        %v3888 = vadd.f32 0.0, %v3887
        %v3889 = vpop.f32.mrb[0].mxu0
        %v3890 = vpop.f32.mrb[0].mxu0
        %v3891 = vpop.f32.mrb[0].mxu0
        %3892 = vdwg.mxu0
        %v3893 = vadd.f32 %v3787, %v3888
        %s3894 = scalar_lea.vmem %s16, 64
        %v3895 = vld [vmem:[%s3894] sm:$0xf]
        %v3896 = vld [vmem:[%s3894 + $0x4] sm:$0xf]
        %v3897 = vld [vmem:[%s3894 + $0x8] sm:$0xf]
        %v3898 = vld [vmem:[%s3894 + $0xc] sm:$0xf]
        %v3899 = vld [vmem:[%s3894 + $0x10] sm:$0xf]
        %v3900 = vld [vmem:[%s3894 + $0x14] sm:$0xf]
        %v3901 = vld [vmem:[%s3894 + $0x18] sm:$0xf]
        %v3902 = vld [vmem:[%s3894 + $0x1c] sm:$0xf]
        %v3903 = vld [vmem:[%s3894 + $0x20] sm:$0xf]
        %v3904 = vld [vmem:[%s3894 + $0x24] sm:$0xf]
        %v3905 = vld [vmem:[%s3894 + $0x28] sm:$0xf]
        %v3906 = vld [vmem:[%s3894 + $0x2c] sm:$0xf]
        %v3907 = vld [vmem:[%s3894 + $0x30] sm:$0xf]
        %v3908 = vld [vmem:[%s3894 + $0x34] sm:$0xf]
        %v3909 = vld [vmem:[%s3894 + $0x38] sm:$0xf]
        %v3910 = vld [vmem:[%s3894 + $0x3c] sm:$0xf]
        %v3912 = vshrl.u32 %v3788, 16
        %v3931 = vunpack.c.l.b16 %v3895
        %v3932 = vunpack.c.l.b16 %v3896
        %v3933 = vunpack.c.l.b16 %v3897
        %v3934 = vunpack.c.l.b16 %v3898
        %v3935 = vunpack.c.l.b16 %v3899
        %v3936 = vunpack.c.l.b16 %v3900
        %v3937 = vunpack.c.l.b16 %v3901
        %v3938 = vunpack.c.l.b16 %v3902
        %v3939 = vunpack.c.l.b16 %v3903
        %v3940 = vunpack.c.l.b16 %v3904
        %v3941 = vunpack.c.l.b16 %v3905
        %v3942 = vunpack.c.l.b16 %v3906
        %v3943 = vunpack.c.l.b16 %v3907
        %v3944 = vunpack.c.l.b16 %v3908
        %v3945 = vunpack.c.l.b16 %v3909
        %v3946 = vunpack.c.l.b16 %v3910
        %v3947 = vpack.c.b16 %v3932, %v3931
        %v3948 = vpack.c.b16 %v3934, %v3933
        %v3949 = vpack.c.b16 %v3936, %v3935
        %v3950 = vpack.c.b16 %v3938, %v3937
        %v3951 = vpack.c.b16 %v3940, %v3939
        %v3952 = vpack.c.b16 %v3942, %v3941
        %v3953 = vpack.c.b16 %v3944, %v3943
        %v3954 = vpack.c.b16 %v3946, %v3945
        %3963 = vmatprep.subr.bf16.mxu0 0
        %3964 = vmatpush1.bf16.msra.mxu0 %v3947
        %3965 = vmatprep.subr.bf16.mxu0 0
        %3966 = vmatpush1.bf16.msra.mxu0 %v3948
        %3967 = vmatprep.subr.bf16.mxu0 0
        %3968 = vmatpush1.bf16.msra.mxu0 %v3949
        %3969 = vmatprep.subr.bf16.mxu0 0
        %3970 = vmatpush1.bf16.msra.mxu0 %v3950
        %3971 = vmatprep.subr.bf16.mxu0 0
        %3972 = vmatpush1.bf16.msra.mxu0 %v3951
        %3973 = vmatprep.subr.bf16.mxu0 0
        %3974 = vmatpush1.bf16.msra.mxu0 %v3952
        %3975 = vmatprep.subr.bf16.mxu0 0
        %3976 = vmatpush1.bf16.msra.mxu0 %v3953
        %3977 = vmatprep.subr.bf16.mxu0 0
        %3978 = vmatpush1.bf16.msra.mxu0 %v3954
        %3979 = vmatprep.subr.bf16.mxu0 0
        %3980 = vmatpush1.bf16.msra.mxu0 0
        %3981 = vmatprep.subr.bf16.mxu0 0
        %3982 = vmatpush1.bf16.msra.mxu0 0
        %3983 = vmatprep.subr.bf16.mxu0 0
        %3984 = vmatpush1.bf16.msra.mxu0 0
        %3985 = vmatprep.subr.bf16.mxu0 0
        %3986 = vmatpush1.bf16.msra.mxu0 0
        %3987 = vmatprep.subr.bf16.mxu0 0
        %3988 = vmatpush1.bf16.msra.mxu0 0
        %3989 = vmatprep.subr.bf16.mxu0 0
        %3990 = vmatpush1.bf16.msra.mxu0 0
        %3991 = vmatprep.subr.bf16.mxu0 0
        %3992 = vmatpush1.bf16.msra.mxu0 0
        %3993 = vmatprep.subr.bf16.mxu0 0
        %3994 = vmatpush1.bf16.msra.mxu0 0
        %3995 = vmatprep.mubr.bf16.mxu0 0
        %3996 = vmatmul.mubr.bf16.gmra.mrb[0].mxu0 %v3912
        %v3997 = vpop.f32.mrb[0].mxu0
        %v3998 = vadd.f32 0.0, %v3997
        %v3999 = vpop.f32.mrb[0].mxu0
        %v4000 = vpop.f32.mrb[0].mxu0
        %v4001 = vpop.f32.mrb[0].mxu0
        %4002 = vdwg.mxu0
        %v4003 = vadd.f32 %v3893, %v3998
        %s4004 = scalar_lea.vmem %s16, 128
        %v4005 = vld [vmem:[%s4004] sm:$0xf]
        %v4006 = vld [vmem:[%s4004 + $0x4] sm:$0xf]
        %v4007 = vld [vmem:[%s4004 + $0x8] sm:$0xf]
        %v4008 = vld [vmem:[%s4004 + $0xc] sm:$0xf]
        %v4009 = vld [vmem:[%s4004 + $0x10] sm:$0xf]
        %v4010 = vld [vmem:[%s4004 + $0x14] sm:$0xf]
        %v4011 = vld [vmem:[%s4004 + $0x18] sm:$0xf]
        %v4012 = vld [vmem:[%s4004 + $0x1c] sm:$0xf]
        %v4013 = vld [vmem:[%s4004 + $0x20] sm:$0xf]
        %v4014 = vld [vmem:[%s4004 + $0x24] sm:$0xf]
        %v4015 = vld [vmem:[%s4004 + $0x28] sm:$0xf]
        %v4016 = vld [vmem:[%s4004 + $0x2c] sm:$0xf]
        %v4017 = vld [vmem:[%s4004 + $0x30] sm:$0xf]
        %v4018 = vld [vmem:[%s4004 + $0x34] sm:$0xf]
        %v4019 = vld [vmem:[%s4004 + $0x38] sm:$0xf]
        %v4020 = vld [vmem:[%s4004 + $0x3c] sm:$0xf]
        %v4022 = vrot.slane %v3788, 1
        %v4040 = vunpack.c.l.b16 %v4005
        %v4041 = vunpack.c.l.b16 %v4006
        %v4042 = vunpack.c.l.b16 %v4007
        %v4043 = vunpack.c.l.b16 %v4008
        %v4044 = vunpack.c.l.b16 %v4009
        %v4045 = vunpack.c.l.b16 %v4010
        %v4046 = vunpack.c.l.b16 %v4011
        %v4047 = vunpack.c.l.b16 %v4012
        %v4048 = vunpack.c.l.b16 %v4013
        %v4049 = vunpack.c.l.b16 %v4014
        %v4050 = vunpack.c.l.b16 %v4015
        %v4051 = vunpack.c.l.b16 %v4016
        %v4052 = vunpack.c.l.b16 %v4017
        %v4053 = vunpack.c.l.b16 %v4018
        %v4054 = vunpack.c.l.b16 %v4019
        %v4055 = vunpack.c.l.b16 %v4020
        %v4056 = vpack.c.b16 %v4041, %v4040
        %v4057 = vpack.c.b16 %v4043, %v4042
        %v4058 = vpack.c.b16 %v4045, %v4044
        %v4059 = vpack.c.b16 %v4047, %v4046
        %v4060 = vpack.c.b16 %v4049, %v4048
        %v4061 = vpack.c.b16 %v4051, %v4050
        %v4062 = vpack.c.b16 %v4053, %v4052
        %v4063 = vpack.c.b16 %v4055, %v4054
        %4072 = vmatprep.subr.bf16.mxu0 0
        %4073 = vmatpush1.bf16.msra.mxu0 %v4056
        %4074 = vmatprep.subr.bf16.mxu0 0
        %4075 = vmatpush1.bf16.msra.mxu0 %v4057
        %4076 = vmatprep.subr.bf16.mxu0 0
        %4077 = vmatpush1.bf16.msra.mxu0 %v4058
        %4078 = vmatprep.subr.bf16.mxu0 0
        %4079 = vmatpush1.bf16.msra.mxu0 %v4059
        %4080 = vmatprep.subr.bf16.mxu0 0
        %4081 = vmatpush1.bf16.msra.mxu0 %v4060
        %4082 = vmatprep.subr.bf16.mxu0 0
        %4083 = vmatpush1.bf16.msra.mxu0 %v4061
        %4084 = vmatprep.subr.bf16.mxu0 0
        %4085 = vmatpush1.bf16.msra.mxu0 %v4062
        %4086 = vmatprep.subr.bf16.mxu0 0
        %4087 = vmatpush1.bf16.msra.mxu0 %v4063
        %4088 = vmatprep.subr.bf16.mxu0 0
        %4089 = vmatpush1.bf16.msra.mxu0 0
        %4090 = vmatprep.subr.bf16.mxu0 0
        %4091 = vmatpush1.bf16.msra.mxu0 0
        %4092 = vmatprep.subr.bf16.mxu0 0
        %4093 = vmatpush1.bf16.msra.mxu0 0
        %4094 = vmatprep.subr.bf16.mxu0 0
        %4095 = vmatpush1.bf16.msra.mxu0 0
        %4096 = vmatprep.subr.bf16.mxu0 0
        %4097 = vmatpush1.bf16.msra.mxu0 0
        %4098 = vmatprep.subr.bf16.mxu0 0
        %4099 = vmatpush1.bf16.msra.mxu0 0
        %4100 = vmatprep.subr.bf16.mxu0 0
        %4101 = vmatpush1.bf16.msra.mxu0 0
        %4102 = vmatprep.subr.bf16.mxu0 0
        %4103 = vmatpush1.bf16.msra.mxu0 0
        %4104 = vmatprep.mubr.bf16.mxu0 0
        %4105 = vmatmul.mubr.bf16.gmra.mrb[0].mxu0 %v4022
        %v4106 = vpop.f32.mrb[0].mxu0
        %v4107 = vadd.f32 0.0, %v4106
        %v4108 = vpop.f32.mrb[0].mxu0
        %v4109 = vpop.f32.mrb[0].mxu0
        %v4110 = vpop.f32.mrb[0].mxu0
        %4111 = vdwg.mxu0
        %v4112 = vadd.f32 %v4003, %v4107
        %s4113 = scalar_lea.vmem %s16, 192
        %v4114 = vld [vmem:[%s4113] sm:$0xf]
        %v4115 = vld [vmem:[%s4113 + $0x4] sm:$0xf]
        %v4116 = vld [vmem:[%s4113 + $0x8] sm:$0xf]
        %v4117 = vld [vmem:[%s4113 + $0xc] sm:$0xf]
        %v4118 = vld [vmem:[%s4113 + $0x10] sm:$0xf]
        %v4119 = vld [vmem:[%s4113 + $0x14] sm:$0xf]
        %v4120 = vld [vmem:[%s4113 + $0x18] sm:$0xf]
        %v4121 = vld [vmem:[%s4113 + $0x1c] sm:$0xf]
        %v4122 = vld [vmem:[%s4113 + $0x20] sm:$0xf]
        %v4123 = vld [vmem:[%s4113 + $0x24] sm:$0xf]
        %v4124 = vld [vmem:[%s4113 + $0x28] sm:$0xf]
        %v4125 = vld [vmem:[%s4113 + $0x2c] sm:$0xf]
        %v4126 = vld [vmem:[%s4113 + $0x30] sm:$0xf]
        %v4127 = vld [vmem:[%s4113 + $0x34] sm:$0xf]
        %v4128 = vld [vmem:[%s4113 + $0x38] sm:$0xf]
        %v4129 = vld [vmem:[%s4113 + $0x3c] sm:$0xf]
        %v4130 = vrot.slane %v3912, 1
        %v4148 = vunpack.c.l.b16 %v4114
        %v4149 = vunpack.c.l.b16 %v4115
        %v4150 = vunpack.c.l.b16 %v4116
        %v4151 = vunpack.c.l.b16 %v4117
        %v4152 = vunpack.c.l.b16 %v4118
        %v4153 = vunpack.c.l.b16 %v4119
        %v4154 = vunpack.c.l.b16 %v4120
        %v4155 = vunpack.c.l.b16 %v4121
        %v4156 = vunpack.c.l.b16 %v4122
        %v4157 = vunpack.c.l.b16 %v4123
        %v4158 = vunpack.c.l.b16 %v4124
        %v4159 = vunpack.c.l.b16 %v4125
        %v4160 = vunpack.c.l.b16 %v4126
        %v4161 = vunpack.c.l.b16 %v4127
        %v4162 = vunpack.c.l.b16 %v4128
        %v4163 = vunpack.c.l.b16 %v4129
        %v4164 = vpack.c.b16 %v4149, %v4148
        %v4165 = vpack.c.b16 %v4151, %v4150
        %v4166 = vpack.c.b16 %v4153, %v4152
        %v4167 = vpack.c.b16 %v4155, %v4154
        %v4168 = vpack.c.b16 %v4157, %v4156
        %v4169 = vpack.c.b16 %v4159, %v4158
        %v4170 = vpack.c.b16 %v4161, %v4160
        %v4171 = vpack.c.b16 %v4163, %v4162
        %4180 = vmatprep.subr.bf16.mxu0 0
        %4181 = vmatpush1.bf16.msra.mxu0 %v4164
        %4182 = vmatprep.subr.bf16.mxu0 0
        %4183 = vmatpush1.bf16.msra.mxu0 %v4165
        %4184 = vmatprep.subr.bf16.mxu0 0
        %4185 = vmatpush1.bf16.msra.mxu0 %v4166
        %4186 = vmatprep.subr.bf16.mxu0 0
        %4187 = vmatpush1.bf16.msra.mxu0 %v4167
        %4188 = vmatprep.subr.bf16.mxu0 0
        %4189 = vmatpush1.bf16.msra.mxu0 %v4168
        %4190 = vmatprep.subr.bf16.mxu0 0
        %4191 = vmatpush1.bf16.msra.mxu0 %v4169
        %4192 = vmatprep.subr.bf16.mxu0 0
        %4193 = vmatpush1.bf16.msra.mxu0 %v4170
        %4194 = vmatprep.subr.bf16.mxu0 0
        %4195 = vmatpush1.bf16.msra.mxu0 %v4171
        %4196 = vmatprep.subr.bf16.mxu0 0
        %4197 = vmatpush1.bf16.msra.mxu0 0
        %4198 = vmatprep.subr.bf16.mxu0 0
        %4199 = vmatpush1.bf16.msra.mxu0 0
        %4200 = vmatprep.subr.bf16.mxu0 0
        %4201 = vmatpush1.bf16.msra.mxu0 0
        %4202 = vmatprep.subr.bf16.mxu0 0
        %4203 = vmatpush1.bf16.msra.mxu0 0
        %4204 = vmatprep.subr.bf16.mxu0 0
        %4205 = vmatpush1.bf16.msra.mxu0 0
        %4206 = vmatprep.subr.bf16.mxu0 0
        %4207 = vmatpush1.bf16.msra.mxu0 0
        %4208 = vmatprep.subr.bf16.mxu0 0
        %4209 = vmatpush1.bf16.msra.mxu0 0
        %4210 = vmatprep.subr.bf16.mxu0 0
        %4211 = vmatpush1.bf16.msra.mxu0 0
        %4212 = vmatprep.mubr.bf16.mxu0 0
        %4213 = vmatmul.mubr.bf16.gmra.mrb[0].mxu0 %v4130
        %v4214 = vpop.f32.mrb[0].mxu0
        %v4215 = vadd.f32 0.0, %v4214
        %v4216 = vpop.f32.mrb[0].mxu0
        %v4217 = vpop.f32.mrb[0].mxu0
        %v4218 = vpop.f32.mrb[0].mxu0
        %4219 = vdwg.mxu0
        %v4220 = vadd.f32 %v4112, %v4215
        %s4221 = scalar_lea.vmem %s16, 256
        %v4222 = vld [vmem:[%s4221] sm:$0xf]
        %v4223 = vld [vmem:[%s4221 + $0x4] sm:$0xf]
        %v4224 = vld [vmem:[%s4221 + $0x8] sm:$0xf]
        %v4225 = vld [vmem:[%s4221 + $0xc] sm:$0xf]
        %v4226 = vld [vmem:[%s4221 + $0x10] sm:$0xf]
        %v4227 = vld [vmem:[%s4221 + $0x14] sm:$0xf]
        %v4228 = vld [vmem:[%s4221 + $0x18] sm:$0xf]
        %v4229 = vld [vmem:[%s4221 + $0x1c] sm:$0xf]
        %v4230 = vld [vmem:[%s4221 + $0x20] sm:$0xf]
        %v4231 = vld [vmem:[%s4221 + $0x24] sm:$0xf]
        %v4232 = vld [vmem:[%s4221 + $0x28] sm:$0xf]
        %v4233 = vld [vmem:[%s4221 + $0x2c] sm:$0xf]
        %v4234 = vld [vmem:[%s4221 + $0x30] sm:$0xf]
        %v4235 = vld [vmem:[%s4221 + $0x34] sm:$0xf]
        %v4236 = vld [vmem:[%s4221 + $0x38] sm:$0xf]
        %v4237 = vld [vmem:[%s4221 + $0x3c] sm:$0xf]
        %v4238 = vrot.slane %v3788, 2
        %v4256 = vunpack.c.l.b16 %v4222
        %v4257 = vunpack.c.l.b16 %v4223
        %v4258 = vunpack.c.l.b16 %v4224
        %v4259 = vunpack.c.l.b16 %v4225
        %v4260 = vunpack.c.l.b16 %v4226
        %v4261 = vunpack.c.l.b16 %v4227
        %v4262 = vunpack.c.l.b16 %v4228
        %v4263 = vunpack.c.l.b16 %v4229
        %v4264 = vunpack.c.l.b16 %v4230
        %v4265 = vunpack.c.l.b16 %v4231
        %v4266 = vunpack.c.l.b16 %v4232
        %v4267 = vunpack.c.l.b16 %v4233
        %v4268 = vunpack.c.l.b16 %v4234
        %v4269 = vunpack.c.l.b16 %v4235
        %v4270 = vunpack.c.l.b16 %v4236
        %v4271 = vunpack.c.l.b16 %v4237
        %v4272 = vpack.c.b16 %v4257, %v4256
        %v4273 = vpack.c.b16 %v4259, %v4258
        %v4274 = vpack.c.b16 %v4261, %v4260
        %v4275 = vpack.c.b16 %v4263, %v4262
        %v4276 = vpack.c.b16 %v4265, %v4264
        %v4277 = vpack.c.b16 %v4267, %v4266
        %v4278 = vpack.c.b16 %v4269, %v4268
        %v4279 = vpack.c.b16 %v4271, %v4270
        %4288 = vmatprep.subr.bf16.mxu0 0
        %4289 = vmatpush1.bf16.msra.mxu0 %v4272
        %4290 = vmatprep.subr.bf16.mxu0 0
        %4291 = vmatpush1.bf16.msra.mxu0 %v4273
        %4292 = vmatprep.subr.bf16.mxu0 0
        %4293 = vmatpush1.bf16.msra.mxu0 %v4274
        %4294 = vmatprep.subr.bf16.mxu0 0
        %4295 = vmatpush1.bf16.msra.mxu0 %v4275
        %4296 = vmatprep.subr.bf16.mxu0 0
        %4297 = vmatpush1.bf16.msra.mxu0 %v4276
        %4298 = vmatprep.subr.bf16.mxu0 0
        %4299 = vmatpush1.bf16.msra.mxu0 %v4277
        %4300 = vmatprep.subr.bf16.mxu0 0
        %4301 = vmatpush1.bf16.msra.mxu0 %v4278
        %4302 = vmatprep.subr.bf16.mxu0 0
        %4303 = vmatpush1.bf16.msra.mxu0 %v4279
        %4304 = vmatprep.subr.bf16.mxu0 0
        %4305 = vmatpush1.bf16.msra.mxu0 0
        %4306 = vmatprep.subr.bf16.mxu0 0
        %4307 = vmatpush1.bf16.msra.mxu0 0
        %4308 = vmatprep.subr.bf16.mxu0 0
        %4309 = vmatpush1.bf16.msra.mxu0 0
        %4310 = vmatprep.subr.bf16.mxu0 0
        %4311 = vmatpush1.bf16.msra.mxu0 0
        %4312 = vmatprep.subr.bf16.mxu0 0
        %4313 = vmatpush1.bf16.msra.mxu0 0
        %4314 = vmatprep.subr.bf16.mxu0 0
        %4315 = vmatpush1.bf16.msra.mxu0 0
        %4316 = vmatprep.subr.bf16.mxu0 0
        %4317 = vmatpush1.bf16.msra.mxu0 0
        %4318 = vmatprep.subr.bf16.mxu0 0
        %4319 = vmatpush1.bf16.msra.mxu0 0
        %4320 = vmatprep.mubr.bf16.mxu0 0
        %4321 = vmatmul.mubr.bf16.gmra.mrb[0].mxu0 %v4238
        %v4322 = vpop.f32.mrb[0].mxu0
        %v4323 = vadd.f32 0.0, %v4322
        %v4324 = vpop.f32.mrb[0].mxu0
        %v4325 = vpop.f32.mrb[0].mxu0
        %v4326 = vpop.f32.mrb[0].mxu0
        %4327 = vdwg.mxu0
        %v4328 = vadd.f32 %v4220, %v4323
        %s4329 = scalar_lea.vmem %s16, 320
        %v4330 = vld [vmem:[%s4329] sm:$0xf]
        %v4331 = vld [vmem:[%s4329 + $0x4] sm:$0xf]
        %v4332 = vld [vmem:[%s4329 + $0x8] sm:$0xf]
        %v4333 = vld [vmem:[%s4329 + $0xc] sm:$0xf]
        %v4334 = vld [vmem:[%s4329 + $0x10] sm:$0xf]
        %v4335 = vld [vmem:[%s4329 + $0x14] sm:$0xf]
        %v4336 = vld [vmem:[%s4329 + $0x18] sm:$0xf]
        %v4337 = vld [vmem:[%s4329 + $0x1c] sm:$0xf]
        %v4338 = vld [vmem:[%s4329 + $0x20] sm:$0xf]
        %v4339 = vld [vmem:[%s4329 + $0x24] sm:$0xf]
        %v4340 = vld [vmem:[%s4329 + $0x28] sm:$0xf]
        %v4341 = vld [vmem:[%s4329 + $0x2c] sm:$0xf]
        %v4342 = vld [vmem:[%s4329 + $0x30] sm:$0xf]
        %v4343 = vld [vmem:[%s4329 + $0x34] sm:$0xf]
        %v4344 = vld [vmem:[%s4329 + $0x38] sm:$0xf]
        %v4345 = vld [vmem:[%s4329 + $0x3c] sm:$0xf]
        %v4346 = vrot.slane %v3912, 2
        %v4364 = vunpack.c.l.b16 %v4330
        %v4365 = vunpack.c.l.b16 %v4331
        %v4366 = vunpack.c.l.b16 %v4332
        %v4367 = vunpack.c.l.b16 %v4333
        %v4368 = vunpack.c.l.b16 %v4334
        %v4369 = vunpack.c.l.b16 %v4335
        %v4370 = vunpack.c.l.b16 %v4336
        %v4371 = vunpack.c.l.b16 %v4337
        %v4372 = vunpack.c.l.b16 %v4338
        %v4373 = vunpack.c.l.b16 %v4339
        %v4374 = vunpack.c.l.b16 %v4340
        %v4375 = vunpack.c.l.b16 %v4341
        %v4376 = vunpack.c.l.b16 %v4342
        %v4377 = vunpack.c.l.b16 %v4343
        %v4378 = vunpack.c.l.b16 %v4344
        %v4379 = vunpack.c.l.b16 %v4345
        %v4380 = vpack.c.b16 %v4365, %v4364
        %v4381 = vpack.c.b16 %v4367, %v4366
        %v4382 = vpack.c.b16 %v4369, %v4368
        %v4383 = vpack.c.b16 %v4371, %v4370
        %v4384 = vpack.c.b16 %v4373, %v4372
        %v4385 = vpack.c.b16 %v4375, %v4374
        %v4386 = vpack.c.b16 %v4377, %v4376
        %v4387 = vpack.c.b16 %v4379, %v4378
        %4396 = vmatprep.subr.bf16.mxu0 0
        %4397 = vmatpush1.bf16.msra.mxu0 %v4380
        %4398 = vmatprep.subr.bf16.mxu0 0
        %4399 = vmatpush1.bf16.msra.mxu0 %v4381
        %4400 = vmatprep.subr.bf16.mxu0 0
        %4401 = vmatpush1.bf16.msra.mxu0 %v4382
        %4402 = vmatprep.subr.bf16.mxu0 0
        %4403 = vmatpush1.bf16.msra.mxu0 %v4383
        %4404 = vmatprep.subr.bf16.mxu0 0
        %4405 = vmatpush1.bf16.msra.mxu0 %v4384
        %4406 = vmatprep.subr.bf16.mxu0 0
        %4407 = vmatpush1.bf16.msra.mxu0 %v4385
        %4408 = vmatprep.subr.bf16.mxu0 0
        %4409 = vmatpush1.bf16.msra.mxu0 %v4386
        %4410 = vmatprep.subr.bf16.mxu0 0
        %4411 = vmatpush1.bf16.msra.mxu0 %v4387
        %4412 = vmatprep.subr.bf16.mxu0 0
        %4413 = vmatpush1.bf16.msra.mxu0 0
        %4414 = vmatprep.subr.bf16.mxu0 0
        %4415 = vmatpush1.bf16.msra.mxu0 0
        %4416 = vmatprep.subr.bf16.mxu0 0
        %4417 = vmatpush1.bf16.msra.mxu0 0
        %4418 = vmatprep.subr.bf16.mxu0 0
        %4419 = vmatpush1.bf16.msra.mxu0 0
        %4420 = vmatprep.subr.bf16.mxu0 0
        %4421 = vmatpush1.bf16.msra.mxu0 0
        %4422 = vmatprep.subr.bf16.mxu0 0
        %4423 = vmatpush1.bf16.msra.mxu0 0
        %4424 = vmatprep.subr.bf16.mxu0 0
        %4425 = vmatpush1.bf16.msra.mxu0 0
        %4426 = vmatprep.subr.bf16.mxu0 0
        %4427 = vmatpush1.bf16.msra.mxu0 0
        %4428 = vmatprep.mubr.bf16.mxu0 0
        %4429 = vmatmul.mubr.bf16.gmra.mrb[0].mxu0 %v4346
        %v4430 = vpop.f32.mrb[0].mxu0
        %v4431 = vadd.f32 0.0, %v4430
        %v4432 = vpop.f32.mrb[0].mxu0
        %v4433 = vpop.f32.mrb[0].mxu0
        %v4434 = vpop.f32.mrb[0].mxu0
        %4435 = vdwg.mxu0
        %v4436 = vadd.f32 %v4328, %v4431
        %s4437 = scalar_lea.vmem %s16, 384
        %v4438 = vld [vmem:[%s4437] sm:$0xf]
        %v4439 = vld [vmem:[%s4437 + $0x4] sm:$0xf]
        %v4440 = vld [vmem:[%s4437 + $0x8] sm:$0xf]
        %v4441 = vld [vmem:[%s4437 + $0xc] sm:$0xf]
        %v4442 = vld [vmem:[%s4437 + $0x10] sm:$0xf]
        %v4443 = vld [vmem:[%s4437 + $0x14] sm:$0xf]
        %v4444 = vld [vmem:[%s4437 + $0x18] sm:$0xf]
        %v4445 = vld [vmem:[%s4437 + $0x1c] sm:$0xf]
        %v4446 = vld [vmem:[%s4437 + $0x20] sm:$0xf]
        %v4447 = vld [vmem:[%s4437 + $0x24] sm:$0xf]
        %v4448 = vld [vmem:[%s4437 + $0x28] sm:$0xf]
        %v4449 = vld [vmem:[%s4437 + $0x2c] sm:$0xf]
        %v4450 = vld [vmem:[%s4437 + $0x30] sm:$0xf]
        %v4451 = vld [vmem:[%s4437 + $0x34] sm:$0xf]
        %v4452 = vld [vmem:[%s4437 + $0x38] sm:$0xf]
        %v4453 = vld [vmem:[%s4437 + $0x3c] sm:$0xf]
        %v4454 = vrot.slane %v3788, 3
        %v4472 = vunpack.c.l.b16 %v4438
        %v4473 = vunpack.c.l.b16 %v4439
        %v4474 = vunpack.c.l.b16 %v4440
        %v4475 = vunpack.c.l.b16 %v4441
        %v4476 = vunpack.c.l.b16 %v4442
        %v4477 = vunpack.c.l.b16 %v4443
        %v4478 = vunpack.c.l.b16 %v4444
        %v4479 = vunpack.c.l.b16 %v4445
        %v4480 = vunpack.c.l.b16 %v4446
        %v4481 = vunpack.c.l.b16 %v4447
        %v4482 = vunpack.c.l.b16 %v4448
        %v4483 = vunpack.c.l.b16 %v4449
        %v4484 = vunpack.c.l.b16 %v4450
        %v4485 = vunpack.c.l.b16 %v4451
        %v4486 = vunpack.c.l.b16 %v4452
        %v4487 = vunpack.c.l.b16 %v4453
        %v4488 = vpack.c.b16 %v4473, %v4472
        %v4489 = vpack.c.b16 %v4475, %v4474
        %v4490 = vpack.c.b16 %v4477, %v4476
        %v4491 = vpack.c.b16 %v4479, %v4478
        %v4492 = vpack.c.b16 %v4481, %v4480
        %v4493 = vpack.c.b16 %v4483, %v4482
        %v4494 = vpack.c.b16 %v4485, %v4484
        %v4495 = vpack.c.b16 %v4487, %v4486
        %4504 = vmatprep.subr.bf16.mxu0 0
        %4505 = vmatpush1.bf16.msra.mxu0 %v4488
        %4506 = vmatprep.subr.bf16.mxu0 0
        %4507 = vmatpush1.bf16.msra.mxu0 %v4489
        %4508 = vmatprep.subr.bf16.mxu0 0
        %4509 = vmatpush1.bf16.msra.mxu0 %v4490
        %4510 = vmatprep.subr.bf16.mxu0 0
        %4511 = vmatpush1.bf16.msra.mxu0 %v4491
        %4512 = vmatprep.subr.bf16.mxu0 0
        %4513 = vmatpush1.bf16.msra.mxu0 %v4492
        %4514 = vmatprep.subr.bf16.mxu0 0
        %4515 = vmatpush1.bf16.msra.mxu0 %v4493
        %4516 = vmatprep.subr.bf16.mxu0 0
        %4517 = vmatpush1.bf16.msra.mxu0 %v4494
        %4518 = vmatprep.subr.bf16.mxu0 0
        %4519 = vmatpush1.bf16.msra.mxu0 %v4495
        %4520 = vmatprep.subr.bf16.mxu0 0
        %4521 = vmatpush1.bf16.msra.mxu0 0
        %4522 = vmatprep.subr.bf16.mxu0 0
        %4523 = vmatpush1.bf16.msra.mxu0 0
        %4524 = vmatprep.subr.bf16.mxu0 0
        %4525 = vmatpush1.bf16.msra.mxu0 0
        %4526 = vmatprep.subr.bf16.mxu0 0
        %4527 = vmatpush1.bf16.msra.mxu0 0
        %4528 = vmatprep.subr.bf16.mxu0 0
        %4529 = vmatpush1.bf16.msra.mxu0 0
        %4530 = vmatprep.subr.bf16.mxu0 0
        %4531 = vmatpush1.bf16.msra.mxu0 0
        %4532 = vmatprep.subr.bf16.mxu0 0
        %4533 = vmatpush1.bf16.msra.mxu0 0
        %4534 = vmatprep.subr.bf16.mxu0 0
        %4535 = vmatpush1.bf16.msra.mxu0 0
        %4536 = vmatprep.mubr.bf16.mxu0 0
        %4537 = vmatmul.mubr.bf16.gmra.mrb[0].mxu0 %v4454
        %v4538 = vpop.f32.mrb[0].mxu0
        %v4539 = vadd.f32 0.0, %v4538
        %v4540 = vpop.f32.mrb[0].mxu0
        %v4541 = vpop.f32.mrb[0].mxu0
        %v4542 = vpop.f32.mrb[0].mxu0
        %4543 = vdwg.mxu0
        %v4544 = vadd.f32 %v4436, %v4539
        %s4545 = scalar_lea.vmem %s16, 448
        %v4546 = vld [vmem:[%s4545] sm:$0xf]
        %v4547 = vld [vmem:[%s4545 + $0x4] sm:$0xf]
        %v4548 = vld [vmem:[%s4545 + $0x8] sm:$0xf]
        %v4549 = vld [vmem:[%s4545 + $0xc] sm:$0xf]
        %v4550 = vld [vmem:[%s4545 + $0x10] sm:$0xf]
        %v4551 = vld [vmem:[%s4545 + $0x14] sm:$0xf]
        %v4552 = vld [vmem:[%s4545 + $0x18] sm:$0xf]
        %v4553 = vld [vmem:[%s4545 + $0x1c] sm:$0xf]
        %v4554 = vld [vmem:[%s4545 + $0x20] sm:$0xf]
        %v4555 = vld [vmem:[%s4545 + $0x24] sm:$0xf]
        %v4556 = vld [vmem:[%s4545 + $0x28] sm:$0xf]
        %v4557 = vld [vmem:[%s4545 + $0x2c] sm:$0xf]
        %v4558 = vld [vmem:[%s4545 + $0x30] sm:$0xf]
        %v4559 = vld [vmem:[%s4545 + $0x34] sm:$0xf]
        %v4560 = vld [vmem:[%s4545 + $0x38] sm:$0xf]
        %v4561 = vld [vmem:[%s4545 + $0x3c] sm:$0xf]
        %v4562 = vrot.slane %v3912, 3
        %v4580 = vunpack.c.l.b16 %v4546
        %v4581 = vunpack.c.l.b16 %v4547
        %v4582 = vunpack.c.l.b16 %v4548
        %v4583 = vunpack.c.l.b16 %v4549
        %v4584 = vunpack.c.l.b16 %v4550
        %v4585 = vunpack.c.l.b16 %v4551
        %v4586 = vunpack.c.l.b16 %v4552
        %v4587 = vunpack.c.l.b16 %v4553
        %v4588 = vunpack.c.l.b16 %v4554
        %v4589 = vunpack.c.l.b16 %v4555
        %v4590 = vunpack.c.l.b16 %v4556
        %v4591 = vunpack.c.l.b16 %v4557
        %v4592 = vunpack.c.l.b16 %v4558
        %v4593 = vunpack.c.l.b16 %v4559
        %v4594 = vunpack.c.l.b16 %v4560
        %v4595 = vunpack.c.l.b16 %v4561
        %v4596 = vpack.c.b16 %v4581, %v4580
        %v4597 = vpack.c.b16 %v4583, %v4582
        %v4598 = vpack.c.b16 %v4585, %v4584
        %v4599 = vpack.c.b16 %v4587, %v4586
        %v4600 = vpack.c.b16 %v4589, %v4588
        %v4601 = vpack.c.b16 %v4591, %v4590
        %v4602 = vpack.c.b16 %v4593, %v4592
        %v4603 = vpack.c.b16 %v4595, %v4594
        %4612 = vmatprep.subr.bf16.mxu0 0
        %4613 = vmatpush1.bf16.msra.mxu0 %v4596
        %4614 = vmatprep.subr.bf16.mxu0 0
        %4615 = vmatpush1.bf16.msra.mxu0 %v4597
        %4616 = vmatprep.subr.bf16.mxu0 0
        %4617 = vmatpush1.bf16.msra.mxu0 %v4598
        %4618 = vmatprep.subr.bf16.mxu0 0
        %4619 = vmatpush1.bf16.msra.mxu0 %v4599
        %4620 = vmatprep.subr.bf16.mxu0 0
        %4621 = vmatpush1.bf16.msra.mxu0 %v4600
        %4622 = vmatprep.subr.bf16.mxu0 0
        %4623 = vmatpush1.bf16.msra.mxu0 %v4601
        %4624 = vmatprep.subr.bf16.mxu0 0
        %4625 = vmatpush1.bf16.msra.mxu0 %v4602
        %4626 = vmatprep.subr.bf16.mxu0 0
        %4627 = vmatpush1.bf16.msra.mxu0 %v4603
        %4628 = vmatprep.subr.bf16.mxu0 0
        %4629 = vmatpush1.bf16.msra.mxu0 0
        %4630 = vmatprep.subr.bf16.mxu0 0
        %4631 = vmatpush1.bf16.msra.mxu0 0
        %4632 = vmatprep.subr.bf16.mxu0 0
        %4633 = vmatpush1.bf16.msra.mxu0 0
        %4634 = vmatprep.subr.bf16.mxu0 0
        %4635 = vmatpush1.bf16.msra.mxu0 0
        %4636 = vmatprep.subr.bf16.mxu0 0
        %4637 = vmatpush1.bf16.msra.mxu0 0
        %4638 = vmatprep.subr.bf16.mxu0 0
        %4639 = vmatpush1.bf16.msra.mxu0 0
        %4640 = vmatprep.subr.bf16.mxu0 0
        %4641 = vmatpush1.bf16.msra.mxu0 0
        %4642 = vmatprep.subr.bf16.mxu0 0
        %4643 = vmatpush1.bf16.msra.mxu0 0
        %4644 = vmatprep.mubr.bf16.mxu0 0
        %4645 = vmatmul.mubr.bf16.gmra.mrb[0].mxu0 %v4562
        %v4646 = vpop.f32.mrb[0].mxu0
        %v4647 = vadd.f32 0.0, %v4646
        %v4648 = vpop.f32.mrb[0].mxu0
        %v4649 = vpop.f32.mrb[0].mxu0
        %v4650 = vpop.f32.mrb[0].mxu0
        %4651 = vdwg.mxu0
        %v4652 = vadd.f32 %v4544, %v4647
        %vm4653 = vcmask 253952
        %4654 = vst.msk [vmem:[%s655] sm:$0x1] %vm4653, %v4652
        %s4655 = sand.u32 %s427, 1
        %s4656 = scalar_lea.sflag [#allocation4], %s4655
        %s4657 = sand.u32 %s427, 1
        %s4658 = scalar_lea.vmem [#allocation13], %s4657
        // Predicated region
        $region117: #{tpu_custom_call.1} parent=91 // pred_check
          %p4659 = pneg %p437
        $region118: #{tpu_custom_call.1} parent=91 // pred_check_branch
          %4661 = sbr.rel (%p4659) target = $region120
        $region119: #{tpu_custom_call.1} parent=91 // pred_region
          %s4663 = ssub.s32 16, 16
          %4664 = vsyncadd %s4656, %s4663
          %s4665 = smul.addr %s36, 16
          %s4666 = scalar_lea.hbm %s18, %s4665
          %s4668 = sshll.u32 %s4658, 4
          %s4669 = int_to_ptr.vmem [resolvable:$true] %s4668
          %4671 = dma.vmem_to_hbm [thread:$0]  %s4669, 16, %s4666, %s4656
        $region120: #{tpu_custom_call.1} parent=91 // pred_fallthru
          _
      $region92: #{tpu_custom_call.1} parent=5 // pred_fallthru
        _
      %p4672 = scmp.le.s32.totalorder 2, %s31
      // Predicated region
      $region121: #{tpu_custom_call.1} parent=5 // pred_check
        %p4673 = pneg %p4672
      $region122: #{tpu_custom_call.1} parent=5 // pred_check_branch
        %4675 = sbr.rel (%p4673) target = $region124
      $region123: #{tpu_custom_call.1} parent=5 // pred_region
        %s4676 = ssub.s32 %s31, 2
        // Predicated region
        $region125: #{tpu_custom_call.1} parent=123 // pred_check
          %p4677 = pneg %p443
        $region126: #{tpu_custom_call.1} parent=123 // pred_check_branch
          %4679 = sbr.rel (%p4677) target = $region128
        $region127: #{tpu_custom_call.1} parent=123 // pred_region
          %s4680 = sand.u32 %s428, 1
          %s4681 = scalar_lea.sflag [#allocation4], %s4680
          %s4682 = sand.u32 %s428, 1
          %s4683 = scalar_lea.vmem [#allocation13], %s4682
          %4684 = dma.done %s4681, 16
        $region128: #{tpu_custom_call.1} parent=123 // pred_fallthru
          _
      $region124: #{tpu_custom_call.1} parent=5 // pred_fallthru
        _
    $region6: #{tpu_custom_call.1} parent=1 // loop_footer
      %s35 = sadd.s32 1, %s31
    $region7: #{tpu_custom_call.1} parent=1 // loop_footer_branch
      %30 = sbr.rel target = $region3
    $region8: #{tpu_custom_call.1} parent=1 // loop_exit
      _
    %4685 = vsyncpa [#allocation3], 1
    %s4686 = scalar_lea.sflag [#allocation3], 1
    %4687 = vsyncpa %s4686, 1
    %4688 = vsyncpa [#allocation6], 1
    %4689 = vsyncpa [#allocation9], 1
    %4690 = vsyncpa [#allocation12], 1
    %4691 = vsyncpa [#allocation4], 1
    %s4692 = scalar_lea.sflag [#allocation4], 1
    %4693 = vsyncpa %s4692, 1

</llo_original>
